<compile_context>
chip_gen: v7x
topology: tpu7x:2x2x1
jax: 0.10.0
libtpu: 0.0.40
codegen_flags: <defaults>
</compile_context>

<pallas_src>
import jax
import jax.numpy as jnp
import numpy as np
from jax.experimental import pallas as pl
from jax.experimental.pallas import tpu as pltpu


def _lstm_kernel(maxlen_ref,                    # SMEM (1,)  scalar-prefetch: max(lengs)
                 lengs_ref,                     # VMEM (B, 1) int32
                 x_ref,                         # VMEM (B, TB, D)
                 wih_ref,                       # VMEM (4, D, H)   per-gate W_ih^T
                 whh_ref,                       # VMEM (4, H, H)   per-gate W_hh^T
                 b_ref,                         # VMEM (4, 1, H)   per-gate b_ih + b_hh
                 wlin_ref,                      # VMEM (H, O)
                 blin_ref,                      # VMEM (1, O)
                 out_ref,                       # VMEM (B, O)
                 h_ref, c_ref):                 # VMEM scratch (B, H) carried over blocks
    tb = pl.program_id(0)
    B, TB, D = x_ref.shape
    H = h_ref.shape[-1]

    @pl.when(tb == 0)
    def _():
        h_ref[...] = jnp.zeros_like(h_ref)
        c_ref[...] = jnp.zeros_like(c_ref)

    # Skip time blocks that lie entirely past the longest sequence (pure padding).
    @pl.when(tb * TB < maxlen_ref[0])
    def _():
        x_blk = x_ref[...]                      # (B, TB, D)
        lengs = lengs_ref[...]                  # (B, 1) int32

        # ---- Hoisted input projection (no recurrence dependence) ----------------
        # One (B*TB, D) @ (D, H) matmul per gate; bias folded in.
        # With TB a multiple of 8 the leading-dim merge/split reshapes are
        # layout-preserving (sublane tile = 8). Gate order: i, f, g, o.
        x2d = x_blk.reshape(B * TB, D)
        xw = [jnp.dot(x2d, wih_ref[k],
                      preferred_element_type=jnp.float32).reshape(B, TB, H)
              + b_ref[k]                        # (1, H) broadcast -> (B, TB, H)
              for k in range(4)]

        # Hoist recurrent weights out of the step loop.
        whh = [whh_ref[k] for k in range(4)]    # each (H, H)

        h = h_ref[...]
        c = c_ref[...]

        # ---- Serial recurrence over the block (small static unroll) -------------
        for t in range(TB):
            pre = [xw[k][:, t, :]
                   + jnp.dot(h, whh[k], preferred_element_type=jnp.float32)
                   for k in range(4)]           # each (B, H)
            i_g = jax.nn.sigmoid(pre[0])
            f_g = jax.nn.sigmoid(pre[1])
            g_g = jnp.tanh(pre[2])
            o_g = jax.nn.sigmoid(pre[3])
            c_new = f_g * c + i_g * g_g
            h_new = o_g * jnp.tanh(c_new)
            # Packed-sequence semantics: freeze the state once t >= lengs[b].
            valid = (tb * TB + t) < lengs       # (B, 1) bool
            h = jnp.where(valid, h_new, h)
            c = jnp.where(valid, c_new, c)

        h_ref[...] = h
        c_ref[...] = c

    # ---- Final hidden -> linear -> softmax (runs once, on the last grid step) ---
    @pl.when(tb == pl.num_programs(0) - 1)
    def _():
        logits = (jnp.dot(h_ref[...], wlin_ref[...],
                          preferred_element_type=jnp.float32)
                  + blin_ref[...])              # (B, O)
        m = jnp.max(logits, axis=-1, keepdims=True)
        e = jnp.exp(logits - m)
        out_ref[...] = (e * pl.reciprocal(jnp.sum(e, axis=-1, keepdims=True))
                        ).astype(out_ref.dtype)


def rnn_forward(x, lengs, params, *, time_block=16):
    """x: (B, T, D) float32 batch-first, lengs: (B,) int. Returns softmax probs (B, O)."""
    B, T, D = x.shape
    wih, whh, bias, wlin, blin = params         # (4,D,H), (4,H,H), (4,1,H), (H,O), (1,O)
    H = whh.shape[-1]
    O = wlin.shape[1]

    # Time-block size: second-to-last dim of the x block must be a multiple of 8
    # (sublane tiling) or equal the full time extent.
    TB = T if T <= time_block else time_block
    assert TB == T or TB % 8 == 0, "time_block must be a multiple of 8"
    nblk = pl.cdiv(T, TB)

    lengs2d = lengs.astype(jnp.int32).reshape(B, 1)
    maxlen = jnp.max(lengs).astype(jnp.int32).reshape(1)

    grid_spec = pltpu.PrefetchScalarGridSpec(
        num_scalar_prefetch=1,                  # maxlen -> SMEM
        grid=(nblk,),
        in_specs=[
            pl.BlockSpec((B, 1), lambda t, m: (0, 0)),            # lengths (vector mask)
            pl.BlockSpec((B, TB, D), lambda t, m: (0, t, 0)),     # x time block, batch-first
            pl.BlockSpec((4, D, H), lambda t, m: (0, 0, 0)),      # per-gate W_ih^T
            pl.BlockSpec((4, H, H), lambda t, m: (0, 0, 0)),      # per-gate W_hh^T
            pl.BlockSpec((4, 1, H), lambda t, m: (0, 0, 0)),      # per-gate bias
            pl.BlockSpec((H, O), lambda t, m: (0, 0)),            # W_lin^T
            pl.BlockSpec((1, O), lambda t, m: (0, 0)),            # b_lin
        ],
        out_specs=pl.BlockSpec((B, O), lambda t, m: (0, 0)),
        scratch_shapes=[
            pltpu.VMEM((B, H), jnp.float32),    # h carry
            pltpu.VMEM((B, H), jnp.float32),    # c carry
        ],
    )

    return pl.pallas_call(
        _lstm_kernel,
        out_shape=jax.ShapeDtypeStruct((B, O), jnp.float32),
        grid_spec=grid_spec,
        compiler_params=pltpu.CompilerParams(
            dimension_semantics=("arbitrary",)),   # h/c carried across time blocks
    )(maxlen, lengs2d, x, wih, whh, bias, wlin, blin)


def init_params(key, data_size, hidden_size, output_size):
    """Deterministic init mimicking PyTorch ranges; weights stored per-gate (i,f,g,o)
    and transposed for right-multiplication (x @ W)."""
    k = jax.random.split(key, 6)
    s = 1.0 / np.sqrt(hidden_size)
    wih = jax.random.uniform(k[0], (4, data_size, hidden_size), jnp.float32, -s, s)
    whh = jax.random.uniform(k[1], (4, hidden_size, hidden_size), jnp.float32, -s, s)
    b_ih = jax.random.uniform(k[2], (4, 1, hidden_size), jnp.float32, -s, s)
    b_hh = jax.random.uniform(k[3], (4, 1, hidden_size), jnp.float32, -s, s)
    wlin = jax.random.uniform(k[4], (hidden_size, output_size), jnp.float32, -s, s)
    blin = jax.random.uniform(k[5], (1, output_size), jnp.float32, -s, s)
    return (wih, whh, b_ih + b_hh, wlin, blin)


def rnn_reference(x, lengs, params):
    """Pure-JAX reference (lax.scan) for verification."""
    wih, whh, bias, wlin, blin = params
    B, T, D = x.shape
    H = whh.shape[-1]

    def step(carry, inp):
        h, c = carry
        x_t, t = inp
        pre = [x_t @ wih[k] + h @ whh[k] + bias[k] for k in range(4)]
        i = jax.nn.sigmoid(pre[0])
        f = jax.nn.sigmoid(pre[1])
        g = jnp.tanh(pre[2])
        o = jax.nn.sigmoid(pre[3])
        c_new = f * c + i * g
        h_new = o * jnp.tanh(c_new)
        valid = (t < lengs)[:, None]
        return (jnp.where(valid, h_new, h), jnp.where(valid, c_new, c)), None

    h0 = jnp.zeros((B, H), jnp.float32)
    c0 = jnp.zeros((B, H), jnp.float32)
    (h, _), _ = jax.lax.scan(step, (h0, c0),
                             (jnp.transpose(x, (1, 0, 2)), jnp.arange(T)))
    logits = h @ wlin + blin
    return jax.nn.softmax(logits, axis=1)


if __name__ == "__main__":
    B, T, D, H, O = 4, 16, 16, 32, 8
    key = jax.random.PRNGKey(0)
    kx, kp = jax.random.split(key)

    x = jax.random.normal(kx, (B, T, D), jnp.float32)
    params = init_params(kp, D, H, O)

    # Case 1: lengths span both time blocks (TB=8); unsorted (enforce_sorted=False).
    lengs1 = jnp.array([16, 5, 3, 11], dtype=jnp.int32)
    y1 = jax.block_until_ready(rnn_forward(x, lengs1, params, time_block=8))
    np.testing.assert_allclose(np.asarray(y1),
                               np.asarray(rnn_reference(x, lengs1, params)),
                               atol=1e-5, rtol=1e-5)

    # Case 2: max length < TB -> the second time block is skipped entirely via pl.when.
    lengs2 = jnp.array([7, 5, 3, 6], dtype=jnp.int32)
    y2 = jax.block_until_ready(rnn_forward(x, lengs2, params, time_block=8))
    np.testing.assert_allclose(np.asarray(y2),
                               np.asarray(rnn_reference(x, lengs2, params)),
                               atol=1e-5, rtol=1e-5)

    print("KERNEL_OK")
</pallas_src>

<mosaic_0001>
module attributes {stable_mosaic.version = 11 : i64} {
  func.func @_lstm_kernel(%arg0: i32, %arg1: memref<1xi32, #tpu.memory_space<smem>>, %arg2: memref<4x1xi32, #tpu.memory_space<vmem>>, %arg3: memref<4x8x16xf32, #tpu.memory_space<vmem>>, %arg4: memref<4x16x32xf32, #tpu.memory_space<vmem>>, %arg5: memref<4x32x32xf32, #tpu.memory_space<vmem>>, %arg6: memref<4x1x32xf32, #tpu.memory_space<vmem>>, %arg7: memref<32x8xf32, #tpu.memory_space<vmem>>, %arg8: memref<1x8xf32, #tpu.memory_space<vmem>>, %arg9: memref<4x8xf32, #tpu.memory_space<vmem>>, %arg10: memref<4x32xf32, #tpu.memory_space<vmem>>, %arg11: memref<4x32xf32, #tpu.memory_space<vmem>>) attributes {dimension_semantics = [#tpu.dimension_semantics<arbitrary>], iteration_bounds = array<i64: 2>, scalar_prefetch = 1 : i64, scratch_operands = 2 : i64, tpu.core_type = #tpu.core_type<tc>, window_params = [{pipeline_mode = #tpu.pipeline_mode<synchronous>, transform_indices = @transform_0, window_bounds = array<i64: 4, 1>}, {transform_indices = @transform_1, window_bounds = array<i64: 4, 8, 16>}, {pipeline_mode = #tpu.pipeline_mode<synchronous>, transform_indices = @transform_2, window_bounds = array<i64: 4, 16, 32>}, {pipeline_mode = #tpu.pipeline_mode<synchronous>, transform_indices = @transform_3, window_bounds = array<i64: 4, 32, 32>}, {pipeline_mode = #tpu.pipeline_mode<synchronous>, transform_indices = @transform_4, window_bounds = array<i64: 4, 1, 32>}, {pipeline_mode = #tpu.pipeline_mode<synchronous>, transform_indices = @transform_5, window_bounds = array<i64: 32, 8>}, {pipeline_mode = #tpu.pipeline_mode<synchronous>, transform_indices = @transform_6, window_bounds = array<i64: 1, 8>}, {pipeline_mode = #tpu.pipeline_mode<synchronous>, transform_indices = @transform_7, window_bounds = array<i64: 4, 8>}]} {
    %c0_i32 = arith.constant 0 : i32
    %0 = arith.cmpi eq, %arg0, %c0_i32 : i32
    %1 = arith.extui %0 : i1 to i32
    %c0_i32_0 = arith.constant 0 : i32
    %2 = arith.cmpi ne, %1, %c0_i32_0 : i32
    scf.if %2 {
      %cst = arith.constant 0.000000e+00 : f32
      %11 = vector.broadcast %cst : f32 to vector<4x32xf32>
      %c0_3 = arith.constant 0 : index
      %c0_4 = arith.constant 0 : index
      %12 = vector.load %arg10[%c0_3, %c0_4] : memref<4x32xf32, #tpu.memory_space<vmem>>, vector<4x32xf32>
      tpu.vector_store %arg10[%c0_3, %c0_4], %11 {strides = array<i32>} : memref<4x32xf32, #tpu.memory_space<vmem>>, vector<4x32xf32>,
      %cst_5 = arith.constant 0.000000e+00 : f32
      %13 = vector.broadcast %cst_5 : f32 to vector<4x32xf32>
      %c0_6 = arith.constant 0 : index
      %c0_7 = arith.constant 0 : index
      %14 = vector.load %arg11[%c0_6, %c0_7] : memref<4x32xf32, #tpu.memory_space<vmem>>, vector<4x32xf32>
      tpu.vector_store %arg11[%c0_6, %c0_7], %13 {strides = array<i32>} : memref<4x32xf32, #tpu.memory_space<vmem>>, vector<4x32xf32>,
    } else {
    }
    %c8_i32 = arith.constant 8 : i32
    %3 = arith.muli %arg0, %c8_i32 : i32
    %c0 = arith.constant 0 : index
    %4 = memref.load %arg1[%c0] : memref<1xi32, #tpu.memory_space<smem>>
    %5 = arith.cmpi slt, %3, %4 : i32
    %6 = arith.extui %5 : i1 to i32
    %c0_i32_1 = arith.constant 0 : i32
    %7 = arith.cmpi ne, %6, %c0_i32_1 : i32
    scf.if %7 {
      %c0_3 = arith.constant 0 : index
      %c0_4 = arith.constant 0 : index
      %c0_5 = arith.constant 0 : index
      %11 = vector.load %arg3[%c0_3, %c0_4, %c0_5] : memref<4x8x16xf32, #tpu.memory_space<vmem>>, vector<4x8x16xf32>
      %c0_6 = arith.constant 0 : index
      %c0_7 = arith.constant 0 : index
      %12 = vector.load %arg2[%c0_6, %c0_7] : memref<4x1xi32, #tpu.memory_space<vmem>>, vector<4x1xi32>
      %13 = vector.shape_cast %11 : vector<4x8x16xf32> to vector<32x16xf32>
      %c0_8 = arith.constant 0 : index
      %c0_9 = arith.constant 0 : index
      %c0_10 = arith.constant 0 : index
      %14 = vector.load %arg4[%c0_8, %c0_9, %c0_10] : memref<4x16x32xf32, #tpu.memory_space<vmem>>, vector<1x16x32xf32>
      %15 = vector.shape_cast %14 : vector<1x16x32xf32> to vector<16x32xf32>
      %cst = arith.constant dense<0.000000e+00> : vector<32x32xf32>
      %16 = tpu.matmul %13, %15, %cst {dimension_numbers = #tpu.dot_dimension_numbers<[1], [0], [0], [1], [0, 0, 1, 1], [], []>} : vector<32x16xf32>, vector<16x32xf32>, vector<32x32xf32> -> vector<32x32xf32>
      %17 = vector.shape_cast %16 : vector<32x32xf32> to vector<4x8x32xf32>
      %c0_11 = arith.constant 0 : index
      %c0_12 = arith.constant 0 : index
      %c0_13 = arith.constant 0 : index
      %18 = vector.load %arg6[%c0_11, %c0_12, %c0_13] : memref<4x1x32xf32, #tpu.memory_space<vmem>>, vector<1x1x32xf32>
      %19 = vector.shape_cast %18 : vector<1x1x32xf32> to vector<1x32xf32>
      %20 = vector.shape_cast %19 : vector<1x32xf32> to vector<1x1x32xf32>
      %21 = vector.broadcast %20 : vector<1x1x32xf32> to vector<4x8x32xf32>
      %22 = arith.addf %17, %21 : vector<4x8x32xf32>
      %c1 = arith.constant 1 : index
      %c0_14 = arith.constant 0 : index
      %c0_15 = arith.constant 0 : index
      %23 = vector.load %arg4[%c1, %c0_14, %c0_15] : memref<4x16x32xf32, #tpu.memory_space<vmem>>, vector<1x16x32xf32>
      %24 = vector.shape_cast %23 : vector<1x16x32xf32> to vector<16x32xf32>
      %cst_16 = arith.constant dense<0.000000e+00> : vector<32x32xf32>
      %25 = tpu.matmul %13, %24, %cst_16 {dimension_numbers = #tpu.dot_dimension_numbers<[1], [0], [0], [1], [0, 0, 1, 1], [], []>} : vector<32x16xf32>, vector<16x32xf32>, vector<32x32xf32> -> vector<32x32xf32>
      %26 = vector.shape_cast %25 : vector<32x32xf32> to vector<4x8x32xf32>
      %c1_17 = arith.constant 1 : index
      %c0_18 = arith.constant 0 : index
      %c0_19 = arith.constant 0 : index
      %27 = vector.load %arg6[%c1_17, %c0_18, %c0_19] : memref<4x1x32xf32, #tpu.memory_space<vmem>>, vector<1x1x32xf32>
      %28 = vector.shape_cast %27 : vector<1x1x32xf32> to vector<1x32xf32>
      %29 = vector.shape_cast %28 : vector<1x32xf32> to vector<1x1x32xf32>
      %30 = vector.broadcast %29 : vector<1x1x32xf32> to vector<4x8x32xf32>
      %31 = arith.addf %26, %30 : vector<4x8x32xf32>
      %c2 = arith.constant 2 : index
      %c0_20 = arith.constant 0 : index
      %c0_21 = arith.constant 0 : index
      %32 = vector.load %arg4[%c2, %c0_20, %c0_21] : memref<4x16x32xf32, #tpu.memory_space<vmem>>, vector<1x16x32xf32>
      %33 = vector.shape_cast %32 : vector<1x16x32xf32> to vector<16x32xf32>
      %cst_22 = arith.constant dense<0.000000e+00> : vector<32x32xf32>
      %34 = tpu.matmul %13, %33, %cst_22 {dimension_numbers = #tpu.dot_dimension_numbers<[1], [0], [0], [1], [0, 0, 1, 1], [], []>} : vector<32x16xf32>, vector<16x32xf32>, vector<32x32xf32> -> vector<32x32xf32>
      %35 = vector.shape_cast %34 : vector<32x32xf32> to vector<4x8x32xf32>
      %c2_23 = arith.constant 2 : index
      %c0_24 = arith.constant 0 : index
      %c0_25 = arith.constant 0 : index
      %36 = vector.load %arg6[%c2_23, %c0_24, %c0_25] : memref<4x1x32xf32, #tpu.memory_space<vmem>>, vector<1x1x32xf32>
      %37 = vector.shape_cast %36 : vector<1x1x32xf32> to vector<1x32xf32>
      %38 = vector.shape_cast %37 : vector<1x32xf32> to vector<1x1x32xf32>
      %39 = vector.broadcast %38 : vector<1x1x32xf32> to vector<4x8x32xf32>
      %40 = arith.addf %35, %39 : vector<4x8x32xf32>
      %c3 = arith.constant 3 : index
      %c0_26 = arith.constant 0 : index
      %c0_27 = arith.constant 0 : index
      %41 = vector.load %arg4[%c3, %c0_26, %c0_27] : memref<4x16x32xf32, #tpu.memory_space<vmem>>, vector<1x16x32xf32>
      %42 = vector.shape_cast %41 : vector<1x16x32xf32> to vector<16x32xf32>
      %cst_28 = arith.constant dense<0.000000e+00> : vector<32x32xf32>
      %43 = tpu.matmul %13, %42, %cst_28 {dimension_numbers = #tpu.dot_dimension_numbers<[1], [0], [0], [1], [0, 0, 1, 1], [], []>} : vector<32x16xf32>, vector<16x32xf32>, vector<32x32xf32> -> vector<32x32xf32>
      %44 = vector.shape_cast %43 : vector<32x32xf32> to vector<4x8x32xf32>
      %c3_29 = arith.constant 3 : index
      %c0_30 = arith.constant 0 : index
      %c0_31 = arith.constant 0 : index
      %45 = vector.load %arg6[%c3_29, %c0_30, %c0_31] : memref<4x1x32xf32, #tpu.memory_space<vmem>>, vector<1x1x32xf32>
      %46 = vector.shape_cast %45 : vector<1x1x32xf32> to vector<1x32xf32>
      %47 = vector.shape_cast %46 : vector<1x32xf32> to vector<1x1x32xf32>
      %48 = vector.broadcast %47 : vector<1x1x32xf32> to vector<4x8x32xf32>
      %49 = arith.addf %44, %48 : vector<4x8x32xf32>
      %c0_32 = arith.constant 0 : index
      %c0_33 = arith.constant 0 : index
      %c0_34 = arith.constant 0 : index
      %50 = vector.load %arg5[%c0_32, %c0_33, %c0_34] : memref<4x32x32xf32, #tpu.memory_space<vmem>>, vector<1x32x32xf32>
      %51 = vector.shape_cast %50 : vector<1x32x32xf32> to vector<32x32xf32>
      %c1_35 = arith.constant 1 : index
      %c0_36 = arith.constant 0 : index
      %c0_37 = arith.constant 0 : index
      %52 = vector.load %arg5[%c1_35, %c0_36, %c0_37] : memref<4x32x32xf32, #tpu.memory_space<vmem>>, vector<1x32x32xf32>
      %53 = vector.shape_cast %52 : vector<1x32x32xf32> to vector<32x32xf32>
      %c2_38 = arith.constant 2 : index
      %c0_39 = arith.constant 0 : index
      %c0_40 = arith.constant 0 : index
      %54 = vector.load %arg5[%c2_38, %c0_39, %c0_40] : memref<4x32x32xf32, #tpu.memory_space<vmem>>, vector<1x32x32xf32>
      %55 = vector.shape_cast %54 : vector<1x32x32xf32> to vector<32x32xf32>
      %c3_41 = arith.constant 3 : index
      %c0_42 = arith.constant 0 : index
      %c0_43 = arith.constant 0 : index
      %56 = vector.load %arg5[%c3_41, %c0_42, %c0_43] : memref<4x32x32xf32, #tpu.memory_space<vmem>>, vector<1x32x32xf32>
      %57 = vector.shape_cast %56 : vector<1x32x32xf32> to vector<32x32xf32>
      %c0_44 = arith.constant 0 : index
      %c0_45 = arith.constant 0 : index
      %58 = vector.load %arg10[%c0_44, %c0_45] : memref<4x32xf32, #tpu.memory_space<vmem>>, vector<4x32xf32>
      %c0_46 = arith.constant 0 : index
      %c0_47 = arith.constant 0 : index
      %59 = vector.load %arg11[%c0_46, %c0_47] : memref<4x32xf32, #tpu.memory_space<vmem>>, vector<4x32xf32>
      %60 = vector.extract_strided_slice %22 {offsets = [0, 0, 0], sizes = [4, 1, 32], strides = [1, 1, 1]} : vector<4x8x32xf32> to vector<4x1x32xf32>
      %61 = vector.shape_cast %60 : vector<4x1x32xf32> to vector<4x32xf32>
      %cst_48 = arith.constant dense<0.000000e+00> : vector<4x32xf32>
      %62 = tpu.matmul %58, %51, %cst_48 {dimension_numbers = #tpu.dot_dimension_numbers<[1], [0], [0], [1], [0, 0, 1, 1], [], []>} : vector<4x32xf32>, vector<32x32xf32>, vector<4x32xf32> -> vector<4x32xf32>
      %63 = arith.addf %61, %62 : vector<4x32xf32>
      %64 = vector.extract_strided_slice %31 {offsets = [0, 0, 0], sizes = [4, 1, 32], strides = [1, 1, 1]} : vector<4x8x32xf32> to vector<4x1x32xf32>
      %65 = vector.shape_cast %64 : vector<4x1x32xf32> to vector<4x32xf32>
      %cst_49 = arith.constant dense<0.000000e+00> : vector<4x32xf32>
      %66 = tpu.matmul %58, %53, %cst_49 {dimension_numbers = #tpu.dot_dimension_numbers<[1], [0], [0], [1], [0, 0, 1, 1], [], []>} : vector<4x32xf32>, vector<32x32xf32>, vector<4x32xf32> -> vector<4x32xf32>
      %67 = arith.addf %65, %66 : vector<4x32xf32>
      %68 = vector.extract_strided_slice %40 {offsets = [0, 0, 0], sizes = [4, 1, 32], strides = [1, 1, 1]} : vector<4x8x32xf32> to vector<4x1x32xf32>
      %69 = vector.shape_cast %68 : vector<4x1x32xf32> to vector<4x32xf32>
      %cst_50 = arith.constant dense<0.000000e+00> : vector<4x32xf32>
      %70 = tpu.matmul %58, %55, %cst_50 {dimension_numbers = #tpu.dot_dimension_numbers<[1], [0], [0], [1], [0, 0, 1, 1], [], []>} : vector<4x32xf32>, vector<32x32xf32>, vector<4x32xf32> -> vector<4x32xf32>
      %71 = arith.addf %69, %70 : vector<4x32xf32>
      %72 = vector.extract_strided_slice %49 {offsets = [0, 0, 0], sizes = [4, 1, 32], strides = [1, 1, 1]} : vector<4x8x32xf32> to vector<4x1x32xf32>
      %73 = vector.shape_cast %72 : vector<4x1x32xf32> to vector<4x32xf32>
      %cst_51 = arith.constant dense<0.000000e+00> : vector<4x32xf32>
      %74 = tpu.matmul %58, %57, %cst_51 {dimension_numbers = #tpu.dot_dimension_numbers<[1], [0], [0], [1], [0, 0, 1, 1], [], []>} : vector<4x32xf32>, vector<32x32xf32>, vector<4x32xf32> -> vector<4x32xf32>
      %75 = arith.addf %73, %74 : vector<4x32xf32>
      %76 = arith.negf %63 : vector<4x32xf32>
      %77 = math.exp %76 : vector<4x32xf32>
      %cst_52 = arith.constant 1.000000e+00 : f32
      %78 = vector.broadcast %cst_52 : f32 to vector<4x32xf32>
      %79 = arith.addf %78, %77 : vector<4x32xf32>
      %80 = arith.divf %78, %79 : vector<4x32xf32>
      %81 = arith.negf %67 : vector<4x32xf32>
      %82 = math.exp %81 : vector<4x32xf32>
      %cst_53 = arith.constant 1.000000e+00 : f32
      %83 = vector.broadcast %cst_53 : f32 to vector<4x32xf32>
      %84 = arith.addf %83, %82 : vector<4x32xf32>
      %85 = arith.divf %83, %84 : vector<4x32xf32>
      %86 = math.tanh %71 : vector<4x32xf32>
      %87 = arith.negf %75 : vector<4x32xf32>
      %88 = math.exp %87 : vector<4x32xf32>
      %cst_54 = arith.constant 1.000000e+00 : f32
      %89 = vector.broadcast %cst_54 : f32 to vector<4x32xf32>
      %90 = arith.addf %89, %88 : vector<4x32xf32>
      %91 = arith.divf %89, %90 : vector<4x32xf32>
      %92 = arith.mulf %85, %59 : vector<4x32xf32>
      %93 = arith.mulf %80, %86 : vector<4x32xf32>
      %94 = arith.addf %92, %93 : vector<4x32xf32>
      %95 = math.tanh %94 : vector<4x32xf32>
      %96 = arith.mulf %91, %95 : vector<4x32xf32>
      %c8_i32_55 = arith.constant 8 : i32
      %97 = arith.muli %arg0, %c8_i32_55 : i32
      %c0_i32_56 = arith.constant 0 : i32
      %98 = arith.addi %97, %c0_i32_56 : i32
      %99 = vector.broadcast %98 : i32 to vector<4x1xi32>
      %100 = arith.cmpi slt, %99, %12 : vector<4x1xi32>
      %101 = vector.shape_cast %100 : vector<4x1xi1> to vector<4x1xi1>
      %102 = vector.broadcast %101 : vector<4x1xi1> to vector<4x32xi1>
      %103 = arith.select %102, %96, %58 : vector<4x32xi1>, vector<4x32xf32>
      %104 = vector.shape_cast %100 : vector<4x1xi1> to vector<4x1xi1>
      %105 = vector.broadcast %104 : vector<4x1xi1> to vector<4x32xi1>
      %106 = arith.select %105, %94, %59 : vector<4x32xi1>, vector<4x32xf32>
      %107 = vector.extract_strided_slice %22 {offsets = [0, 1, 0], sizes = [4, 1, 32], strides = [1, 1, 1]} : vector<4x8x32xf32> to vector<4x1x32xf32>
      %108 = vector.shape_cast %107 : vector<4x1x32xf32> to vector<4x32xf32>
      %cst_57 = arith.constant dense<0.000000e+00> : vector<4x32xf32>
      %109 = tpu.matmul %103, %51, %cst_57 {dimension_numbers = #tpu.dot_dimension_numbers<[1], [0], [0], [1], [0, 0, 1, 1], [], []>} : vector<4x32xf32>, vector<32x32xf32>, vector<4x32xf32> -> vector<4x32xf32>
      %110 = arith.addf %108, %109 : vector<4x32xf32>
      %111 = vector.extract_strided_slice %31 {offsets = [0, 1, 0], sizes = [4, 1, 32], strides = [1, 1, 1]} : vector<4x8x32xf32> to vector<4x1x32xf32>
      %112 = vector.shape_cast %111 : vector<4x1x32xf32> to vector<4x32xf32>
      %cst_58 = arith.constant dense<0.000000e+00> : vector<4x32xf32>
      %113 = tpu.matmul %103, %53, %cst_58 {dimension_numbers = #tpu.dot_dimension_numbers<[1], [0], [0], [1], [0, 0, 1, 1], [], []>} : vector<4x32xf32>, vector<32x32xf32>, vector<4x32xf32> -> vector<4x32xf32>
      %114 = arith.addf %112, %113 : vector<4x32xf32>
      %115 = vector.extract_strided_slice %40 {offsets = [0, 1, 0], sizes = [4, 1, 32], strides = [1, 1, 1]} : vector<4x8x32xf32> to vector<4x1x32xf32>
      %116 = vector.shape_cast %115 : vector<4x1x32xf32> to vector<4x32xf32>
      %cst_59 = arith.constant dense<0.000000e+00> : vector<4x32xf32>
      %117 = tpu.matmul %103, %55, %cst_59 {dimension_numbers = #tpu.dot_dimension_numbers<[1], [0], [0], [1], [0, 0, 1, 1], [], []>} : vector<4x32xf32>, vector<32x32xf32>, vector<4x32xf32> -> vector<4x32xf32>
      %118 = arith.addf %116, %117 : vector<4x32xf32>
      %119 = vector.extract_strided_slice %49 {offsets = [0, 1, 0], sizes = [4, 1, 32], strides = [1, 1, 1]} : vector<4x8x32xf32> to vector<4x1x32xf32>
      %120 = vector.shape_cast %119 : vector<4x1x32xf32> to vector<4x32xf32>
      %cst_60 = arith.constant dense<0.000000e+00> : vector<4x32xf32>
      %121 = tpu.matmul %103, %57, %cst_60 {dimension_numbers = #tpu.dot_dimension_numbers<[1], [0], [0], [1], [0, 0, 1, 1], [], []>} : vector<4x32xf32>, vector<32x32xf32>, vector<4x32xf32> -> vector<4x32xf32>
      %122 = arith.addf %120, %121 : vector<4x32xf32>
      %123 = arith.negf %110 : vector<4x32xf32>
      %124 = math.exp %123 : vector<4x32xf32>
      %cst_61 = arith.constant 1.000000e+00 : f32
      %125 = vector.broadcast %cst_61 : f32 to vector<4x32xf32>
      %126 = arith.addf %125, %124 : vector<4x32xf32>
      %127 = arith.divf %125, %126 : vector<4x32xf32>
      %128 = arith.negf %114 : vector<4x32xf32>
      %129 = math.exp %128 : vector<4x32xf32>
      %cst_62 = arith.constant 1.000000e+00 : f32
      %130 = vector.broadcast %cst_62 : f32 to vector<4x32xf32>
      %131 = arith.addf %130, %129 : vector<4x32xf32>
      %132 = arith.divf %130, %131 : vector<4x32xf32>
      %133 = math.tanh %118 : vector<4x32xf32>
      %134 = arith.negf %122 : vector<4x32xf32>
      %135 = math.exp %134 : vector<4x32xf32>
      %cst_63 = arith.constant 1.000000e+00 : f32
      %136 = vector.broadcast %cst_63 : f32 to vector<4x32xf32>
      %137 = arith.addf %136, %135 : vector<4x32xf32>
      %138 = arith.divf %136, %137 : vector<4x32xf32>
      %139 = arith.mulf %132, %106 : vector<4x32xf32>
      %140 = arith.mulf %127, %133 : vector<4x32xf32>
      %141 = arith.addf %139, %140 : vector<4x32xf32>
      %142 = math.tanh %141 : vector<4x32xf32>
      %143 = arith.mulf %138, %142 : vector<4x32xf32>
      %c8_i32_64 = arith.constant 8 : i32
      %144 = arith.muli %arg0, %c8_i32_64 : i32
      %c1_i32_65 = arith.constant 1 : i32
      %145 = arith.addi %144, %c1_i32_65 : i32
      %146 = vector.broadcast %145 : i32 to vector<4x1xi32>
      %147 = arith.cmpi slt, %146, %12 : vector<4x1xi32>
      %148 = vector.shape_cast %147 : vector<4x1xi1> to vector<4x1xi1>
      %149 = vector.broadcast %148 : vector<4x1xi1> to vector<4x32xi1>
      %150 = arith.select %149, %143, %103 : vector<4x32xi1>, vector<4x32xf32>
      %151 = vector.shape_cast %147 : vector<4x1xi1> to vector<4x1xi1>
      %152 = vector.broadcast %151 : vector<4x1xi1> to vector<4x32xi1>
      %153 = arith.select %152, %141, %106 : vector<4x32xi1>, vector<4x32xf32>
      %154 = vector.extract_strided_slice %22 {offsets = [0, 2, 0], sizes = [4, 1, 32], strides = [1, 1, 1]} : vector<4x8x32xf32> to vector<4x1x32xf32>
      %155 = vector.shape_cast %154 : vector<4x1x32xf32> to vector<4x32xf32>
      %cst_66 = arith.constant dense<0.000000e+00> : vector<4x32xf32>
      %156 = tpu.matmul %150, %51, %cst_66 {dimension_numbers = #tpu.dot_dimension_numbers<[1], [0], [0], [1], [0, 0, 1, 1], [], []>} : vector<4x32xf32>, vector<32x32xf32>, vector<4x32xf32> -> vector<4x32xf32>
      %157 = arith.addf %155, %156 : vector<4x32xf32>
      %158 = vector.extract_strided_slice %31 {offsets = [0, 2, 0], sizes = [4, 1, 32], strides = [1, 1, 1]} : vector<4x8x32xf32> to vector<4x1x32xf32>
      %159 = vector.shape_cast %158 : vector<4x1x32xf32> to vector<4x32xf32>
      %cst_67 = arith.constant dense<0.000000e+00> : vector<4x32xf32>
      %160 = tpu.matmul %150, %53, %cst_67 {dimension_numbers = #tpu.dot_dimension_numbers<[1], [0], [0], [1], [0, 0, 1, 1], [], []>} : vector<4x32xf32>, vector<32x32xf32>, vector<4x32xf32> -> vector<4x32xf32>
      %161 = arith.addf %159, %160 : vector<4x32xf32>
      %162 = vector.extract_strided_slice %40 {offsets = [0, 2, 0], sizes = [4, 1, 32], strides = [1, 1, 1]} : vector<4x8x32xf32> to vector<4x1x32xf32>
      %163 = vector.shape_cast %162 : vector<4x1x32xf32> to vector<4x32xf32>
      %cst_68 = arith.constant dense<0.000000e+00> : vector<4x32xf32>
      %164 = tpu.matmul %150, %55, %cst_68 {dimension_numbers = #tpu.dot_dimension_numbers<[1], [0], [0], [1], [0, 0, 1, 1], [], []>} : vector<4x32xf32>, vector<32x32xf32>, vector<4x32xf32> -> vector<4x32xf32>
      %165 = arith.addf %163, %164 : vector<4x32xf32>
      %166 = vector.extract_strided_slice %49 {offsets = [0, 2, 0], sizes = [4, 1, 32], strides = [1, 1, 1]} : vector<4x8x32xf32> to vector<4x1x32xf32>
      %167 = vector.shape_cast %166 : vector<4x1x32xf32> to vector<4x32xf32>
      %cst_69 = arith.constant dense<0.000000e+00> : vector<4x32xf32>
      %168 = tpu.matmul %150, %57, %cst_69 {dimension_numbers = #tpu.dot_dimension_numbers<[1], [0], [0], [1], [0, 0, 1, 1], [], []>} : vector<4x32xf32>, vector<32x32xf32>, vector<4x32xf32> -> vector<4x32xf32>
      %169 = arith.addf %167, %168 : vector<4x32xf32>
      %170 = arith.negf %157 : vector<4x32xf32>
      %171 = math.exp %170 : vector<4x32xf32>
      %cst_70 = arith.constant 1.000000e+00 : f32
      %172 = vector.broadcast %cst_70 : f32 to vector<4x32xf32>
      %173 = arith.addf %172, %171 : vector<4x32xf32>
      %174 = arith.divf %172, %173 : vector<4x32xf32>
      %175 = arith.negf %161 : vector<4x32xf32>
      %176 = math.exp %175 : vector<4x32xf32>
      %cst_71 = arith.constant 1.000000e+00 : f32
      %177 = vector.broadcast %cst_71 : f32 to vector<4x32xf32>
      %178 = arith.addf %177, %176 : vector<4x32xf32>
      %179 = arith.divf %177, %178 : vector<4x32xf32>
      %180 = math.tanh %165 : vector<4x32xf32>
      %181 = arith.negf %169 : vector<4x32xf32>
      %182 = math.exp %181 : vector<4x32xf32>
      %cst_72 = arith.constant 1.000000e+00 : f32
      %183 = vector.broadcast %cst_72 : f32 to vector<4x32xf32>
      %184 = arith.addf %183, %182 : vector<4x32xf32>
      %185 = arith.divf %183, %184 : vector<4x32xf32>
      %186 = arith.mulf %179, %153 : vector<4x32xf32>
      %187 = arith.mulf %174, %180 : vector<4x32xf32>
      %188 = arith.addf %186, %187 : vector<4x32xf32>
      %189 = math.tanh %188 : vector<4x32xf32>
      %190 = arith.mulf %185, %189 : vector<4x32xf32>
      %c8_i32_73 = arith.constant 8 : i32
      %191 = arith.muli %arg0, %c8_i32_73 : i32
      %c2_i32 = arith.constant 2 : i32
      %192 = arith.addi %191, %c2_i32 : i32
      %193 = vector.broadcast %192 : i32 to vector<4x1xi32>
      %194 = arith.cmpi slt, %193, %12 : vector<4x1xi32>
      %195 = vector.shape_cast %194 : vector<4x1xi1> to vector<4x1xi1>
      %196 = vector.broadcast %195 : vector<4x1xi1> to vector<4x32xi1>
      %197 = arith.select %196, %190, %150 : vector<4x32xi1>, vector<4x32xf32>
      %198 = vector.shape_cast %194 : vector<4x1xi1> to vector<4x1xi1>
      %199 = vector.broadcast %198 : vector<4x1xi1> to vector<4x32xi1>
      %200 = arith.select %199, %188, %153 : vector<4x32xi1>, vector<4x32xf32>
      %201 = vector.extract_strided_slice %22 {offsets = [0, 3, 0], sizes = [4, 1, 32], strides = [1, 1, 1]} : vector<4x8x32xf32> to vector<4x1x32xf32>
      %202 = vector.shape_cast %201 : vector<4x1x32xf32> to vector<4x32xf32>
      %cst_74 = arith.constant dense<0.000000e+00> : vector<4x32xf32>
      %203 = tpu.matmul %197, %51, %cst_74 {dimension_numbers = #tpu.dot_dimension_numbers<[1], [0], [0], [1], [0, 0, 1, 1], [], []>} : vector<4x32xf32>, vector<32x32xf32>, vector<4x32xf32> -> vector<4x32xf32>
      %204 = arith.addf %202, %203 : vector<4x32xf32>
      %205 = vector.extract_strided_slice %31 {offsets = [0, 3, 0], sizes = [4, 1, 32], strides = [1, 1, 1]} : vector<4x8x32xf32> to vector<4x1x32xf32>
      %206 = vector.shape_cast %205 : vector<4x1x32xf32> to vector<4x32xf32>
      %cst_75 = arith.constant dense<0.000000e+00> : vector<4x32xf32>
      %207 = tpu.matmul %197, %53, %cst_75 {dimension_numbers = #tpu.dot_dimension_numbers<[1], [0], [0], [1], [0, 0, 1, 1], [], []>} : vector<4x32xf32>, vector<32x32xf32>, vector<4x32xf32> -> vector<4x32xf32>
      %208 = arith.addf %206, %207 : vector<4x32xf32>
      %209 = vector.extract_strided_slice %40 {offsets = [0, 3, 0], sizes = [4, 1, 32], strides = [1, 1, 1]} : vector<4x8x32xf32> to vector<4x1x32xf32>
      %210 = vector.shape_cast %209 : vector<4x1x32xf32> to vector<4x32xf32>
      %cst_76 = arith.constant dense<0.000000e+00> : vector<4x32xf32>
      %211 = tpu.matmul %197, %55, %cst_76 {dimension_numbers = #tpu.dot_dimension_numbers<[1], [0], [0], [1], [0, 0, 1, 1], [], []>} : vector<4x32xf32>, vector<32x32xf32>, vector<4x32xf32> -> vector<4x32xf32>
      %212 = arith.addf %210, %211 : vector<4x32xf32>
      %213 = vector.extract_strided_slice %49 {offsets = [0, 3, 0], sizes = [4, 1, 32], strides = [1, 1, 1]} : vector<4x8x32xf32> to vector<4x1x32xf32>
      %214 = vector.shape_cast %213 : vector<4x1x32xf32> to vector<4x32xf32>
      %cst_77 = arith.constant dense<0.000000e+00> : vector<4x32xf32>
      %215 = tpu.matmul %197, %57, %cst_77 {dimension_numbers = #tpu.dot_dimension_numbers<[1], [0], [0], [1], [0, 0, 1, 1], [], []>} : vector<4x32xf32>, vector<32x32xf32>, vector<4x32xf32> -> vector<4x32xf32>
      %216 = arith.addf %214, %215 : vector<4x32xf32>
      %217 = arith.negf %204 : vector<4x32xf32>
      %218 = math.exp %217 : vector<4x32xf32>
      %cst_78 = arith.constant 1.000000e+00 : f32
      %219 = vector.broadcast %cst_78 : f32 to vector<4x32xf32>
      %220 = arith.addf %219, %218 : vector<4x32xf32>
      %221 = arith.divf %219, %220 : vector<4x32xf32>
      %222 = arith.negf %208 : vector<4x32xf32>
      %223 = math.exp %222 : vector<4x32xf32>
      %cst_79 = arith.constant 1.000000e+00 : f32
      %224 = vector.broadcast %cst_79 : f32 to vector<4x32xf32>
      %225 = arith.addf %224, %223 : vector<4x32xf32>
      %226 = arith.divf %224, %225 : vector<4x32xf32>
      %227 = math.tanh %212 : vector<4x32xf32>
      %228 = arith.negf %216 : vector<4x32xf32>
      %229 = math.exp %228 : vector<4x32xf32>
      %cst_80 = arith.constant 1.000000e+00 : f32
      %230 = vector.broadcast %cst_80 : f32 to vector<4x32xf32>
      %231 = arith.addf %230, %229 : vector<4x32xf32>
      %232 = arith.divf %230, %231 : vector<4x32xf32>
      %233 = arith.mulf %226, %200 : vector<4x32xf32>
      %234 = arith.mulf %221, %227 : vector<4x32xf32>
      %235 = arith.addf %233, %234 : vector<4x32xf32>
      %236 = math.tanh %235 : vector<4x32xf32>
      %237 = arith.mulf %232, %236 : vector<4x32xf32>
      %c8_i32_81 = arith.constant 8 : i32
      %238 = arith.muli %arg0, %c8_i32_81 : i32
      %c3_i32 = arith.constant 3 : i32
      %239 = arith.addi %238, %c3_i32 : i32
      %240 = vector.broadcast %239 : i32 to vector<4x1xi32>
      %241 = arith.cmpi slt, %240, %12 : vector<4x1xi32>
      %242 = vector.shape_cast %241 : vector<4x1xi1> to vector<4x1xi1>
      %243 = vector.broadcast %242 : vector<4x1xi1> to vector<4x32xi1>
      %244 = arith.select %243, %237, %197 : vector<4x32xi1>, vector<4x32xf32>
      %245 = vector.shape_cast %241 : vector<4x1xi1> to vector<4x1xi1>
      %246 = vector.broadcast %245 : vector<4x1xi1> to vector<4x32xi1>
      %247 = arith.select %246, %235, %200 : vector<4x32xi1>, vector<4x32xf32>
      %248 = vector.extract_strided_slice %22 {offsets = [0, 4, 0], sizes = [4, 1, 32], strides = [1, 1, 1]} : vector<4x8x32xf32> to vector<4x1x32xf32>
      %249 = vector.shape_cast %248 : vector<4x1x32xf32> to vector<4x32xf32>
      %cst_82 = arith.constant dense<0.000000e+00> : vector<4x32xf32>
      %250 = tpu.matmul %244, %51, %cst_82 {dimension_numbers = #tpu.dot_dimension_numbers<[1], [0], [0], [1], [0, 0, 1, 1], [], []>} : vector<4x32xf32>, vector<32x32xf32>, vector<4x32xf32> -> vector<4x32xf32>
      %251 = arith.addf %249, %250 : vector<4x32xf32>
      %252 = vector.extract_strided_slice %31 {offsets = [0, 4, 0], sizes = [4, 1, 32], strides = [1, 1, 1]} : vector<4x8x32xf32> to vector<4x1x32xf32>
      %253 = vector.shape_cast %252 : vector<4x1x32xf32> to vector<4x32xf32>
      %cst_83 = arith.constant dense<0.000000e+00> : vector<4x32xf32>
      %254 = tpu.matmul %244, %53, %cst_83 {dimension_numbers = #tpu.dot_dimension_numbers<[1], [0], [0], [1], [0, 0, 1, 1], [], []>} : vector<4x32xf32>, vector<32x32xf32>, vector<4x32xf32> -> vector<4x32xf32>
      %255 = arith.addf %253, %254 : vector<4x32xf32>
      %256 = vector.extract_strided_slice %40 {offsets = [0, 4, 0], sizes = [4, 1, 32], strides = [1, 1, 1]} : vector<4x8x32xf32> to vector<4x1x32xf32>
      %257 = vector.shape_cast %256 : vector<4x1x32xf32> to vector<4x32xf32>
      %cst_84 = arith.constant dense<0.000000e+00> : vector<4x32xf32>
      %258 = tpu.matmul %244, %55, %cst_84 {dimension_numbers = #tpu.dot_dimension_numbers<[1], [0], [0], [1], [0, 0, 1, 1], [], []>} : vector<4x32xf32>, vector<32x32xf32>, vector<4x32xf32> -> vector<4x32xf32>
      %259 = arith.addf %257, %258 : vector<4x32xf32>
      %260 = vector.extract_strided_slice %49 {offsets = [0, 4, 0], sizes = [4, 1, 32], strides = [1, 1, 1]} : vector<4x8x32xf32> to vector<4x1x32xf32>
      %261 = vector.shape_cast %260 : vector<4x1x32xf32> to vector<4x32xf32>
      %cst_85 = arith.constant dense<0.000000e+00> : vector<4x32xf32>
      %262 = tpu.matmul %244, %57, %cst_85 {dimension_numbers = #tpu.dot_dimension_numbers<[1], [0], [0], [1], [0, 0, 1, 1], [], []>} : vector<4x32xf32>, vector<32x32xf32>, vector<4x32xf32> -> vector<4x32xf32>
      %263 = arith.addf %261, %262 : vector<4x32xf32>
      %264 = arith.negf %251 : vector<4x32xf32>
      %265 = math.exp %264 : vector<4x32xf32>
      %cst_86 = arith.constant 1.000000e+00 : f32
      %266 = vector.broadcast %cst_86 : f32 to vector<4x32xf32>
      %267 = arith.addf %266, %265 : vector<4x32xf32>
      %268 = arith.divf %266, %267 : vector<4x32xf32>
      %269 = arith.negf %255 : vector<4x32xf32>
      %270 = math.exp %269 : vector<4x32xf32>
      %cst_87 = arith.constant 1.000000e+00 : f32
      %271 = vector.broadcast %cst_87 : f32 to vector<4x32xf32>
      %272 = arith.addf %271, %270 : vector<4x32xf32>
      %273 = arith.divf %271, %272 : vector<4x32xf32>
      %274 = math.tanh %259 : vector<4x32xf32>
      %275 = arith.negf %263 : vector<4x32xf32>
      %276 = math.exp %275 : vector<4x32xf32>
      %cst_88 = arith.constant 1.000000e+00 : f32
      %277 = vector.broadcast %cst_88 : f32 to vector<4x32xf32>
      %278 = arith.addf %277, %276 : vector<4x32xf32>
      %279 = arith.divf %277, %278 : vector<4x32xf32>
      %280 = arith.mulf %273, %247 : vector<4x32xf32>
      %281 = arith.mulf %268, %274 : vector<4x32xf32>
      %282 = arith.addf %280, %281 : vector<4x32xf32>
      %283 = math.tanh %282 : vector<4x32xf32>
      %284 = arith.mulf %279, %283 : vector<4x32xf32>
      %c8_i32_89 = arith.constant 8 : i32
      %285 = arith.muli %arg0, %c8_i32_89 : i32
      %c4_i32 = arith.constant 4 : i32
      %286 = arith.addi %285, %c4_i32 : i32
      %287 = vector.broadcast %286 : i32 to vector<4x1xi32>
      %288 = arith.cmpi slt, %287, %12 : vector<4x1xi32>
      %289 = vector.shape_cast %288 : vector<4x1xi1> to vector<4x1xi1>
      %290 = vector.broadcast %289 : vector<4x1xi1> to vector<4x32xi1>
      %291 = arith.select %290, %284, %244 : vector<4x32xi1>, vector<4x32xf32>
      %292 = vector.shape_cast %288 : vector<4x1xi1> to vector<4x1xi1>
      %293 = vector.broadcast %292 : vector<4x1xi1> to vector<4x32xi1>
      %294 = arith.select %293, %282, %247 : vector<4x32xi1>, vector<4x32xf32>
      %295 = vector.extract_strided_slice %22 {offsets = [0, 5, 0], sizes = [4, 1, 32], strides = [1, 1, 1]} : vector<4x8x32xf32> to vector<4x1x32xf32>
      %296 = vector.shape_cast %295 : vector<4x1x32xf32> to vector<4x32xf32>
      %cst_90 = arith.constant dense<0.000000e+00> : vector<4x32xf32>
      %297 = tpu.matmul %291, %51, %cst_90 {dimension_numbers = #tpu.dot_dimension_numbers<[1], [0], [0], [1], [0, 0, 1, 1], [], []>} : vector<4x32xf32>, vector<32x32xf32>, vector<4x32xf32> -> vector<4x32xf32>
      %298 = arith.addf %296, %297 : vector<4x32xf32>
      %299 = vector.extract_strided_slice %31 {offsets = [0, 5, 0], sizes = [4, 1, 32], strides = [1, 1, 1]} : vector<4x8x32xf32> to vector<4x1x32xf32>
      %300 = vector.shape_cast %299 : vector<4x1x32xf32> to vector<4x32xf32>
      %cst_91 = arith.constant dense<0.000000e+00> : vector<4x32xf32>
      %301 = tpu.matmul %291, %53, %cst_91 {dimension_numbers = #tpu.dot_dimension_numbers<[1], [0], [0], [1], [0, 0, 1, 1], [], []>} : vector<4x32xf32>, vector<32x32xf32>, vector<4x32xf32> -> vector<4x32xf32>
      %302 = arith.addf %300, %301 : vector<4x32xf32>
      %303 = vector.extract_strided_slice %40 {offsets = [0, 5, 0], sizes = [4, 1, 32], strides = [1, 1, 1]} : vector<4x8x32xf32> to vector<4x1x32xf32>
      %304 = vector.shape_cast %303 : vector<4x1x32xf32> to vector<4x32xf32>
      %cst_92 = arith.constant dense<0.000000e+00> : vector<4x32xf32>
      %305 = tpu.matmul %291, %55, %cst_92 {dimension_numbers = #tpu.dot_dimension_numbers<[1], [0], [0], [1], [0, 0, 1, 1], [], []>} : vector<4x32xf32>, vector<32x32xf32>, vector<4x32xf32> -> vector<4x32xf32>
      %306 = arith.addf %304, %305 : vector<4x32xf32>
      %307 = vector.extract_strided_slice %49 {offsets = [0, 5, 0], sizes = [4, 1, 32], strides = [1, 1, 1]} : vector<4x8x32xf32> to vector<4x1x32xf32>
      %308 = vector.shape_cast %307 : vector<4x1x32xf32> to vector<4x32xf32>
      %cst_93 = arith.constant dense<0.000000e+00> : vector<4x32xf32>
      %309 = tpu.matmul %291, %57, %cst_93 {dimension_numbers = #tpu.dot_dimension_numbers<[1], [0], [0], [1], [0, 0, 1, 1], [], []>} : vector<4x32xf32>, vector<32x32xf32>, vector<4x32xf32> -> vector<4x32xf32>
      %310 = arith.addf %308, %309 : vector<4x32xf32>
      %311 = arith.negf %298 : vector<4x32xf32>
      %312 = math.exp %311 : vector<4x32xf32>
      %cst_94 = arith.constant 1.000000e+00 : f32
      %313 = vector.broadcast %cst_94 : f32 to vector<4x32xf32>
      %314 = arith.addf %313, %312 : vector<4x32xf32>
      %315 = arith.divf %313, %314 : vector<4x32xf32>
      %316 = arith.negf %302 : vector<4x32xf32>
      %317 = math.exp %316 : vector<4x32xf32>
      %cst_95 = arith.constant 1.000000e+00 : f32
      %318 = vector.broadcast %cst_95 : f32 to vector<4x32xf32>
      %319 = arith.addf %318, %317 : vector<4x32xf32>
      %320 = arith.divf %318, %319 : vector<4x32xf32>
      %321 = math.tanh %306 : vector<4x32xf32>
      %322 = arith.negf %310 : vector<4x32xf32>
      %323 = math.exp %322 : vector<4x32xf32>
      %cst_96 = arith.constant 1.000000e+00 : f32
      %324 = vector.broadcast %cst_96 : f32 to vector<4x32xf32>
      %325 = arith.addf %324, %323 : vector<4x32xf32>
      %326 = arith.divf %324, %325 : vector<4x32xf32>
      %327 = arith.mulf %320, %294 : vector<4x32xf32>
      %328 = arith.mulf %315, %321 : vector<4x32xf32>
      %329 = arith.addf %327, %328 : vector<4x32xf32>
      %330 = math.tanh %329 : vector<4x32xf32>
      %331 = arith.mulf %326, %330 : vector<4x32xf32>
      %c8_i32_97 = arith.constant 8 : i32
      %332 = arith.muli %arg0, %c8_i32_97 : i32
      %c5_i32 = arith.constant 5 : i32
      %333 = arith.addi %332, %c5_i32 : i32
      %334 = vector.broadcast %333 : i32 to vector<4x1xi32>
      %335 = arith.cmpi slt, %334, %12 : vector<4x1xi32>
      %336 = vector.shape_cast %335 : vector<4x1xi1> to vector<4x1xi1>
      %337 = vector.broadcast %336 : vector<4x1xi1> to vector<4x32xi1>
      %338 = arith.select %337, %331, %291 : vector<4x32xi1>, vector<4x32xf32>
      %339 = vector.shape_cast %335 : vector<4x1xi1> to vector<4x1xi1>
      %340 = vector.broadcast %339 : vector<4x1xi1> to vector<4x32xi1>
      %341 = arith.select %340, %329, %294 : vector<4x32xi1>, vector<4x32xf32>
      %342 = vector.extract_strided_slice %22 {offsets = [0, 6, 0], sizes = [4, 1, 32], strides = [1, 1, 1]} : vector<4x8x32xf32> to vector<4x1x32xf32>
      %343 = vector.shape_cast %342 : vector<4x1x32xf32> to vector<4x32xf32>
      %cst_98 = arith.constant dense<0.000000e+00> : vector<4x32xf32>
      %344 = tpu.matmul %338, %51, %cst_98 {dimension_numbers = #tpu.dot_dimension_numbers<[1], [0], [0], [1], [0, 0, 1, 1], [], []>} : vector<4x32xf32>, vector<32x32xf32>, vector<4x32xf32> -> vector<4x32xf32>
      %345 = arith.addf %343, %344 : vector<4x32xf32>
      %346 = vector.extract_strided_slice %31 {offsets = [0, 6, 0], sizes = [4, 1, 32], strides = [1, 1, 1]} : vector<4x8x32xf32> to vector<4x1x32xf32>
      %347 = vector.shape_cast %346 : vector<4x1x32xf32> to vector<4x32xf32>
      %cst_99 = arith.constant dense<0.000000e+00> : vector<4x32xf32>
      %348 = tpu.matmul %338, %53, %cst_99 {dimension_numbers = #tpu.dot_dimension_numbers<[1], [0], [0], [1], [0, 0, 1, 1], [], []>} : vector<4x32xf32>, vector<32x32xf32>, vector<4x32xf32> -> vector<4x32xf32>
      %349 = arith.addf %347, %348 : vector<4x32xf32>
      %350 = vector.extract_strided_slice %40 {offsets = [0, 6, 0], sizes = [4, 1, 32], strides = [1, 1, 1]} : vector<4x8x32xf32> to vector<4x1x32xf32>
      %351 = vector.shape_cast %350 : vector<4x1x32xf32> to vector<4x32xf32>
      %cst_100 = arith.constant dense<0.000000e+00> : vector<4x32xf32>
      %352 = tpu.matmul %338, %55, %cst_100 {dimension_numbers = #tpu.dot_dimension_numbers<[1], [0], [0], [1], [0, 0, 1, 1], [], []>} : vector<4x32xf32>, vector<32x32xf32>, vector<4x32xf32> -> vector<4x32xf32>
      %353 = arith.addf %351, %352 : vector<4x32xf32>
      %354 = vector.extract_strided_slice %49 {offsets = [0, 6, 0], sizes = [4, 1, 32], strides = [1, 1, 1]} : vector<4x8x32xf32> to vector<4x1x32xf32>
      %355 = vector.shape_cast %354 : vector<4x1x32xf32> to vector<4x32xf32>
      %cst_101 = arith.constant dense<0.000000e+00> : vector<4x32xf32>
      %356 = tpu.matmul %338, %57, %cst_101 {dimension_numbers = #tpu.dot_dimension_numbers<[1], [0], [0], [1], [0, 0, 1, 1], [], []>} : vector<4x32xf32>, vector<32x32xf32>, vector<4x32xf32> -> vector<4x32xf32>
      %357 = arith.addf %355, %356 : vector<4x32xf32>
      %358 = arith.negf %345 : vector<4x32xf32>
      %359 = math.exp %358 : vector<4x32xf32>
      %cst_102 = arith.constant 1.000000e+00 : f32
      %360 = vector.broadcast %cst_102 : f32 to vector<4x32xf32>
      %361 = arith.addf %360, %359 : vector<4x32xf32>
      %362 = arith.divf %360, %361 : vector<4x32xf32>
      %363 = arith.negf %349 : vector<4x32xf32>
      %364 = math.exp %363 : vector<4x32xf32>
      %cst_103 = arith.constant 1.000000e+00 : f32
      %365 = vector.broadcast %cst_103 : f32 to vector<4x32xf32>
      %366 = arith.addf %365, %364 : vector<4x32xf32>
      %367 = arith.divf %365, %366 : vector<4x32xf32>
      %368 = math.tanh %353 : vector<4x32xf32>
      %369 = arith.negf %357 : vector<4x32xf32>
      %370 = math.exp %369 : vector<4x32xf32>
      %cst_104 = arith.constant 1.000000e+00 : f32
      %371 = vector.broadcast %cst_104 : f32 to vector<4x32xf32>
      %372 = arith.addf %371, %370 : vector<4x32xf32>
      %373 = arith.divf %371, %372 : vector<4x32xf32>
      %374 = arith.mulf %367, %341 : vector<4x32xf32>
      %375 = arith.mulf %362, %368 : vector<4x32xf32>
      %376 = arith.addf %374, %375 : vector<4x32xf32>
      %377 = math.tanh %376 : vector<4x32xf32>
      %378 = arith.mulf %373, %377 : vector<4x32xf32>
      %c8_i32_105 = arith.constant 8 : i32
      %379 = arith.muli %arg0, %c8_i32_105 : i32
      %c6_i32 = arith.constant 6 : i32
      %380 = arith.addi %379, %c6_i32 : i32
      %381 = vector.broadcast %380 : i32 to vector<4x1xi32>
      %382 = arith.cmpi slt, %381, %12 : vector<4x1xi32>
      %383 = vector.shape_cast %382 : vector<4x1xi1> to vector<4x1xi1>
      %384 = vector.broadcast %383 : vector<4x1xi1> to vector<4x32xi1>
      %385 = arith.select %384, %378, %338 : vector<4x32xi1>, vector<4x32xf32>
      %386 = vector.shape_cast %382 : vector<4x1xi1> to vector<4x1xi1>
      %387 = vector.broadcast %386 : vector<4x1xi1> to vector<4x32xi1>
      %388 = arith.select %387, %376, %341 : vector<4x32xi1>, vector<4x32xf32>
      %389 = vector.extract_strided_slice %22 {offsets = [0, 7, 0], sizes = [4, 1, 32], strides = [1, 1, 1]} : vector<4x8x32xf32> to vector<4x1x32xf32>
      %390 = vector.shape_cast %389 : vector<4x1x32xf32> to vector<4x32xf32>
      %cst_106 = arith.constant dense<0.000000e+00> : vector<4x32xf32>
      %391 = tpu.matmul %385, %51, %cst_106 {dimension_numbers = #tpu.dot_dimension_numbers<[1], [0], [0], [1], [0, 0, 1, 1], [], []>} : vector<4x32xf32>, vector<32x32xf32>, vector<4x32xf32> -> vector<4x32xf32>
      %392 = arith.addf %390, %391 : vector<4x32xf32>
      %393 = vector.extract_strided_slice %31 {offsets = [0, 7, 0], sizes = [4, 1, 32], strides = [1, 1, 1]} : vector<4x8x32xf32> to vector<4x1x32xf32>
      %394 = vector.shape_cast %393 : vector<4x1x32xf32> to vector<4x32xf32>
      %cst_107 = arith.constant dense<0.000000e+00> : vector<4x32xf32>
      %395 = tpu.matmul %385, %53, %cst_107 {dimension_numbers = #tpu.dot_dimension_numbers<[1], [0], [0], [1], [0, 0, 1, 1], [], []>} : vector<4x32xf32>, vector<32x32xf32>, vector<4x32xf32> -> vector<4x32xf32>
      %396 = arith.addf %394, %395 : vector<4x32xf32>
      %397 = vector.extract_strided_slice %40 {offsets = [0, 7, 0], sizes = [4, 1, 32], strides = [1, 1, 1]} : vector<4x8x32xf32> to vector<4x1x32xf32>
      %398 = vector.shape_cast %397 : vector<4x1x32xf32> to vector<4x32xf32>
      %cst_108 = arith.constant dense<0.000000e+00> : vector<4x32xf32>
      %399 = tpu.matmul %385, %55, %cst_108 {dimension_numbers = #tpu.dot_dimension_numbers<[1], [0], [0], [1], [0, 0, 1, 1], [], []>} : vector<4x32xf32>, vector<32x32xf32>, vector<4x32xf32> -> vector<4x32xf32>
      %400 = arith.addf %398, %399 : vector<4x32xf32>
      %401 = vector.extract_strided_slice %49 {offsets = [0, 7, 0], sizes = [4, 1, 32], strides = [1, 1, 1]} : vector<4x8x32xf32> to vector<4x1x32xf32>
      %402 = vector.shape_cast %401 : vector<4x1x32xf32> to vector<4x32xf32>
      %cst_109 = arith.constant dense<0.000000e+00> : vector<4x32xf32>
      %403 = tpu.matmul %385, %57, %cst_109 {dimension_numbers = #tpu.dot_dimension_numbers<[1], [0], [0], [1], [0, 0, 1, 1], [], []>} : vector<4x32xf32>, vector<32x32xf32>, vector<4x32xf32> -> vector<4x32xf32>
      %404 = arith.addf %402, %403 : vector<4x32xf32>
      %405 = arith.negf %392 : vector<4x32xf32>
      %406 = math.exp %405 : vector<4x32xf32>
      %cst_110 = arith.constant 1.000000e+00 : f32
      %407 = vector.broadcast %cst_110 : f32 to vector<4x32xf32>
      %408 = arith.addf %407, %406 : vector<4x32xf32>
      %409 = arith.divf %407, %408 : vector<4x32xf32>
      %410 = arith.negf %396 : vector<4x32xf32>
      %411 = math.exp %410 : vector<4x32xf32>
      %cst_111 = arith.constant 1.000000e+00 : f32
      %412 = vector.broadcast %cst_111 : f32 to vector<4x32xf32>
      %413 = arith.addf %412, %411 : vector<4x32xf32>
      %414 = arith.divf %412, %413 : vector<4x32xf32>
      %415 = math.tanh %400 : vector<4x32xf32>
      %416 = arith.negf %404 : vector<4x32xf32>
      %417 = math.exp %416 : vector<4x32xf32>
      %cst_112 = arith.constant 1.000000e+00 : f32
      %418 = vector.broadcast %cst_112 : f32 to vector<4x32xf32>
      %419 = arith.addf %418, %417 : vector<4x32xf32>
      %420 = arith.divf %418, %419 : vector<4x32xf32>
      %421 = arith.mulf %414, %388 : vector<4x32xf32>
      %422 = arith.mulf %409, %415 : vector<4x32xf32>
      %423 = arith.addf %421, %422 : vector<4x32xf32>
      %424 = math.tanh %423 : vector<4x32xf32>
      %425 = arith.mulf %420, %424 : vector<4x32xf32>
      %c8_i32_113 = arith.constant 8 : i32
      %426 = arith.muli %arg0, %c8_i32_113 : i32
      %c7_i32 = arith.constant 7 : i32
      %427 = arith.addi %426, %c7_i32 : i32
      %428 = vector.broadcast %427 : i32 to vector<4x1xi32>
      %429 = arith.cmpi slt, %428, %12 : vector<4x1xi32>
      %430 = vector.shape_cast %429 : vector<4x1xi1> to vector<4x1xi1>
      %431 = vector.broadcast %430 : vector<4x1xi1> to vector<4x32xi1>
      %432 = arith.select %431, %425, %385 : vector<4x32xi1>, vector<4x32xf32>
      %433 = vector.shape_cast %429 : vector<4x1xi1> to vector<4x1xi1>
      %434 = vector.broadcast %433 : vector<4x1xi1> to vector<4x32xi1>
      %435 = arith.select %434, %423, %388 : vector<4x32xi1>, vector<4x32xf32>
      %c0_114 = arith.constant 0 : index
      %c0_115 = arith.constant 0 : index
      %436 = vector.load %arg10[%c0_114, %c0_115] : memref<4x32xf32, #tpu.memory_space<vmem>>, vector<4x32xf32>
      tpu.vector_store %arg10[%c0_114, %c0_115], %432 {strides = array<i32>} : memref<4x32xf32, #tpu.memory_space<vmem>>, vector<4x32xf32>,
      %c0_116 = arith.constant 0 : index
      %c0_117 = arith.constant 0 : index
      %437 = vector.load %arg11[%c0_116, %c0_117] : memref<4x32xf32, #tpu.memory_space<vmem>>, vector<4x32xf32>
      tpu.vector_store %arg11[%c0_116, %c0_117], %435 {strides = array<i32>} : memref<4x32xf32, #tpu.memory_space<vmem>>, vector<4x32xf32>,
    } else {
    }
    %c1_i32 = arith.constant 1 : i32
    %8 = arith.cmpi eq, %arg0, %c1_i32 : i32
    %9 = arith.extui %8 : i1 to i32
    %c0_i32_2 = arith.constant 0 : i32
    %10 = arith.cmpi ne, %9, %c0_i32_2 : i32
    scf.if %10 {
      %c0_3 = arith.constant 0 : index
      %c0_4 = arith.constant 0 : index
      %11 = vector.load %arg10[%c0_3, %c0_4] : memref<4x32xf32, #tpu.memory_space<vmem>>, vector<4x32xf32>
      %c0_5 = arith.constant 0 : index
      %c0_6 = arith.constant 0 : index
      %12 = vector.load %arg7[%c0_5, %c0_6] : memref<32x8xf32, #tpu.memory_space<vmem>>, vector<32x8xf32>
      %cst = arith.constant dense<0.000000e+00> : vector<4x8xf32>
      %13 = tpu.matmul %11, %12, %cst {dimension_numbers = #tpu.dot_dimension_numbers<[1], [0], [0], [1], [0, 0, 1, 1], [], []>} : vector<4x32xf32>, vector<32x8xf32>, vector<4x8xf32> -> vector<4x8xf32>
      %c0_7 = arith.constant 0 : index
      %c0_8 = arith.constant 0 : index
      %14 = vector.load %arg8[%c0_7, %c0_8] : memref<1x8xf32, #tpu.memory_space<vmem>>, vector<1x8xf32>
      %15 = vector.broadcast %14 : vector<1x8xf32> to vector<4x8xf32>
      %16 = arith.addf %13, %15 : vector<4x8xf32>
      %cst_9 = arith.constant dense<0xFF800000> : vector<4xf32>
      %17 = vector.multi_reduction <maximumf>, %16, %cst_9 [1] : vector<4x8xf32> to vector<4xf32>
      %18 = vector.shape_cast %17 : vector<4xf32> to vector<4x1xf32>
      %19 = vector.broadcast %18 : vector<4x1xf32> to vector<4x8xf32>
      %20 = arith.subf %16, %19 : vector<4x8xf32>
      %21 = math.exp %20 : vector<4x8xf32>
      %cst_10 = arith.constant dense<0.000000e+00> : vector<4xf32>
      %22 = vector.multi_reduction <add>, %21, %cst_10 [1] : vector<4x8xf32> to vector<4xf32>
      %23 = vector.shape_cast %22 : vector<4xf32> to vector<4x1xf32>
      %24 = tpu.reciprocal %23 : vector<4x1xf32> -> vector<4x1xf32>
      %25 = vector.broadcast %24 : vector<4x1xf32> to vector<4x8xf32>
      %26 = arith.mulf %21, %25 : vector<4x8xf32>
      %c0_11 = arith.constant 0 : index
      %c0_12 = arith.constant 0 : index
      %27 = vector.load %arg9[%c0_11, %c0_12] : memref<4x8xf32, #tpu.memory_space<vmem>>, vector<4x8xf32>
      tpu.vector_store %arg9[%c0_11, %c0_12], %26 {strides = array<i32>} : memref<4x8xf32, #tpu.memory_space<vmem>>, vector<4x8xf32>,
    } else {
    }
    return
  }
  func.func @transform_0(%arg0: i32, %arg1: memref<1xi32, #tpu.memory_space<smem>>) -> (i32, i32) {
    %c0_i32 = arith.constant 0 : i32
    %c0_i32_0 = arith.constant 0 : i32
    %c0_i32_1 = arith.constant 0 : i32
    return %c0_i32, %c0_i32_0 : i32, i32
  }
  func.func @transform_1(%arg0: i32, %arg1: memref<1xi32, #tpu.memory_space<smem>>) -> (i32, i32, i32) {
    %c0_i32 = arith.constant 0 : i32
    %c0_i32_0 = arith.constant 0 : i32
    %c0_i32_1 = arith.constant 0 : i32
    return %c0_i32, %arg0, %c0_i32_0 : i32, i32, i32
  }
  func.func @transform_2(%arg0: i32, %arg1: memref<1xi32, #tpu.memory_space<smem>>) -> (i32, i32, i32) {
    %c0_i32 = arith.constant 0 : i32
    %c0_i32_0 = arith.constant 0 : i32
    %c0_i32_1 = arith.constant 0 : i32
    %c0_i32_2 = arith.constant 0 : i32
    return %c0_i32, %c0_i32_0, %c0_i32_1 : i32, i32, i32
  }
  func.func @transform_3(%arg0: i32, %arg1: memref<1xi32, #tpu.memory_space<smem>>) -> (i32, i32, i32) {
    %c0_i32 = arith.constant 0 : i32
    %c0_i32_0 = arith.constant 0 : i32
    %c0_i32_1 = arith.constant 0 : i32
    %c0_i32_2 = arith.constant 0 : i32
    return %c0_i32, %c0_i32_0, %c0_i32_1 : i32, i32, i32
  }
  func.func @transform_4(%arg0: i32, %arg1: memref<1xi32, #tpu.memory_space<smem>>) -> (i32, i32, i32) {
    %c0_i32 = arith.constant 0 : i32
    %c0_i32_0 = arith.constant 0 : i32
    %c0_i32_1 = arith.constant 0 : i32
    %c0_i32_2 = arith.constant 0 : i32
    return %c0_i32, %c0_i32_0, %c0_i32_1 : i32, i32, i32
  }
  func.func @transform_5(%arg0: i32, %arg1: memref<1xi32, #tpu.memory_space<smem>>) -> (i32, i32) {
    %c0_i32 = arith.constant 0 : i32
    %c0_i32_0 = arith.constant 0 : i32
    %c0_i32_1 = arith.constant 0 : i32
    return %c0_i32, %c0_i32_0 : i32, i32
  }
  func.func @transform_6(%arg0: i32, %arg1: memref<1xi32, #tpu.memory_space<smem>>) -> (i32, i32) {
    %c0_i32 = arith.constant 0 : i32
    %c0_i32_0 = arith.constant 0 : i32
    %c0_i32_1 = arith.constant 0 : i32
    return %c0_i32, %c0_i32_0 : i32, i32
  }
  func.func @transform_7(%arg0: i32, %arg1: memref<1xi32, #tpu.memory_space<smem>>) -> (i32, i32) {
    %c0_i32 = arith.constant 0 : i32
    %c0_i32_0 = arith.constant 0 : i32
    %c0_i32_1 = arith.constant 0 : i32
    return %c0_i32, %c0_i32_0 : i32, i32
  }
}

</mosaic_0001>

<llo_original>
// kernel: tpu_custom_call.1
$region0: #{tpu_custom_call.1}
  #allocation0 [shape = 'u32[]', space=smem, size = 0x4, offset = 0x4, fixed_abs, tag = 'smem constant byte address 0x4 - core index']
  #allocation1 [shape = 'u32[144,128]{1,0:T(1,128)}', space=vmem, size = 0x12000, scoped, tag = 'internal scratch']
  #allocation2 [shape = 'f32[4,32]{1,0:T(4,128)}', space=vmem, size = 0x800, scoped, tag = 'scratch operand']
  #allocation3 [shape = 'f32[4,32]{1,0:T(4,128)}', space=vmem, size = 0x800, scoped, tag = 'scratch operand']
  #allocation4 [shape = 's32[1]{0}', space=sflag, size = 0x4, scoped, tag = 'scoped memory for tpu_custom_call.1']
  #allocation5 [shape = 's32[1]{0:T(128)S(6)}', space=smem, size = 0x200, scoped, tag = 'prefetched SMEM operand 0']
  %s0 = inlined_call_operand.<no memory space> [shape: s32[1], index: 0, kind: input, shape index: {}]
  %s1 = inlined_call_operand.vmem [shape: s32[4,1], index: 1, kind: input, shape index: {}]
  %s2 = inlined_call_operand.hbm [shape: f32[4,16,16], index: 2, kind: input, shape index: {}]
  %s3 = inlined_call_operand.hbm [shape: f32[4,16,32], index: 3, kind: input, shape index: {}]
  %s4 = inlined_call_operand.hbm [shape: f32[4,32,32], index: 4, kind: input, shape index: {}]
  %s5 = inlined_call_operand.vmem [shape: f32[4,1,32], index: 5, kind: input, shape index: {}]
  %s6 = inlined_call_operand.vmem [shape: f32[32,8], index: 6, kind: input, shape index: {}]
  %s7 = inlined_call_operand.vmem [shape: f32[1,8], index: 7, kind: input, shape index: {}]
  %s8 = inlined_call_operand.hbm [shape: f32[4,8], index: 8, kind: output, shape index: {}]
  %s9 = sld [smem:[#allocation0]]
  $region85: #{tpu_custom_call.1} parent=0
    _
  %s11 = ssub.s32 1, %s9
  %s12 = scalar_select 0, %s11, %s9
  %13 = sst [smem:[#allocation5]] %s0
  $region1: #{tpu_custom_call.1} parent=0
    #allocation6 [shape = 'u8[32768]{0}', space=vmem, size = 0x8000, scoped, tag = 'input window, operand 2']
    #allocation7 [shape = 's32[2]{0}', space=sflag, size = 0x8, scoped, tag = 'scoped memory for tpu_custom_call.1']
    #allocation8 [shape = 's32[2]{0}', space=sflag, size = 0x8, scoped, tag = 'scoped memory for tpu_custom_call.1']
    #allocation9 [shape = 'u8[32768]{0}', space=vmem, size = 0x8000, scoped, tag = 'input window, operand 3, single buffered']
    #allocation10 [shape = 's32[1]{0}', space=sflag, size = 0x4, scoped, tag = 'scoped memory for tpu_custom_call.1']
    #allocation11 [shape = 'u8[65536]{0}', space=vmem, size = 0x10000, scoped, tag = 'input window, operand 4, single buffered']
    #allocation12 [shape = 'u8[2048]{0}', space=vmem, size = 0x800, scoped, tag = 'output window, operand 0, single buffered']
    %14 = vsyncpa [#allocation7], 0
    %s15 = scalar_lea.sflag [#allocation7], 1
    %16 = vsyncpa %s15, 0
    %17 = vsyncpa [#allocation10], 0
    %18 = vsyncpa [#allocation8], 0
    loop: start=0, step=1, limit=4
    $region2: #{tpu_custom_call.1} parent=1 // loop_pre_header
      _
    $region3: #{tpu_custom_call.1} parent=1 // loop_header
      %s20 = sphi 0, %s24
      %p21 = scmp.ge.s32.totalorder %s20, 4
      %s28 = sphi 0, %s28
      %s30 = sphi 0, %s28
      %s31 = sphi 0, %s30
      %s45 = sphi 0, %s31
      %s51 = sphi 0, %s53
      %s54 = sphi 0, %s51
      %s55 = sphi 0, %s54
      %s71 = sphi 0, %s55
      %s75 = sphi 0, %s75
      %s77 = sphi 0, %s75
      %s78 = sphi 0, %s77
      %s92 = sphi 0, %s78
      %s96 = sphi 0, %s96
      %s98 = sphi 0, %s96
      %s99 = sphi 0, %s98
      %s113 = sphi 0, %s99
      %s117 = sphi 0, %s117
      %s119 = sphi 0, %s117
      %s120 = sphi 0, %s119
      %s134 = sphi 0, %s120
      %s138 = sphi 0, %s138
      %s140 = sphi 0, %s138
      %s141 = sphi 0, %s140
      %s155 = sphi 0, %s141
      %s159 = sphi 0, %s159
      %s161 = sphi 0, %s159
      %s162 = sphi 0, %s161
      %s176 = sphi 0, %s162
      %s180 = sphi 0, %s180
      %s182 = sphi 0, %s180
      %s183 = sphi 0, %s182
      %s197 = sphi 0, %s183
    $region4: #{tpu_custom_call.1} parent=1 // loop_header_branch
      %23 = sbr.rel (%p21) target = $region8
    $region5: #{tpu_custom_call.1} parent=1 // loop_body
      %s25 = ssub.s32 %s20, 1
      %s26 = ssub.s32 %s20, 2
      %s27 = sadd.s32 %s20, 1
      %s29 = sadd.s32 %s28, 1
      %p32 = scmp.eq.s32.totalorder %s20, 1
      %p33 = scmp.ne.s32.totalorder %s28, %s30
      %p34 = scmp.eq.s32.totalorder %s20, 0
      %p35 = por %p33, %p34
      %p36 = scmp.ne.s32.totalorder %s28, %s30
      %p37 = scmp.eq.s32.totalorder %s25, 1
      %p38 = por %p36, %p37
      %p39 = scmp.ne.s32.totalorder %s30, %s31
      %p40 = scmp.eq.s32.totalorder %s25, 0
      %p41 = por %p39, %p40
      %p42 = scmp.ne.s32.totalorder %s30, %s31
      %p43 = scmp.eq.s32.totalorder %s26, 1
      %p44 = por %p42, %p43
      %p46 = scmp.ne.s32.totalorder %s31, %s45
      %p47 = scmp.eq.s32.totalorder %s26, 0
      %p48 = por %p46, %p47
      %s49 = ssub.s32 %s20, %s27
      %p50 = scmp.eq.s32.totalorder %s49, 0
      %s52 = sadd.s32 %s51, 1
      %s53 = scalar_select %p50, %s51, %s52
      %p56 = pneg %p50
      %p57 = scmp.eq.s32.totalorder %s20, 1
      %p58 = por %p56, %p57
      %p59 = scmp.ne.s32.totalorder %s51, %s54
      %p60 = scmp.eq.s32.totalorder %s20, 0
      %p61 = por %p59, %p60
      %p62 = scmp.ne.s32.totalorder %s51, %s54
      %p63 = scmp.eq.s32.totalorder %s25, 1
      %p64 = por %p62, %p63
      %p65 = scmp.ne.s32.totalorder %s54, %s55
      %p66 = scmp.eq.s32.totalorder %s25, 0
      %p67 = por %p65, %p66
      %p68 = scmp.ne.s32.totalorder %s54, %s55
      %p69 = scmp.eq.s32.totalorder %s26, 1
      %p70 = por %p68, %p69
      %p72 = scmp.ne.s32.totalorder %s55, %s71
      %p73 = scmp.eq.s32.totalorder %s26, 0
      %p74 = por %p72, %p73
      %s76 = sadd.s32 %s75, 1
      %p79 = scmp.eq.s32.totalorder %s20, 1
      %p80 = scmp.ne.s32.totalorder %s75, %s77
      %p81 = scmp.eq.s32.totalorder %s20, 0
      %p82 = por %p80, %p81
      %p83 = scmp.ne.s32.totalorder %s75, %s77
      %p84 = scmp.eq.s32.totalorder %s25, 1
      %p85 = por %p83, %p84
      %p86 = scmp.ne.s32.totalorder %s77, %s78
      %p87 = scmp.eq.s32.totalorder %s25, 0
      %p88 = por %p86, %p87
      %p89 = scmp.ne.s32.totalorder %s77, %s78
      %p90 = scmp.eq.s32.totalorder %s26, 1
      %p91 = por %p89, %p90
      %p93 = scmp.ne.s32.totalorder %s78, %s92
      %p94 = scmp.eq.s32.totalorder %s26, 0
      %p95 = por %p93, %p94
      %s97 = sadd.s32 %s96, 1
      %p100 = scmp.eq.s32.totalorder %s20, 1
      %p101 = scmp.ne.s32.totalorder %s96, %s98
      %p102 = scmp.eq.s32.totalorder %s20, 0
      %p103 = por %p101, %p102
      %p104 = scmp.ne.s32.totalorder %s96, %s98
      %p105 = scmp.eq.s32.totalorder %s25, 1
      %p106 = por %p104, %p105
      %p107 = scmp.ne.s32.totalorder %s98, %s99
      %p108 = scmp.eq.s32.totalorder %s25, 0
      %p109 = por %p107, %p108
      %p110 = scmp.ne.s32.totalorder %s98, %s99
      %p111 = scmp.eq.s32.totalorder %s26, 1
      %p112 = por %p110, %p111
      %p114 = scmp.ne.s32.totalorder %s99, %s113
      %p115 = scmp.eq.s32.totalorder %s26, 0
      %p116 = por %p114, %p115
      %s118 = sadd.s32 %s117, 1
      %p121 = scmp.eq.s32.totalorder %s20, 1
      %p122 = scmp.ne.s32.totalorder %s117, %s119
      %p123 = scmp.eq.s32.totalorder %s20, 0
      %p124 = por %p122, %p123
      %p125 = scmp.ne.s32.totalorder %s117, %s119
      %p126 = scmp.eq.s32.totalorder %s25, 1
      %p127 = por %p125, %p126
      %p128 = scmp.ne.s32.totalorder %s119, %s120
      %p129 = scmp.eq.s32.totalorder %s25, 0
      %p130 = por %p128, %p129
      %p131 = scmp.ne.s32.totalorder %s119, %s120
      %p132 = scmp.eq.s32.totalorder %s26, 1
      %p133 = por %p131, %p132
      %p135 = scmp.ne.s32.totalorder %s120, %s134
      %p136 = scmp.eq.s32.totalorder %s26, 0
      %p137 = por %p135, %p136
      %s139 = sadd.s32 %s138, 1
      %p142 = scmp.eq.s32.totalorder %s20, 1
      %p143 = scmp.ne.s32.totalorder %s138, %s140
      %p144 = scmp.eq.s32.totalorder %s20, 0
      %p145 = por %p143, %p144
      %p146 = scmp.ne.s32.totalorder %s138, %s140
      %p147 = scmp.eq.s32.totalorder %s25, 1
      %p148 = por %p146, %p147
      %p149 = scmp.ne.s32.totalorder %s140, %s141
      %p150 = scmp.eq.s32.totalorder %s25, 0
      %p151 = por %p149, %p150
      %p152 = scmp.ne.s32.totalorder %s140, %s141
      %p153 = scmp.eq.s32.totalorder %s26, 1
      %p154 = por %p152, %p153
      %p156 = scmp.ne.s32.totalorder %s141, %s155
      %p157 = scmp.eq.s32.totalorder %s26, 0
      %p158 = por %p156, %p157
      %s160 = sadd.s32 %s159, 1
      %p163 = scmp.eq.s32.totalorder %s20, 1
      %p164 = scmp.ne.s32.totalorder %s159, %s161
      %p165 = scmp.eq.s32.totalorder %s20, 0
      %p166 = por %p164, %p165
      %p167 = scmp.ne.s32.totalorder %s159, %s161
      %p168 = scmp.eq.s32.totalorder %s25, 1
      %p169 = por %p167, %p168
      %p170 = scmp.ne.s32.totalorder %s161, %s162
      %p171 = scmp.eq.s32.totalorder %s25, 0
      %p172 = por %p170, %p171
      %p173 = scmp.ne.s32.totalorder %s161, %s162
      %p174 = scmp.eq.s32.totalorder %s26, 1
      %p175 = por %p173, %p174
      %p177 = scmp.ne.s32.totalorder %s162, %s176
      %p178 = scmp.eq.s32.totalorder %s26, 0
      %p179 = por %p177, %p178
      %s181 = sadd.s32 %s180, 1
      %p184 = scmp.eq.s32.totalorder %s20, 1
      %p185 = scmp.ne.s32.totalorder %s180, %s182
      %p186 = scmp.eq.s32.totalorder %s20, 0
      %p187 = por %p185, %p186
      %p188 = scmp.ne.s32.totalorder %s180, %s182
      %p189 = scmp.eq.s32.totalorder %s25, 1
      %p190 = por %p188, %p189
      %p191 = scmp.ne.s32.totalorder %s182, %s183
      %p192 = scmp.eq.s32.totalorder %s25, 0
      %p193 = por %p191, %p192
      %p194 = scmp.ne.s32.totalorder %s182, %s183
      %p195 = scmp.eq.s32.totalorder %s26, 1
      %p196 = por %p194, %p195
      %p198 = scmp.ne.s32.totalorder %s183, %s197
      %p199 = scmp.eq.s32.totalorder %s26, 0
      %p200 = por %p198, %p199
      %p201 = scmp.le.s32.totalorder 1, %s20
      %p202 = scmp.lt.s32.totalorder %s20, 3
      %p203 = pnand %p201, %p202
      %p204 = pneg %p203
      // Predicated region
      $region9: #{tpu_custom_call.1} parent=5 // pred_check
        _
      $region10: #{tpu_custom_call.1} parent=5 // pred_check_branch
        %206 = sbr.rel (%p203) target = $region12
      $region11: #{tpu_custom_call.1} parent=5 // pred_region
        %s207 = ssub.s32 %s20, 1
        // Predicated region
        $region13: #{tpu_custom_call.1} parent=11 // pred_check
          %p208 = pneg %p41
        $region14: #{tpu_custom_call.1} parent=11 // pred_check_branch
          %210 = sbr.rel (%p208) target = $region16
        $region15: #{tpu_custom_call.1} parent=11 // pred_region
          _
        $region16: #{tpu_custom_call.1} parent=11 // pred_fallthru
          _
        // Predicated region
        $region17: #{tpu_custom_call.1} parent=11 // pred_check
          %p211 = pneg %p88
        $region18: #{tpu_custom_call.1} parent=11 // pred_check_branch
          %213 = sbr.rel (%p211) target = $region20
        $region19: #{tpu_custom_call.1} parent=11 // pred_region
          %s215 = ssub.s32 1024, 1024
          %216 = vsyncadd [#allocation10], %s215
          %s217 = sshll.u32 [#allocation9], 4
          %s218 = int_to_ptr.vmem [resolvable:$true] %s217
          %223 = dma.hbm_to_vmem [thread:$0]  %s3, 1024, %s218, [#allocation10], 128, 128, 8
        $region20: #{tpu_custom_call.1} parent=11 // pred_fallthru
          _
        // Predicated region
        $region21: #{tpu_custom_call.1} parent=11 // pred_check
          %p224 = pneg %p109
        $region22: #{tpu_custom_call.1} parent=11 // pred_check_branch
          %226 = sbr.rel (%p224) target = $region24
        $region23: #{tpu_custom_call.1} parent=11 // pred_region
          %s228 = ssub.s32 2048, 2048
          %229 = vsyncadd [#allocation10], %s228
          %s230 = sshll.u32 [#allocation11], 4
          %s231 = int_to_ptr.vmem [resolvable:$true] %s230
          %236 = dma.hbm_to_vmem [thread:$0]  %s4, 2048, %s231, [#allocation10], 128, 128, 8
        $region24: #{tpu_custom_call.1} parent=11 // pred_fallthru
          _
        // Predicated region
        $region25: #{tpu_custom_call.1} parent=11 // pred_check
          %p237 = pneg %p130
        $region26: #{tpu_custom_call.1} parent=11 // pred_check_branch
          %239 = sbr.rel (%p237) target = $region28
        $region27: #{tpu_custom_call.1} parent=11 // pred_region
          _
        $region28: #{tpu_custom_call.1} parent=11 // pred_fallthru
          _
        // Predicated region
        $region29: #{tpu_custom_call.1} parent=11 // pred_check
          %p240 = pneg %p151
        $region30: #{tpu_custom_call.1} parent=11 // pred_check_branch
          %242 = sbr.rel (%p240) target = $region32
        $region31: #{tpu_custom_call.1} parent=11 // pred_region
          _
        $region32: #{tpu_custom_call.1} parent=11 // pred_fallthru
          _
        // Predicated region
        $region33: #{tpu_custom_call.1} parent=11 // pred_check
          %p243 = pneg %p172
        $region34: #{tpu_custom_call.1} parent=11 // pred_check_branch
          %245 = sbr.rel (%p243) target = $region36
        $region35: #{tpu_custom_call.1} parent=11 // pred_region
          _
        $region36: #{tpu_custom_call.1} parent=11 // pred_fallthru
          _
      $region12: #{tpu_custom_call.1} parent=5 // pred_fallthru
        _
      %p246 = scmp.lt.s32.totalorder %s20, 2
      // Predicated region
      $region37: #{tpu_custom_call.1} parent=5 // pred_check
        %p247 = pneg %p246
      $region38: #{tpu_custom_call.1} parent=5 // pred_check_branch
        %249 = sbr.rel (%p247) target = $region40
      $region39: #{tpu_custom_call.1} parent=5 // pred_region
        // Predicated region
        $region41: #{tpu_custom_call.1} parent=39 // pred_check
          %p250 = pneg %p61
        $region42: #{tpu_custom_call.1} parent=39 // pred_check_branch
          %252 = sbr.rel (%p250) target = $region44
        $region43: #{tpu_custom_call.1} parent=39 // pred_region
          %s253 = sand.u32 %s51, 1
          %s254 = scalar_lea.sflag [#allocation7], %s253
          %s255 = sand.u32 %s51, 1
          %s256 = smul.addr %s255, 32
          %s257 = scalar_lea.vmem [#allocation6], %s256
          %s259 = ssub.s32 512, 512
          %260 = vsyncadd %s254, %s259
          %s261 = smul.addr %s20, 128
          %s262 = scalar_lea.hbm %s2, %s261
          %s263 = sshll.u32 %s257, 4
          %s264 = int_to_ptr.vmem [resolvable:$true] %s263
          %269 = dma.hbm_to_vmem [thread:$0]  %s262, 512, %s264, %s254, 256, 128, 8
        $region44: #{tpu_custom_call.1} parent=39 // pred_fallthru
          _
      $region40: #{tpu_custom_call.1} parent=5 // pred_fallthru
        _
      %p270 = scmp.le.s32.totalorder 1, %s20
      %p271 = scmp.lt.s32.totalorder %s20, 3
      %p272 = pnand %p270, %p271
      %p273 = pneg %p272
      // Predicated region
      $region45: #{tpu_custom_call.1} parent=5 // pred_check
        _
      $region46: #{tpu_custom_call.1} parent=5 // pred_check_branch
        %275 = sbr.rel (%p272) target = $region48
      $region47: #{tpu_custom_call.1} parent=5 // pred_region
        %s276 = ssub.s32 %s20, 1
        %s277 = sand.u32 %s54, 1
        %s278 = scalar_lea.sflag [#allocation7], %s277
        %s279 = sand.u32 %s54, 1
        %s280 = smul.addr %s279, 32
        %s281 = scalar_lea.vmem [#allocation6], %s280
        // Predicated region
        $region49: #{tpu_custom_call.1} parent=47 // pred_check
          %p282 = pneg %p67
        $region50: #{tpu_custom_call.1} parent=47 // pred_check_branch
          %284 = sbr.rel (%p282) target = $region52
        $region51: #{tpu_custom_call.1} parent=47 // pred_region
          %285 = dma.done %s278, 512
        $region52: #{tpu_custom_call.1} parent=47 // pred_fallthru
          _
        // Predicated region
        $region53: #{tpu_custom_call.1} parent=47 // pred_check
          %p286 = pneg %p88
        $region54: #{tpu_custom_call.1} parent=47 // pred_check_branch
          %288 = sbr.rel (%p286) target = $region56
        $region55: #{tpu_custom_call.1} parent=47 // pred_region
          %289 = dma.done [#allocation10], 1024
        $region56: #{tpu_custom_call.1} parent=47 // pred_fallthru
          _
        // Predicated region
        $region57: #{tpu_custom_call.1} parent=47 // pred_check
          %p290 = pneg %p109
        $region58: #{tpu_custom_call.1} parent=47 // pred_check_branch
          %292 = sbr.rel (%p290) target = $region60
        $region59: #{tpu_custom_call.1} parent=47 // pred_region
          %293 = dma.done [#allocation10], 2048
        $region60: #{tpu_custom_call.1} parent=47 // pred_fallthru
          _
        %p294 = pneg %p41
        %p295 = pneg %p38
        %s296 = sand.u32 %s54, 1
        %s297 = scalar_lea.sflag [#allocation7], %s296
        %s298 = sand.u32 %s54, 1
        %s299 = smul.addr %s298, 32
        %s300 = scalar_lea.vmem [#allocation6], %s299
        %p301 = pneg %p67
        %p302 = pneg %p64
        %p303 = pneg %p88
        %p304 = pneg %p85
        %p305 = pneg %p109
        %p306 = pneg %p106
        %p307 = pneg %p130
        %p308 = pneg %p127
        %p309 = pneg %p151
        %p310 = pneg %p148
        %p311 = pneg %p172
        %p312 = pneg %p169
        %p313 = pneg %p193
        %p314 = pneg %p190
        %p315 = scmp.eq.s32.totalorder %s25, 0
        // Predicated region
        $region61: #{tpu_custom_call.1} parent=47 // pred_check
          %p316 = pneg %p315
        $region62: #{tpu_custom_call.1} parent=47 // pred_check_branch
          %318 = sbr.rel (%p316) target = $region64
        $region63: #{tpu_custom_call.1} parent=47 // pred_region
          %vm319 = vcmask 257024
          %320 = vst.msk [vmem:[#allocation2] sm:$0xf] %vm319, 0.0
          %321 = vst.msk [vmem:[#allocation3] sm:$0xf] %vm319, 0.0
        $region64: #{tpu_custom_call.1} parent=47 // pred_fallthru
          _
        %s322 = smul.u32 %s25, 8
        %s323 = sld [smem:[#allocation5]]
        %p324 = scmp.lt.s32.totalorder %s322, %s323
        // Predicated region
        $region65: #{tpu_custom_call.1} parent=47 // pred_check
          %p325 = pneg %p324
        $region66: #{tpu_custom_call.1} parent=47 // pred_check_branch
          %327 = sbr.rel (%p325) target = $region68
        $region67: #{tpu_custom_call.1} parent=47 // pred_region
          %v328 = vld [vmem:[%s281] sm:$0xff]
          %v329 = vld [vmem:[%s281 + $0x8] sm:$0xff]
          %v330 = vld [vmem:[%s281 + $0x10] sm:$0xff]
          %v331 = vld [vmem:[%s281 + $0x18] sm:$0xff]
          %v332 = vld [vmem:[%s1] sm:$0xf]
          %v333 = vld [vmem:[#allocation9] sm:$0xff]
          %v334 = vld [vmem:[#allocation9 + $0x8] sm:$0xff]
          %vm335 = vcmask 130048
          %v337 = vsel %vm335, %v328, 0
          %v340 = vsel %vm335, %v329, 0
          %v343 = vsel %vm335, %v330, 0
          %v346 = vsel %vm335, %v331, 0
          %348 = vmatprep.subr.mxu0 0.0
          %349 = vmatpush1.msra.mxu0 %v333
          %350 = vmatprep.subr.mxu0 0.0
          %351 = vmatpush1.msra.mxu0 %v334
          %352 = vmatprep.subr.mxu0 0.0
          %353 = vmatpush1.msra.mxu0 0.0
          %354 = vmatprep.subr.mxu0 0.0
          %355 = vmatpush1.msra.mxu0 0.0
          %356 = vmatprep.subr.mxu0 0.0
          %357 = vmatpush1.msra.mxu0 0.0
          %358 = vmatprep.subr.mxu0 0.0
          %359 = vmatpush1.msra.mxu0 0.0
          %360 = vmatprep.subr.mxu0 0.0
          %361 = vmatpush1.msra.mxu0 0.0
          %362 = vmatprep.subr.mxu0 0.0
          %363 = vmatpush1.msra.mxu0 0.0
          %364 = vmatprep.subr.mxu0 0.0
          %365 = vmatpush1.msra.mxu0 0.0
          %366 = vmatprep.subr.mxu0 0.0
          %367 = vmatpush1.msra.mxu0 0.0
          %368 = vmatprep.subr.mxu0 0.0
          %369 = vmatpush1.msra.mxu0 0.0
          %370 = vmatprep.subr.mxu0 0.0
          %371 = vmatpush1.msra.mxu0 0.0
          %372 = vmatprep.subr.mxu0 0.0
          %373 = vmatpush1.msra.mxu0 0.0
          %374 = vmatprep.subr.mxu0 0.0
          %375 = vmatpush1.msra.mxu0 0.0
          %376 = vmatprep.subr.mxu0 0.0
          %377 = vmatpush1.msra.mxu0 0.0
          %378 = vmatprep.subr.mxu0 0.0
          %379 = vmatpush1.msra.mxu0 0.0
          %380 = vmatprep.subr.mxu0 0.0
          %381 = vmatpush1.msra.mxu0 0.0
          %382 = vmatprep.subr.mxu0 0.0
          %383 = vmatpush1.msra.mxu0 0.0
          %384 = vmatprep.subr.mxu0 0.0
          %385 = vmatpush1.msra.mxu0 0.0
          %386 = vmatprep.subr.mxu0 0.0
          %387 = vmatpush1.msra.mxu0 0.0
          %388 = vmatprep.subr.mxu0 0.0
          %389 = vmatpush1.msra.mxu0 0.0
          %390 = vmatprep.subr.mxu0 0.0
          %391 = vmatpush1.msra.mxu0 0.0
          %392 = vmatprep.subr.mxu0 0.0
          %393 = vmatpush1.msra.mxu0 0.0
          %394 = vmatprep.subr.mxu0 0.0
          %395 = vmatpush1.msra.mxu0 0.0
          %396 = vmatprep.subr.mxu0 0.0
          %397 = vmatpush1.msra.mxu0 0.0
          %398 = vmatprep.subr.mxu0 0.0
          %399 = vmatpush1.msra.mxu0 0.0
          %400 = vmatprep.subr.mxu0 0.0
          %401 = vmatpush1.msra.mxu0 0.0
          %402 = vmatprep.subr.mxu0 0.0
          %403 = vmatpush1.msra.mxu0 0.0
          %404 = vmatprep.subr.mxu0 0.0
          %405 = vmatpush1.msra.mxu0 0.0
          %406 = vmatprep.subr.mxu0 0.0
          %407 = vmatpush1.msra.mxu0 0.0
          %408 = vmatprep.subr.mxu0 0.0
          %409 = vmatpush1.msra.mxu0 0.0
          %410 = vmatprep.subr.mxu0 0.0
          %411 = vmatpush1.msra.mxu0 0.0
          %412 = vmatprep.mubr.f32.mxu0 0.0
          %413 = vmatmul.mubr.f32.gmra.mrb[0].mxu0 %v337
          %v414 = vpop.f32.mrb[0].mxu0
          %v415 = vadd.f32 0.0, %v414
          %v416 = vpop.f32.mrb[0].mxu0
          %417 = vmatprep.mubr.f32.mxu0 0.0
          %418 = vmatmul.mubr.f32.gmra.mrb[0].mxu0 %v340
          %v419 = vpop.f32.mrb[0].mxu0
          %v420 = vadd.f32 0.0, %v419
          %v421 = vpop.f32.mrb[0].mxu0
          %422 = vmatprep.mubr.f32.mxu0 0.0
          %423 = vmatmul.mubr.f32.gmra.mrb[0].mxu0 %v343
          %v424 = vpop.f32.mrb[0].mxu0
          %v425 = vadd.f32 0.0, %v424
          %v426 = vpop.f32.mrb[0].mxu0
          %427 = vmatprep.mubr.f32.mxu0 0.0
          %428 = vmatmul.mubr.f32.gmra.mrb[0].mxu0 %v346
          %v429 = vpop.f32.mrb[0].mxu0
          %v430 = vadd.f32 0.0, %v429
          %v431 = vpop.f32.mrb[0].mxu0
          %432 = vdwg.mxu0
          %v433 = vld [vmem:[%s5] sm:$0x1]
          %v435 = vlaneseq
          %v436 = vshrl.u32 %v435, 7
          %v437 = vsub.s32 0, %v436
          %v438 = vrot.slane %v433, %v437
          %v440 = vadd.f32 %v415, %v438
          %v441 = vadd.f32 %v420, %v438
          %v442 = vadd.f32 %v425, %v438
          %v443 = vadd.f32 %v430, %v438
          %s444 = scalar_lea.vmem [#allocation9], 16
          %v445 = vld [vmem:[%s444] sm:$0xff]
          %v446 = vld [vmem:[%s444 + $0x8] sm:$0xff]
          %447 = vmatprep.subr.mxu0 0.0
          %448 = vmatpush1.msra.mxu0 %v445
          %449 = vmatprep.subr.mxu0 0.0
          %450 = vmatpush1.msra.mxu0 %v446
          %451 = vmatprep.subr.mxu0 0.0
          %452 = vmatpush1.msra.mxu0 0.0
          %453 = vmatprep.subr.mxu0 0.0
          %454 = vmatpush1.msra.mxu0 0.0
          %455 = vmatprep.subr.mxu0 0.0
          %456 = vmatpush1.msra.mxu0 0.0
          %457 = vmatprep.subr.mxu0 0.0
          %458 = vmatpush1.msra.mxu0 0.0
          %459 = vmatprep.subr.mxu0 0.0
          %460 = vmatpush1.msra.mxu0 0.0
          %461 = vmatprep.subr.mxu0 0.0
          %462 = vmatpush1.msra.mxu0 0.0
          %463 = vmatprep.subr.mxu0 0.0
          %464 = vmatpush1.msra.mxu0 0.0
          %465 = vmatprep.subr.mxu0 0.0
          %466 = vmatpush1.msra.mxu0 0.0
          %467 = vmatprep.subr.mxu0 0.0
          %468 = vmatpush1.msra.mxu0 0.0
          %469 = vmatprep.subr.mxu0 0.0
          %470 = vmatpush1.msra.mxu0 0.0
          %471 = vmatprep.subr.mxu0 0.0
          %472 = vmatpush1.msra.mxu0 0.0
          %473 = vmatprep.subr.mxu0 0.0
          %474 = vmatpush1.msra.mxu0 0.0
          %475 = vmatprep.subr.mxu0 0.0
          %476 = vmatpush1.msra.mxu0 0.0
          %477 = vmatprep.subr.mxu0 0.0
          %478 = vmatpush1.msra.mxu0 0.0
          %479 = vmatprep.subr.mxu0 0.0
          %480 = vmatpush1.msra.mxu0 0.0
          %481 = vmatprep.subr.mxu0 0.0
          %482 = vmatpush1.msra.mxu0 0.0
          %483 = vmatprep.subr.mxu0 0.0
          %484 = vmatpush1.msra.mxu0 0.0
          %485 = vmatprep.subr.mxu0 0.0
          %486 = vmatpush1.msra.mxu0 0.0
          %487 = vmatprep.subr.mxu0 0.0
          %488 = vmatpush1.msra.mxu0 0.0
          %489 = vmatprep.subr.mxu0 0.0
          %490 = vmatpush1.msra.mxu0 0.0
          %491 = vmatprep.subr.mxu0 0.0
          %492 = vmatpush1.msra.mxu0 0.0
          %493 = vmatprep.subr.mxu0 0.0
          %494 = vmatpush1.msra.mxu0 0.0
          %495 = vmatprep.subr.mxu0 0.0
          %496 = vmatpush1.msra.mxu0 0.0
          %497 = vmatprep.subr.mxu0 0.0
          %498 = vmatpush1.msra.mxu0 0.0
          %499 = vmatprep.subr.mxu0 0.0
          %500 = vmatpush1.msra.mxu0 0.0
          %501 = vmatprep.subr.mxu0 0.0
          %502 = vmatpush1.msra.mxu0 0.0
          %503 = vmatprep.subr.mxu0 0.0
          %504 = vmatpush1.msra.mxu0 0.0
          %505 = vmatprep.subr.mxu0 0.0
          %506 = vmatpush1.msra.mxu0 0.0
          %507 = vmatprep.subr.mxu0 0.0
          %508 = vmatpush1.msra.mxu0 0.0
          %509 = vmatprep.subr.mxu0 0.0
          %510 = vmatpush1.msra.mxu0 0.0
          %511 = vmatprep.mubr.f32.mxu0 0.0
          %512 = vmatmul.mubr.f32.gmra.mrb[0].mxu0 %v337
          %v513 = vpop.f32.mrb[0].mxu0
          %v514 = vadd.f32 0.0, %v513
          %v515 = vpop.f32.mrb[0].mxu0
          %516 = vmatprep.mubr.f32.mxu0 0.0
          %517 = vmatmul.mubr.f32.gmra.mrb[0].mxu0 %v340
          %v518 = vpop.f32.mrb[0].mxu0
          %v519 = vadd.f32 0.0, %v518
          %v520 = vpop.f32.mrb[0].mxu0
          %521 = vmatprep.mubr.f32.mxu0 0.0
          %522 = vmatmul.mubr.f32.gmra.mrb[0].mxu0 %v343
          %v523 = vpop.f32.mrb[0].mxu0
          %v524 = vadd.f32 0.0, %v523
          %v525 = vpop.f32.mrb[0].mxu0
          %526 = vmatprep.mubr.f32.mxu0 0.0
          %527 = vmatmul.mubr.f32.gmra.mrb[0].mxu0 %v346
          %v528 = vpop.f32.mrb[0].mxu0
          %v529 = vadd.f32 0.0, %v528
          %v530 = vpop.f32.mrb[0].mxu0
          %531 = vdwg.mxu0
          %s532 = scalar_lea.vmem %s5, 1
          %v533 = vld [vmem:[%s532] sm:$0x1]
          %v535 = vlaneseq
          %v536 = vshrl.u32 %v535, 7
          %v537 = vsub.s32 0, %v536
          %v538 = vrot.slane %v533, %v537
          %v540 = vadd.f32 %v514, %v538
          %v541 = vadd.f32 %v519, %v538
          %v542 = vadd.f32 %v524, %v538
          %v543 = vadd.f32 %v529, %v538
          %s544 = scalar_lea.vmem [#allocation9], 32
          %v545 = vld [vmem:[%s544] sm:$0xff]
          %v546 = vld [vmem:[%s544 + $0x8] sm:$0xff]
          %547 = vmatprep.subr.mxu0 0.0
          %548 = vmatpush1.msra.mxu0 %v545
          %549 = vmatprep.subr.mxu0 0.0
          %550 = vmatpush1.msra.mxu0 %v546
          %551 = vmatprep.subr.mxu0 0.0
          %552 = vmatpush1.msra.mxu0 0.0
          %553 = vmatprep.subr.mxu0 0.0
          %554 = vmatpush1.msra.mxu0 0.0
          %555 = vmatprep.subr.mxu0 0.0
          %556 = vmatpush1.msra.mxu0 0.0
          %557 = vmatprep.subr.mxu0 0.0
          %558 = vmatpush1.msra.mxu0 0.0
          %559 = vmatprep.subr.mxu0 0.0
          %560 = vmatpush1.msra.mxu0 0.0
          %561 = vmatprep.subr.mxu0 0.0
          %562 = vmatpush1.msra.mxu0 0.0
          %563 = vmatprep.subr.mxu0 0.0
          %564 = vmatpush1.msra.mxu0 0.0
          %565 = vmatprep.subr.mxu0 0.0
          %566 = vmatpush1.msra.mxu0 0.0
          %567 = vmatprep.subr.mxu0 0.0
          %568 = vmatpush1.msra.mxu0 0.0
          %569 = vmatprep.subr.mxu0 0.0
          %570 = vmatpush1.msra.mxu0 0.0
          %571 = vmatprep.subr.mxu0 0.0
          %572 = vmatpush1.msra.mxu0 0.0
          %573 = vmatprep.subr.mxu0 0.0
          %574 = vmatpush1.msra.mxu0 0.0
          %575 = vmatprep.subr.mxu0 0.0
          %576 = vmatpush1.msra.mxu0 0.0
          %577 = vmatprep.subr.mxu0 0.0
          %578 = vmatpush1.msra.mxu0 0.0
          %579 = vmatprep.subr.mxu0 0.0
          %580 = vmatpush1.msra.mxu0 0.0
          %581 = vmatprep.subr.mxu0 0.0
          %582 = vmatpush1.msra.mxu0 0.0
          %583 = vmatprep.subr.mxu0 0.0
          %584 = vmatpush1.msra.mxu0 0.0
          %585 = vmatprep.subr.mxu0 0.0
          %586 = vmatpush1.msra.mxu0 0.0
          %587 = vmatprep.subr.mxu0 0.0
          %588 = vmatpush1.msra.mxu0 0.0
          %589 = vmatprep.subr.mxu0 0.0
          %590 = vmatpush1.msra.mxu0 0.0
          %591 = vmatprep.subr.mxu0 0.0
          %592 = vmatpush1.msra.mxu0 0.0
          %593 = vmatprep.subr.mxu0 0.0
          %594 = vmatpush1.msra.mxu0 0.0
          %595 = vmatprep.subr.mxu0 0.0
          %596 = vmatpush1.msra.mxu0 0.0
          %597 = vmatprep.subr.mxu0 0.0
          %598 = vmatpush1.msra.mxu0 0.0
          %599 = vmatprep.subr.mxu0 0.0
          %600 = vmatpush1.msra.mxu0 0.0
          %601 = vmatprep.subr.mxu0 0.0
          %602 = vmatpush1.msra.mxu0 0.0
          %603 = vmatprep.subr.mxu0 0.0
          %604 = vmatpush1.msra.mxu0 0.0
          %605 = vmatprep.subr.mxu0 0.0
          %606 = vmatpush1.msra.mxu0 0.0
          %607 = vmatprep.subr.mxu0 0.0
          %608 = vmatpush1.msra.mxu0 0.0
          %609 = vmatprep.subr.mxu0 0.0
          %610 = vmatpush1.msra.mxu0 0.0
          %611 = vmatprep.mubr.f32.mxu0 0.0
          %612 = vmatmul.mubr.f32.gmra.mrb[0].mxu0 %v337
          %v613 = vpop.f32.mrb[0].mxu0
          %v614 = vadd.f32 0.0, %v613
          %v615 = vpop.f32.mrb[0].mxu0
          %616 = vmatprep.mubr.f32.mxu0 0.0
          %617 = vmatmul.mubr.f32.gmra.mrb[0].mxu0 %v340
          %v618 = vpop.f32.mrb[0].mxu0
          %v619 = vadd.f32 0.0, %v618
          %v620 = vpop.f32.mrb[0].mxu0
          %621 = vmatprep.mubr.f32.mxu0 0.0
          %622 = vmatmul.mubr.f32.gmra.mrb[0].mxu0 %v343
          %v623 = vpop.f32.mrb[0].mxu0
          %v624 = vadd.f32 0.0, %v623
          %v625 = vpop.f32.mrb[0].mxu0
          %626 = vmatprep.mubr.f32.mxu0 0.0
          %627 = vmatmul.mubr.f32.gmra.mrb[0].mxu0 %v346
          %v628 = vpop.f32.mrb[0].mxu0
          %v629 = vadd.f32 0.0, %v628
          %v630 = vpop.f32.mrb[0].mxu0
          %631 = vdwg.mxu0
          %s632 = scalar_lea.vmem %s5, 2
          %v633 = vld [vmem:[%s632] sm:$0x1]
          %v635 = vlaneseq
          %v636 = vshrl.u32 %v635, 7
          %v637 = vsub.s32 0, %v636
          %v638 = vrot.slane %v633, %v637
          %v640 = vadd.f32 %v614, %v638
          %v641 = vadd.f32 %v619, %v638
          %v642 = vadd.f32 %v624, %v638
          %v643 = vadd.f32 %v629, %v638
          %s644 = scalar_lea.vmem [#allocation9], 48
          %v645 = vld [vmem:[%s644] sm:$0xff]
          %v646 = vld [vmem:[%s644 + $0x8] sm:$0xff]
          %647 = vmatprep.subr.mxu0 0.0
          %648 = vmatpush1.msra.mxu0 %v645
          %649 = vmatprep.subr.mxu0 0.0
          %650 = vmatpush1.msra.mxu0 %v646
          %651 = vmatprep.subr.mxu0 0.0
          %652 = vmatpush1.msra.mxu0 0.0
          %653 = vmatprep.subr.mxu0 0.0
          %654 = vmatpush1.msra.mxu0 0.0
          %655 = vmatprep.subr.mxu0 0.0
          %656 = vmatpush1.msra.mxu0 0.0
          %657 = vmatprep.subr.mxu0 0.0
          %658 = vmatpush1.msra.mxu0 0.0
          %659 = vmatprep.subr.mxu0 0.0
          %660 = vmatpush1.msra.mxu0 0.0
          %661 = vmatprep.subr.mxu0 0.0
          %662 = vmatpush1.msra.mxu0 0.0
          %663 = vmatprep.subr.mxu0 0.0
          %664 = vmatpush1.msra.mxu0 0.0
          %665 = vmatprep.subr.mxu0 0.0
          %666 = vmatpush1.msra.mxu0 0.0
          %667 = vmatprep.subr.mxu0 0.0
          %668 = vmatpush1.msra.mxu0 0.0
          %669 = vmatprep.subr.mxu0 0.0
          %670 = vmatpush1.msra.mxu0 0.0
          %671 = vmatprep.subr.mxu0 0.0
          %672 = vmatpush1.msra.mxu0 0.0
          %673 = vmatprep.subr.mxu0 0.0
          %674 = vmatpush1.msra.mxu0 0.0
          %675 = vmatprep.subr.mxu0 0.0
          %676 = vmatpush1.msra.mxu0 0.0
          %677 = vmatprep.subr.mxu0 0.0
          %678 = vmatpush1.msra.mxu0 0.0
          %679 = vmatprep.subr.mxu0 0.0
          %680 = vmatpush1.msra.mxu0 0.0
          %681 = vmatprep.subr.mxu0 0.0
          %682 = vmatpush1.msra.mxu0 0.0
          %683 = vmatprep.subr.mxu0 0.0
          %684 = vmatpush1.msra.mxu0 0.0
          %685 = vmatprep.subr.mxu0 0.0
          %686 = vmatpush1.msra.mxu0 0.0
          %687 = vmatprep.subr.mxu0 0.0
          %688 = vmatpush1.msra.mxu0 0.0
          %689 = vmatprep.subr.mxu0 0.0
          %690 = vmatpush1.msra.mxu0 0.0
          %691 = vmatprep.subr.mxu0 0.0
          %692 = vmatpush1.msra.mxu0 0.0
          %693 = vmatprep.subr.mxu0 0.0
          %694 = vmatpush1.msra.mxu0 0.0
          %695 = vmatprep.subr.mxu0 0.0
          %696 = vmatpush1.msra.mxu0 0.0
          %697 = vmatprep.subr.mxu0 0.0
          %698 = vmatpush1.msra.mxu0 0.0
          %699 = vmatprep.subr.mxu0 0.0
          %700 = vmatpush1.msra.mxu0 0.0
          %701 = vmatprep.subr.mxu0 0.0
          %702 = vmatpush1.msra.mxu0 0.0
          %703 = vmatprep.subr.mxu0 0.0
          %704 = vmatpush1.msra.mxu0 0.0
          %705 = vmatprep.subr.mxu0 0.0
          %706 = vmatpush1.msra.mxu0 0.0
          %707 = vmatprep.subr.mxu0 0.0
          %708 = vmatpush1.msra.mxu0 0.0
          %709 = vmatprep.subr.mxu0 0.0
          %710 = vmatpush1.msra.mxu0 0.0
          %711 = vmatprep.mubr.f32.mxu0 0.0
          %712 = vmatmul.mubr.f32.gmra.mrb[0].mxu0 %v337
          %v713 = vpop.f32.mrb[0].mxu0
          %v714 = vadd.f32 0.0, %v713
          %v715 = vpop.f32.mrb[0].mxu0
          %716 = vmatprep.mubr.f32.mxu0 0.0
          %717 = vmatmul.mubr.f32.gmra.mrb[0].mxu0 %v340
          %v718 = vpop.f32.mrb[0].mxu0
          %v719 = vadd.f32 0.0, %v718
          %v720 = vpop.f32.mrb[0].mxu0
          %721 = vmatprep.mubr.f32.mxu0 0.0
          %722 = vmatmul.mubr.f32.gmra.mrb[0].mxu0 %v343
          %v723 = vpop.f32.mrb[0].mxu0
          %v724 = vadd.f32 0.0, %v723
          %v725 = vpop.f32.mrb[0].mxu0
          %726 = vmatprep.mubr.f32.mxu0 0.0
          %727 = vmatmul.mubr.f32.gmra.mrb[0].mxu0 %v346
          %v728 = vpop.f32.mrb[0].mxu0
          %v729 = vadd.f32 0.0, %v728
          %v730 = vpop.f32.mrb[0].mxu0
          %731 = vdwg.mxu0
          %s732 = scalar_lea.vmem %s5, 3
          %v733 = vld [vmem:[%s732] sm:$0x1]
          %v735 = vlaneseq
          %v736 = vshrl.u32 %v735, 7
          %v737 = vsub.s32 0, %v736
          %v738 = vrot.slane %v733, %v737
          %v740 = vadd.f32 %v714, %v738
          %v741 = vadd.f32 %v719, %v738
          %v742 = vadd.f32 %v724, %v738
          %v743 = vadd.f32 %v729, %v738
          %v744 = vld [vmem:[#allocation11] sm:$0xff]
          %v745 = vld [vmem:[#allocation11 + $0x8] sm:$0xff]
          %v746 = vld [vmem:[#allocation11 + $0x10] sm:$0xff]
          %v747 = vld [vmem:[#allocation11 + $0x18] sm:$0xff]
          %s748 = scalar_lea.vmem [#allocation11], 32
          %v749 = vld [vmem:[%s748] sm:$0xff]
          %v750 = vld [vmem:[%s748 + $0x8] sm:$0xff]
          %v751 = vld [vmem:[%s748 + $0x10] sm:$0xff]
          %v752 = vld [vmem:[%s748 + $0x18] sm:$0xff]
          %s753 = scalar_lea.vmem [#allocation11], 64
          %v754 = vld [vmem:[%s753] sm:$0xff]
          %v755 = vld [vmem:[%s753 + $0x8] sm:$0xff]
          %v756 = vld [vmem:[%s753 + $0x10] sm:$0xff]
          %v757 = vld [vmem:[%s753 + $0x18] sm:$0xff]
          %s758 = scalar_lea.vmem [#allocation11], 96
          %v759 = vld [vmem:[%s758] sm:$0xff]
          %v760 = vld [vmem:[%s758 + $0x8] sm:$0xff]
          %v761 = vld [vmem:[%s758 + $0x10] sm:$0xff]
          %v762 = vld [vmem:[%s758 + $0x18] sm:$0xff]
          %v763 = vld [vmem:[#allocation2] sm:$0xf]
          %v764 = vld [vmem:[#allocation3] sm:$0xf]
          %vm765 = vcmask 261120
          %v767 = vsel %vm765, %v763, 0
          %769 = vmatprep.subr.mxu0 0.0
          %770 = vmatpush1.msra.mxu0 %v744
          %771 = vmatprep.subr.mxu0 0.0
          %772 = vmatpush1.msra.mxu0 %v745
          %773 = vmatprep.subr.mxu0 0.0
          %774 = vmatpush1.msra.mxu0 %v746
          %775 = vmatprep.subr.mxu0 0.0
          %776 = vmatpush1.msra.mxu0 %v747
          %777 = vmatprep.subr.mxu0 0.0
          %778 = vmatpush1.msra.mxu0 0.0
          %779 = vmatprep.subr.mxu0 0.0
          %780 = vmatpush1.msra.mxu0 0.0
          %781 = vmatprep.subr.mxu0 0.0
          %782 = vmatpush1.msra.mxu0 0.0
          %783 = vmatprep.subr.mxu0 0.0
          %784 = vmatpush1.msra.mxu0 0.0
          %785 = vmatprep.subr.mxu0 0.0
          %786 = vmatpush1.msra.mxu0 0.0
          %787 = vmatprep.subr.mxu0 0.0
          %788 = vmatpush1.msra.mxu0 0.0
          %789 = vmatprep.subr.mxu0 0.0
          %790 = vmatpush1.msra.mxu0 0.0
          %791 = vmatprep.subr.mxu0 0.0
          %792 = vmatpush1.msra.mxu0 0.0
          %793 = vmatprep.subr.mxu0 0.0
          %794 = vmatpush1.msra.mxu0 0.0
          %795 = vmatprep.subr.mxu0 0.0
          %796 = vmatpush1.msra.mxu0 0.0
          %797 = vmatprep.subr.mxu0 0.0
          %798 = vmatpush1.msra.mxu0 0.0
          %799 = vmatprep.subr.mxu0 0.0
          %800 = vmatpush1.msra.mxu0 0.0
          %801 = vmatprep.subr.mxu0 0.0
          %802 = vmatpush1.msra.mxu0 0.0
          %803 = vmatprep.subr.mxu0 0.0
          %804 = vmatpush1.msra.mxu0 0.0
          %805 = vmatprep.subr.mxu0 0.0
          %806 = vmatpush1.msra.mxu0 0.0
          %807 = vmatprep.subr.mxu0 0.0
          %808 = vmatpush1.msra.mxu0 0.0
          %809 = vmatprep.subr.mxu0 0.0
          %810 = vmatpush1.msra.mxu0 0.0
          %811 = vmatprep.subr.mxu0 0.0
          %812 = vmatpush1.msra.mxu0 0.0
          %813 = vmatprep.subr.mxu0 0.0
          %814 = vmatpush1.msra.mxu0 0.0
          %815 = vmatprep.subr.mxu0 0.0
          %816 = vmatpush1.msra.mxu0 0.0
          %817 = vmatprep.subr.mxu0 0.0
          %818 = vmatpush1.msra.mxu0 0.0
          %819 = vmatprep.subr.mxu0 0.0
          %820 = vmatpush1.msra.mxu0 0.0
          %821 = vmatprep.subr.mxu0 0.0
          %822 = vmatpush1.msra.mxu0 0.0
          %823 = vmatprep.subr.mxu0 0.0
          %824 = vmatpush1.msra.mxu0 0.0
          %825 = vmatprep.subr.mxu0 0.0
          %826 = vmatpush1.msra.mxu0 0.0
          %827 = vmatprep.subr.mxu0 0.0
          %828 = vmatpush1.msra.mxu0 0.0
          %829 = vmatprep.subr.mxu0 0.0
          %830 = vmatpush1.msra.mxu0 0.0
          %831 = vmatprep.subr.mxu0 0.0
          %832 = vmatpush1.msra.mxu0 0.0
          %833 = vmatprep.mubr.f32.mxu0 0.0
          %834 = vmatmul.mubr.f32.gmra.mrb[0].mxu0 %v767
          %v835 = vpop.f32.mrb[0].mxu0
          %v836 = vadd.f32 0.0, %v835
          %v837 = vpop.f32.mrb[0].mxu0
          %838 = vdwg.mxu0
          %v840 = vrot.slane %v836, 1
          %v841 = vrot.slane %v836, 2
          %v842 = vrot.slane %v836, 3
          %v847 = vadd.f32 %v440, %v836
          %v848 = vadd.f32 %v441, %v840
          %v849 = vadd.f32 %v442, %v841
          %v850 = vadd.f32 %v443, %v842
          %851 = vmatprep.subr.mxu0 0.0
          %852 = vmatpush1.msra.mxu0 %v749
          %853 = vmatprep.subr.mxu0 0.0
          %854 = vmatpush1.msra.mxu0 %v750
          %855 = vmatprep.subr.mxu0 0.0
          %856 = vmatpush1.msra.mxu0 %v751
          %857 = vmatprep.subr.mxu0 0.0
          %858 = vmatpush1.msra.mxu0 %v752
          %859 = vmatprep.subr.mxu0 0.0
          %860 = vmatpush1.msra.mxu0 0.0
          %861 = vmatprep.subr.mxu0 0.0
          %862 = vmatpush1.msra.mxu0 0.0
          %863 = vmatprep.subr.mxu0 0.0
          %864 = vmatpush1.msra.mxu0 0.0
          %865 = vmatprep.subr.mxu0 0.0
          %866 = vmatpush1.msra.mxu0 0.0
          %867 = vmatprep.subr.mxu0 0.0
          %868 = vmatpush1.msra.mxu0 0.0
          %869 = vmatprep.subr.mxu0 0.0
          %870 = vmatpush1.msra.mxu0 0.0
          %871 = vmatprep.subr.mxu0 0.0
          %872 = vmatpush1.msra.mxu0 0.0
          %873 = vmatprep.subr.mxu0 0.0
          %874 = vmatpush1.msra.mxu0 0.0
          %875 = vmatprep.subr.mxu0 0.0
          %876 = vmatpush1.msra.mxu0 0.0
          %877 = vmatprep.subr.mxu0 0.0
          %878 = vmatpush1.msra.mxu0 0.0
          %879 = vmatprep.subr.mxu0 0.0
          %880 = vmatpush1.msra.mxu0 0.0
          %881 = vmatprep.subr.mxu0 0.0
          %882 = vmatpush1.msra.mxu0 0.0
          %883 = vmatprep.subr.mxu0 0.0
          %884 = vmatpush1.msra.mxu0 0.0
          %885 = vmatprep.subr.mxu0 0.0
          %886 = vmatpush1.msra.mxu0 0.0
          %887 = vmatprep.subr.mxu0 0.0
          %888 = vmatpush1.msra.mxu0 0.0
          %889 = vmatprep.subr.mxu0 0.0
          %890 = vmatpush1.msra.mxu0 0.0
          %891 = vmatprep.subr.mxu0 0.0
          %892 = vmatpush1.msra.mxu0 0.0
          %893 = vmatprep.subr.mxu0 0.0
          %894 = vmatpush1.msra.mxu0 0.0
          %895 = vmatprep.subr.mxu0 0.0
          %896 = vmatpush1.msra.mxu0 0.0
          %897 = vmatprep.subr.mxu0 0.0
          %898 = vmatpush1.msra.mxu0 0.0
          %899 = vmatprep.subr.mxu0 0.0
          %900 = vmatpush1.msra.mxu0 0.0
          %901 = vmatprep.subr.mxu0 0.0
          %902 = vmatpush1.msra.mxu0 0.0
          %903 = vmatprep.subr.mxu0 0.0
          %904 = vmatpush1.msra.mxu0 0.0
          %905 = vmatprep.subr.mxu0 0.0
          %906 = vmatpush1.msra.mxu0 0.0
          %907 = vmatprep.subr.mxu0 0.0
          %908 = vmatpush1.msra.mxu0 0.0
          %909 = vmatprep.subr.mxu0 0.0
          %910 = vmatpush1.msra.mxu0 0.0
          %911 = vmatprep.subr.mxu0 0.0
          %912 = vmatpush1.msra.mxu0 0.0
          %913 = vmatprep.subr.mxu0 0.0
          %914 = vmatpush1.msra.mxu0 0.0
          %915 = vmatprep.mubr.f32.mxu0 0.0
          %916 = vmatmul.mubr.f32.gmra.mrb[0].mxu0 %v767
          %v917 = vpop.f32.mrb[0].mxu0
          %v918 = vadd.f32 0.0, %v917
          %v919 = vpop.f32.mrb[0].mxu0
          %920 = vdwg.mxu0
          %v922 = vrot.slane %v918, 1
          %v923 = vrot.slane %v918, 2
          %v924 = vrot.slane %v918, 3
          %v929 = vadd.f32 %v540, %v918
          %v930 = vadd.f32 %v541, %v922
          %v931 = vadd.f32 %v542, %v923
          %v932 = vadd.f32 %v543, %v924
          %933 = vmatprep.subr.mxu0 0.0
          %934 = vmatpush1.msra.mxu0 %v754
          %935 = vmatprep.subr.mxu0 0.0
          %936 = vmatpush1.msra.mxu0 %v755
          %937 = vmatprep.subr.mxu0 0.0
          %938 = vmatpush1.msra.mxu0 %v756
          %939 = vmatprep.subr.mxu0 0.0
          %940 = vmatpush1.msra.mxu0 %v757
          %941 = vmatprep.subr.mxu0 0.0
          %942 = vmatpush1.msra.mxu0 0.0
          %943 = vmatprep.subr.mxu0 0.0
          %944 = vmatpush1.msra.mxu0 0.0
          %945 = vmatprep.subr.mxu0 0.0
          %946 = vmatpush1.msra.mxu0 0.0
          %947 = vmatprep.subr.mxu0 0.0
          %948 = vmatpush1.msra.mxu0 0.0
          %949 = vmatprep.subr.mxu0 0.0
          %950 = vmatpush1.msra.mxu0 0.0
          %951 = vmatprep.subr.mxu0 0.0
          %952 = vmatpush1.msra.mxu0 0.0
          %953 = vmatprep.subr.mxu0 0.0
          %954 = vmatpush1.msra.mxu0 0.0
          %955 = vmatprep.subr.mxu0 0.0
          %956 = vmatpush1.msra.mxu0 0.0
          %957 = vmatprep.subr.mxu0 0.0
          %958 = vmatpush1.msra.mxu0 0.0
          %959 = vmatprep.subr.mxu0 0.0
          %960 = vmatpush1.msra.mxu0 0.0
          %961 = vmatprep.subr.mxu0 0.0
          %962 = vmatpush1.msra.mxu0 0.0
          %963 = vmatprep.subr.mxu0 0.0
          %964 = vmatpush1.msra.mxu0 0.0
          %965 = vmatprep.subr.mxu0 0.0
          %966 = vmatpush1.msra.mxu0 0.0
          %967 = vmatprep.subr.mxu0 0.0
          %968 = vmatpush1.msra.mxu0 0.0
          %969 = vmatprep.subr.mxu0 0.0
          %970 = vmatpush1.msra.mxu0 0.0
          %971 = vmatprep.subr.mxu0 0.0
          %972 = vmatpush1.msra.mxu0 0.0
          %973 = vmatprep.subr.mxu0 0.0
          %974 = vmatpush1.msra.mxu0 0.0
          %975 = vmatprep.subr.mxu0 0.0
          %976 = vmatpush1.msra.mxu0 0.0
          %977 = vmatprep.subr.mxu0 0.0
          %978 = vmatpush1.msra.mxu0 0.0
          %979 = vmatprep.subr.mxu0 0.0
          %980 = vmatpush1.msra.mxu0 0.0
          %981 = vmatprep.subr.mxu0 0.0
          %982 = vmatpush1.msra.mxu0 0.0
          %983 = vmatprep.subr.mxu0 0.0
          %984 = vmatpush1.msra.mxu0 0.0
          %985 = vmatprep.subr.mxu0 0.0
          %986 = vmatpush1.msra.mxu0 0.0
          %987 = vmatprep.subr.mxu0 0.0
          %988 = vmatpush1.msra.mxu0 0.0
          %989 = vmatprep.subr.mxu0 0.0
          %990 = vmatpush1.msra.mxu0 0.0
          %991 = vmatprep.subr.mxu0 0.0
          %992 = vmatpush1.msra.mxu0 0.0
          %993 = vmatprep.subr.mxu0 0.0
          %994 = vmatpush1.msra.mxu0 0.0
          %995 = vmatprep.subr.mxu0 0.0
          %996 = vmatpush1.msra.mxu0 0.0
          %997 = vmatprep.mubr.f32.mxu0 0.0
          %998 = vmatmul.mubr.f32.gmra.mrb[0].mxu0 %v767
          %v999 = vpop.f32.mrb[0].mxu0
          %v1000 = vadd.f32 0.0, %v999
          %v1001 = vpop.f32.mrb[0].mxu0
          %1002 = vdwg.mxu0
          %v1004 = vrot.slane %v1000, 1
          %v1005 = vrot.slane %v1000, 2
          %v1006 = vrot.slane %v1000, 3
          %v1011 = vadd.f32 %v640, %v1000
          %v1012 = vadd.f32 %v641, %v1004
          %v1013 = vadd.f32 %v642, %v1005
          %v1014 = vadd.f32 %v643, %v1006
          %1015 = vmatprep.subr.mxu0 0.0
          %1016 = vmatpush1.msra.mxu0 %v759
          %1017 = vmatprep.subr.mxu0 0.0
          %1018 = vmatpush1.msra.mxu0 %v760
          %1019 = vmatprep.subr.mxu0 0.0
          %1020 = vmatpush1.msra.mxu0 %v761
          %1021 = vmatprep.subr.mxu0 0.0
          %1022 = vmatpush1.msra.mxu0 %v762
          %1023 = vmatprep.subr.mxu0 0.0
          %1024 = vmatpush1.msra.mxu0 0.0
          %1025 = vmatprep.subr.mxu0 0.0
          %1026 = vmatpush1.msra.mxu0 0.0
          %1027 = vmatprep.subr.mxu0 0.0
          %1028 = vmatpush1.msra.mxu0 0.0
          %1029 = vmatprep.subr.mxu0 0.0
          %1030 = vmatpush1.msra.mxu0 0.0
          %1031 = vmatprep.subr.mxu0 0.0
          %1032 = vmatpush1.msra.mxu0 0.0
          %1033 = vmatprep.subr.mxu0 0.0
          %1034 = vmatpush1.msra.mxu0 0.0
          %1035 = vmatprep.subr.mxu0 0.0
          %1036 = vmatpush1.msra.mxu0 0.0
          %1037 = vmatprep.subr.mxu0 0.0
          %1038 = vmatpush1.msra.mxu0 0.0
          %1039 = vmatprep.subr.mxu0 0.0
          %1040 = vmatpush1.msra.mxu0 0.0
          %1041 = vmatprep.subr.mxu0 0.0
          %1042 = vmatpush1.msra.mxu0 0.0
          %1043 = vmatprep.subr.mxu0 0.0
          %1044 = vmatpush1.msra.mxu0 0.0
          %1045 = vmatprep.subr.mxu0 0.0
          %1046 = vmatpush1.msra.mxu0 0.0
          %1047 = vmatprep.subr.mxu0 0.0
          %1048 = vmatpush1.msra.mxu0 0.0
          %1049 = vmatprep.subr.mxu0 0.0
          %1050 = vmatpush1.msra.mxu0 0.0
          %1051 = vmatprep.subr.mxu0 0.0
          %1052 = vmatpush1.msra.mxu0 0.0
          %1053 = vmatprep.subr.mxu0 0.0
          %1054 = vmatpush1.msra.mxu0 0.0
          %1055 = vmatprep.subr.mxu0 0.0
          %1056 = vmatpush1.msra.mxu0 0.0
          %1057 = vmatprep.subr.mxu0 0.0
          %1058 = vmatpush1.msra.mxu0 0.0
          %1059 = vmatprep.subr.mxu0 0.0
          %1060 = vmatpush1.msra.mxu0 0.0
          %1061 = vmatprep.subr.mxu0 0.0
          %1062 = vmatpush1.msra.mxu0 0.0
          %1063 = vmatprep.subr.mxu0 0.0
          %1064 = vmatpush1.msra.mxu0 0.0
          %1065 = vmatprep.subr.mxu0 0.0
          %1066 = vmatpush1.msra.mxu0 0.0
          %1067 = vmatprep.subr.mxu0 0.0
          %1068 = vmatpush1.msra.mxu0 0.0
          %1069 = vmatprep.subr.mxu0 0.0
          %1070 = vmatpush1.msra.mxu0 0.0
          %1071 = vmatprep.subr.mxu0 0.0
          %1072 = vmatpush1.msra.mxu0 0.0
          %1073 = vmatprep.subr.mxu0 0.0
          %1074 = vmatpush1.msra.mxu0 0.0
          %1075 = vmatprep.subr.mxu0 0.0
          %1076 = vmatpush1.msra.mxu0 0.0
          %1077 = vmatprep.subr.mxu0 0.0
          %1078 = vmatpush1.msra.mxu0 0.0
          %1079 = vmatprep.mubr.f32.mxu0 0.0
          %1080 = vmatmul.mubr.f32.gmra.mrb[0].mxu0 %v767
          %v1081 = vpop.f32.mrb[0].mxu0
          %v1082 = vadd.f32 0.0, %v1081
          %v1083 = vpop.f32.mrb[0].mxu0
          %1084 = vdwg.mxu0
          %v1086 = vrot.slane %v1082, 1
          %v1087 = vrot.slane %v1082, 2
          %v1088 = vrot.slane %v1082, 3
          %v1093 = vadd.f32 %v740, %v1082
          %v1094 = vadd.f32 %v741, %v1086
          %v1095 = vadd.f32 %v742, %v1087
          %v1096 = vadd.f32 %v743, %v1088
          %v1097 = vxor.u32 %v847, 2147483648
          %v1098 = vxor.u32 %v848, 2147483648
          %v1099 = vxor.u32 %v849, 2147483648
          %v1100 = vxor.u32 %v850, 2147483648
          %v1101 = vmul.f32 %v1097, 1.442695
          %v1102 = vpow.pop %v1101
          %v1103 = vmul.f32 %v1098, 1.442695
          %v1104 = vpow.pop %v1103
          %v1105 = vmul.f32 %v1099, 1.442695
          %v1106 = vpow.pop %v1105
          %v1107 = vmul.f32 %v1100, 1.442695
          %v1108 = vpow.pop %v1107
          %v1109 = vadd.f32 %v1102, 1.0
          %v1110 = vadd.f32 %v1104, 1.0
          %v1111 = vadd.f32 %v1106, 1.0
          %v1112 = vadd.f32 %v1108, 1.0
          %v1113 = vrcp.pop %v1109
          %v1114 = vmul.f32 1.0, %v1113
          %v1115 = vrcp.pop %v1110
          %v1116 = vmul.f32 1.0, %v1115
          %v1117 = vrcp.pop %v1111
          %v1118 = vmul.f32 1.0, %v1117
          %v1119 = vrcp.pop %v1112
          %v1120 = vmul.f32 1.0, %v1119
          %v1121 = vxor.u32 %v929, 2147483648
          %v1122 = vxor.u32 %v930, 2147483648
          %v1123 = vxor.u32 %v931, 2147483648
          %v1124 = vxor.u32 %v932, 2147483648
          %v1125 = vmul.f32 %v1121, 1.442695
          %v1126 = vpow.pop %v1125
          %v1127 = vmul.f32 %v1122, 1.442695
          %v1128 = vpow.pop %v1127
          %v1129 = vmul.f32 %v1123, 1.442695
          %v1130 = vpow.pop %v1129
          %v1131 = vmul.f32 %v1124, 1.442695
          %v1132 = vpow.pop %v1131
          %v1133 = vadd.f32 %v1126, 1.0
          %v1134 = vadd.f32 %v1128, 1.0
          %v1135 = vadd.f32 %v1130, 1.0
          %v1136 = vadd.f32 %v1132, 1.0
          %v1137 = vrcp.pop %v1133
          %v1138 = vmul.f32 1.0, %v1137
          %v1139 = vrcp.pop %v1134
          %v1140 = vmul.f32 1.0, %v1139
          %v1141 = vrcp.pop %v1135
          %v1142 = vmul.f32 1.0, %v1141
          %v1143 = vrcp.pop %v1136
          %v1144 = vmul.f32 1.0, %v1143
          %v1145 = vtanh.pop %v1011
          %v1146 = vtanh.pop %v1012
          %v1147 = vtanh.pop %v1013
          %v1148 = vtanh.pop %v1014
          %v1149 = vxor.u32 %v1093, 2147483648
          %v1150 = vxor.u32 %v1094, 2147483648
          %v1151 = vxor.u32 %v1095, 2147483648
          %v1152 = vxor.u32 %v1096, 2147483648
          %v1153 = vmul.f32 %v1149, 1.442695
          %v1154 = vpow.pop %v1153
          %v1155 = vmul.f32 %v1150, 1.442695
          %v1156 = vpow.pop %v1155
          %v1157 = vmul.f32 %v1151, 1.442695
          %v1158 = vpow.pop %v1157
          %v1159 = vmul.f32 %v1152, 1.442695
          %v1160 = vpow.pop %v1159
          %v1161 = vadd.f32 %v1154, 1.0
          %v1162 = vadd.f32 %v1156, 1.0
          %v1163 = vadd.f32 %v1158, 1.0
          %v1164 = vadd.f32 %v1160, 1.0
          %v1165 = vrcp.pop %v1161
          %v1166 = vmul.f32 1.0, %v1165
          %v1167 = vrcp.pop %v1162
          %v1168 = vmul.f32 1.0, %v1167
          %v1169 = vrcp.pop %v1163
          %v1170 = vmul.f32 1.0, %v1169
          %v1171 = vrcp.pop %v1164
          %v1172 = vmul.f32 1.0, %v1171
          %v1174 = vrot.slane %v764, 1
          %v1175 = vrot.slane %v764, 2
          %v1176 = vrot.slane %v764, 3
          %v1181 = vmul.f32 %v1138, %v764
          %v1182 = vmul.f32 %v1140, %v1174
          %v1183 = vmul.f32 %v1142, %v1175
          %v1184 = vmul.f32 %v1144, %v1176
          %v1185 = vmul.f32 %v1114, %v1145
          %v1186 = vmul.f32 %v1116, %v1146
          %v1187 = vmul.f32 %v1118, %v1147
          %v1188 = vmul.f32 %v1120, %v1148
          %v1189 = vadd.f32 %v1181, %v1185
          %v1190 = vadd.f32 %v1182, %v1186
          %v1191 = vadd.f32 %v1183, %v1187
          %v1192 = vadd.f32 %v1184, %v1188
          %v1193 = vtanh.pop %v1189
          %v1194 = vtanh.pop %v1190
          %v1195 = vtanh.pop %v1191
          %v1196 = vtanh.pop %v1192
          %v1197 = vmul.f32 %v1166, %v1193
          %v1198 = vmul.f32 %v1168, %v1194
          %v1199 = vmul.f32 %v1170, %v1195
          %v1200 = vmul.f32 %v1172, %v1196
          %v1201 = vstv %s322
          %vm1202 = vcmp.lt.s32.totalorder %v1201, %v332
          %v1203 = vsel %vm1202, 1, 0
          %1204 = vset.pattern.permute.xlu0 0
          %1205 = vperm.xlu0 %1204, %v1203
          %v1206 = vpop.permute.xlu0 %1205
          %vm1207 = vcmp.eq.s32.totalorder %v1206, 1
          %v1212 = vrot.slane %v1198, 7
          %vm1213 = vcmask 1041409
          %v1214 = vsel %vm1213, %v1212, %v1197
          %v1215 = vrot.slane %v1199, 6
          %vm1216 = vcmask 1042434
          %v1217 = vsel %vm1216, %v1215, %v1214
          %v1218 = vrot.slane %v1200, 5
          %vm1219 = vcmask 1043459
          %v1220 = vsel %vm1219, %v1218, %v1217
          %v1222 = vsel %vm1207, %v1220, %v763
          %v1227 = vrot.slane %v1190, 7
          %v1228 = vsel %vm1213, %v1227, %v1189
          %v1229 = vrot.slane %v1191, 6
          %v1230 = vsel %vm1216, %v1229, %v1228
          %v1231 = vrot.slane %v1192, 5
          %v1232 = vsel %vm1219, %v1231, %v1230
          %v1234 = vsel %vm1207, %v1232, %v764
          %v1236 = vsel %vm765, %v1222, 0
          %1238 = vmatprep.subr.mxu0 0.0
          %1239 = vmatpush1.msra.mxu0 %v744
          %1240 = vmatprep.subr.mxu0 0.0
          %1241 = vmatpush1.msra.mxu0 %v745
          %1242 = vmatprep.subr.mxu0 0.0
          %1243 = vmatpush1.msra.mxu0 %v746
          %1244 = vmatprep.subr.mxu0 0.0
          %1245 = vmatpush1.msra.mxu0 %v747
          %1246 = vmatprep.subr.mxu0 0.0
          %1247 = vmatpush1.msra.mxu0 0.0
          %1248 = vmatprep.subr.mxu0 0.0
          %1249 = vmatpush1.msra.mxu0 0.0
          %1250 = vmatprep.subr.mxu0 0.0
          %1251 = vmatpush1.msra.mxu0 0.0
          %1252 = vmatprep.subr.mxu0 0.0
          %1253 = vmatpush1.msra.mxu0 0.0
          %1254 = vmatprep.subr.mxu0 0.0
          %1255 = vmatpush1.msra.mxu0 0.0
          %1256 = vmatprep.subr.mxu0 0.0
          %1257 = vmatpush1.msra.mxu0 0.0
          %1258 = vmatprep.subr.mxu0 0.0
          %1259 = vmatpush1.msra.mxu0 0.0
          %1260 = vmatprep.subr.mxu0 0.0
          %1261 = vmatpush1.msra.mxu0 0.0
          %1262 = vmatprep.subr.mxu0 0.0
          %1263 = vmatpush1.msra.mxu0 0.0
          %1264 = vmatprep.subr.mxu0 0.0
          %1265 = vmatpush1.msra.mxu0 0.0
          %1266 = vmatprep.subr.mxu0 0.0
          %1267 = vmatpush1.msra.mxu0 0.0
          %1268 = vmatprep.subr.mxu0 0.0
          %1269 = vmatpush1.msra.mxu0 0.0
          %1270 = vmatprep.subr.mxu0 0.0
          %1271 = vmatpush1.msra.mxu0 0.0
          %1272 = vmatprep.subr.mxu0 0.0
          %1273 = vmatpush1.msra.mxu0 0.0
          %1274 = vmatprep.subr.mxu0 0.0
          %1275 = vmatpush1.msra.mxu0 0.0
          %1276 = vmatprep.subr.mxu0 0.0
          %1277 = vmatpush1.msra.mxu0 0.0
          %1278 = vmatprep.subr.mxu0 0.0
          %1279 = vmatpush1.msra.mxu0 0.0
          %1280 = vmatprep.subr.mxu0 0.0
          %1281 = vmatpush1.msra.mxu0 0.0
          %1282 = vmatprep.subr.mxu0 0.0
          %1283 = vmatpush1.msra.mxu0 0.0
          %1284 = vmatprep.subr.mxu0 0.0
          %1285 = vmatpush1.msra.mxu0 0.0
          %1286 = vmatprep.subr.mxu0 0.0
          %1287 = vmatpush1.msra.mxu0 0.0
          %1288 = vmatprep.subr.mxu0 0.0
          %1289 = vmatpush1.msra.mxu0 0.0
          %1290 = vmatprep.subr.mxu0 0.0
          %1291 = vmatpush1.msra.mxu0 0.0
          %1292 = vmatprep.subr.mxu0 0.0
          %1293 = vmatpush1.msra.mxu0 0.0
          %1294 = vmatprep.subr.mxu0 0.0
          %1295 = vmatpush1.msra.mxu0 0.0
          %1296 = vmatprep.subr.mxu0 0.0
          %1297 = vmatpush1.msra.mxu0 0.0
          %1298 = vmatprep.subr.mxu0 0.0
          %1299 = vmatpush1.msra.mxu0 0.0
          %1300 = vmatprep.subr.mxu0 0.0
          %1301 = vmatpush1.msra.mxu0 0.0
          %1302 = vmatprep.mubr.f32.mxu0 0.0
          %1303 = vmatmul.mubr.f32.gmra.mrb[0].mxu0 %v1236
          %v1304 = vpop.f32.mrb[0].mxu0
          %v1305 = vadd.f32 0.0, %v1304
          %v1306 = vpop.f32.mrb[0].mxu0
          %1307 = vdwg.mxu0
          %v1309 = vrot.slane %v1305, 7
          %v1310 = vrot.slane %v1305, 1
          %v1311 = vrot.slane %v1305, 2
          %v1316 = vadd.f32 %v440, %v1309
          %v1317 = vadd.f32 %v441, %v1305
          %v1318 = vadd.f32 %v442, %v1310
          %v1319 = vadd.f32 %v443, %v1311
          %1320 = vmatprep.subr.mxu0 0.0
          %1321 = vmatpush1.msra.mxu0 %v749
          %1322 = vmatprep.subr.mxu0 0.0
          %1323 = vmatpush1.msra.mxu0 %v750
          %1324 = vmatprep.subr.mxu0 0.0
          %1325 = vmatpush1.msra.mxu0 %v751
          %1326 = vmatprep.subr.mxu0 0.0
          %1327 = vmatpush1.msra.mxu0 %v752
          %1328 = vmatprep.subr.mxu0 0.0
          %1329 = vmatpush1.msra.mxu0 0.0
          %1330 = vmatprep.subr.mxu0 0.0
          %1331 = vmatpush1.msra.mxu0 0.0
          %1332 = vmatprep.subr.mxu0 0.0
          %1333 = vmatpush1.msra.mxu0 0.0
          %1334 = vmatprep.subr.mxu0 0.0
          %1335 = vmatpush1.msra.mxu0 0.0
          %1336 = vmatprep.subr.mxu0 0.0
          %1337 = vmatpush1.msra.mxu0 0.0
          %1338 = vmatprep.subr.mxu0 0.0
          %1339 = vmatpush1.msra.mxu0 0.0
          %1340 = vmatprep.subr.mxu0 0.0
          %1341 = vmatpush1.msra.mxu0 0.0
          %1342 = vmatprep.subr.mxu0 0.0
          %1343 = vmatpush1.msra.mxu0 0.0
          %1344 = vmatprep.subr.mxu0 0.0
          %1345 = vmatpush1.msra.mxu0 0.0
          %1346 = vmatprep.subr.mxu0 0.0
          %1347 = vmatpush1.msra.mxu0 0.0
          %1348 = vmatprep.subr.mxu0 0.0
          %1349 = vmatpush1.msra.mxu0 0.0
          %1350 = vmatprep.subr.mxu0 0.0
          %1351 = vmatpush1.msra.mxu0 0.0
          %1352 = vmatprep.subr.mxu0 0.0
          %1353 = vmatpush1.msra.mxu0 0.0
          %1354 = vmatprep.subr.mxu0 0.0
          %1355 = vmatpush1.msra.mxu0 0.0
          %1356 = vmatprep.subr.mxu0 0.0
          %1357 = vmatpush1.msra.mxu0 0.0
          %1358 = vmatprep.subr.mxu0 0.0
          %1359 = vmatpush1.msra.mxu0 0.0
          %1360 = vmatprep.subr.mxu0 0.0
          %1361 = vmatpush1.msra.mxu0 0.0
          %1362 = vmatprep.subr.mxu0 0.0
          %1363 = vmatpush1.msra.mxu0 0.0
          %1364 = vmatprep.subr.mxu0 0.0
          %1365 = vmatpush1.msra.mxu0 0.0
          %1366 = vmatprep.subr.mxu0 0.0
          %1367 = vmatpush1.msra.mxu0 0.0
          %1368 = vmatprep.subr.mxu0 0.0
          %1369 = vmatpush1.msra.mxu0 0.0
          %1370 = vmatprep.subr.mxu0 0.0
          %1371 = vmatpush1.msra.mxu0 0.0
          %1372 = vmatprep.subr.mxu0 0.0
          %1373 = vmatpush1.msra.mxu0 0.0
          %1374 = vmatprep.subr.mxu0 0.0
          %1375 = vmatpush1.msra.mxu0 0.0
          %1376 = vmatprep.subr.mxu0 0.0
          %1377 = vmatpush1.msra.mxu0 0.0
          %1378 = vmatprep.subr.mxu0 0.0
          %1379 = vmatpush1.msra.mxu0 0.0
          %1380 = vmatprep.subr.mxu0 0.0
          %1381 = vmatpush1.msra.mxu0 0.0
          %1382 = vmatprep.subr.mxu0 0.0
          %1383 = vmatpush1.msra.mxu0 0.0
          %1384 = vmatprep.mubr.f32.mxu0 0.0
          %1385 = vmatmul.mubr.f32.gmra.mrb[0].mxu0 %v1236
          %v1386 = vpop.f32.mrb[0].mxu0
          %v1387 = vadd.f32 0.0, %v1386
          %v1388 = vpop.f32.mrb[0].mxu0
          %1389 = vdwg.mxu0
          %v1391 = vrot.slane %v1387, 7
          %v1392 = vrot.slane %v1387, 1
          %v1393 = vrot.slane %v1387, 2
          %v1398 = vadd.f32 %v540, %v1391
          %v1399 = vadd.f32 %v541, %v1387
          %v1400 = vadd.f32 %v542, %v1392
          %v1401 = vadd.f32 %v543, %v1393
          %1402 = vmatprep.subr.mxu0 0.0
          %1403 = vmatpush1.msra.mxu0 %v754
          %1404 = vmatprep.subr.mxu0 0.0
          %1405 = vmatpush1.msra.mxu0 %v755
          %1406 = vmatprep.subr.mxu0 0.0
          %1407 = vmatpush1.msra.mxu0 %v756
          %1408 = vmatprep.subr.mxu0 0.0
          %1409 = vmatpush1.msra.mxu0 %v757
          %1410 = vmatprep.subr.mxu0 0.0
          %1411 = vmatpush1.msra.mxu0 0.0
          %1412 = vmatprep.subr.mxu0 0.0
          %1413 = vmatpush1.msra.mxu0 0.0
          %1414 = vmatprep.subr.mxu0 0.0
          %1415 = vmatpush1.msra.mxu0 0.0
          %1416 = vmatprep.subr.mxu0 0.0
          %1417 = vmatpush1.msra.mxu0 0.0
          %1418 = vmatprep.subr.mxu0 0.0
          %1419 = vmatpush1.msra.mxu0 0.0
          %1420 = vmatprep.subr.mxu0 0.0
          %1421 = vmatpush1.msra.mxu0 0.0
          %1422 = vmatprep.subr.mxu0 0.0
          %1423 = vmatpush1.msra.mxu0 0.0
          %1424 = vmatprep.subr.mxu0 0.0
          %1425 = vmatpush1.msra.mxu0 0.0
          %1426 = vmatprep.subr.mxu0 0.0
          %1427 = vmatpush1.msra.mxu0 0.0
          %1428 = vmatprep.subr.mxu0 0.0
          %1429 = vmatpush1.msra.mxu0 0.0
          %1430 = vmatprep.subr.mxu0 0.0
          %1431 = vmatpush1.msra.mxu0 0.0
          %1432 = vmatprep.subr.mxu0 0.0
          %1433 = vmatpush1.msra.mxu0 0.0
          %1434 = vmatprep.subr.mxu0 0.0
          %1435 = vmatpush1.msra.mxu0 0.0
          %1436 = vmatprep.subr.mxu0 0.0
          %1437 = vmatpush1.msra.mxu0 0.0
          %1438 = vmatprep.subr.mxu0 0.0
          %1439 = vmatpush1.msra.mxu0 0.0
          %1440 = vmatprep.subr.mxu0 0.0
          %1441 = vmatpush1.msra.mxu0 0.0
          %1442 = vmatprep.subr.mxu0 0.0
          %1443 = vmatpush1.msra.mxu0 0.0
          %1444 = vmatprep.subr.mxu0 0.0
          %1445 = vmatpush1.msra.mxu0 0.0
          %1446 = vmatprep.subr.mxu0 0.0
          %1447 = vmatpush1.msra.mxu0 0.0
          %1448 = vmatprep.subr.mxu0 0.0
          %1449 = vmatpush1.msra.mxu0 0.0
          %1450 = vmatprep.subr.mxu0 0.0
          %1451 = vmatpush1.msra.mxu0 0.0
          %1452 = vmatprep.subr.mxu0 0.0
          %1453 = vmatpush1.msra.mxu0 0.0
          %1454 = vmatprep.subr.mxu0 0.0
          %1455 = vmatpush1.msra.mxu0 0.0
          %1456 = vmatprep.subr.mxu0 0.0
          %1457 = vmatpush1.msra.mxu0 0.0
          %1458 = vmatprep.subr.mxu0 0.0
          %1459 = vmatpush1.msra.mxu0 0.0
          %1460 = vmatprep.subr.mxu0 0.0
          %1461 = vmatpush1.msra.mxu0 0.0
          %1462 = vmatprep.subr.mxu0 0.0
          %1463 = vmatpush1.msra.mxu0 0.0
          %1464 = vmatprep.subr.mxu0 0.0
          %1465 = vmatpush1.msra.mxu0 0.0
          %1466 = vmatprep.mubr.f32.mxu0 0.0
          %1467 = vmatmul.mubr.f32.gmra.mrb[0].mxu0 %v1236
          %v1468 = vpop.f32.mrb[0].mxu0
          %v1469 = vadd.f32 0.0, %v1468
          %v1470 = vpop.f32.mrb[0].mxu0
          %1471 = vdwg.mxu0
          %v1473 = vrot.slane %v1469, 7
          %v1474 = vrot.slane %v1469, 1
          %v1475 = vrot.slane %v1469, 2
          %v1480 = vadd.f32 %v640, %v1473
          %v1481 = vadd.f32 %v641, %v1469
          %v1482 = vadd.f32 %v642, %v1474
          %v1483 = vadd.f32 %v643, %v1475
          %1484 = vmatprep.subr.mxu0 0.0
          %1485 = vmatpush1.msra.mxu0 %v759
          %1486 = vmatprep.subr.mxu0 0.0
          %1487 = vmatpush1.msra.mxu0 %v760
          %1488 = vmatprep.subr.mxu0 0.0
          %1489 = vmatpush1.msra.mxu0 %v761
          %1490 = vmatprep.subr.mxu0 0.0
          %1491 = vmatpush1.msra.mxu0 %v762
          %1492 = vmatprep.subr.mxu0 0.0
          %1493 = vmatpush1.msra.mxu0 0.0
          %1494 = vmatprep.subr.mxu0 0.0
          %1495 = vmatpush1.msra.mxu0 0.0
          %1496 = vmatprep.subr.mxu0 0.0
          %1497 = vmatpush1.msra.mxu0 0.0
          %1498 = vmatprep.subr.mxu0 0.0
          %1499 = vmatpush1.msra.mxu0 0.0
          %1500 = vmatprep.subr.mxu0 0.0
          %1501 = vmatpush1.msra.mxu0 0.0
          %1502 = vmatprep.subr.mxu0 0.0
          %1503 = vmatpush1.msra.mxu0 0.0
          %1504 = vmatprep.subr.mxu0 0.0
          %1505 = vmatpush1.msra.mxu0 0.0
          %1506 = vmatprep.subr.mxu0 0.0
          %1507 = vmatpush1.msra.mxu0 0.0
          %1508 = vmatprep.subr.mxu0 0.0
          %1509 = vmatpush1.msra.mxu0 0.0
          %1510 = vmatprep.subr.mxu0 0.0
          %1511 = vmatpush1.msra.mxu0 0.0
          %1512 = vmatprep.subr.mxu0 0.0
          %1513 = vmatpush1.msra.mxu0 0.0
          %1514 = vmatprep.subr.mxu0 0.0
          %1515 = vmatpush1.msra.mxu0 0.0
          %1516 = vmatprep.subr.mxu0 0.0
          %1517 = vmatpush1.msra.mxu0 0.0
          %1518 = vmatprep.subr.mxu0 0.0
          %1519 = vmatpush1.msra.mxu0 0.0
          %1520 = vmatprep.subr.mxu0 0.0
          %1521 = vmatpush1.msra.mxu0 0.0
          %1522 = vmatprep.subr.mxu0 0.0
          %1523 = vmatpush1.msra.mxu0 0.0
          %1524 = vmatprep.subr.mxu0 0.0
          %1525 = vmatpush1.msra.mxu0 0.0
          %1526 = vmatprep.subr.mxu0 0.0
          %1527 = vmatpush1.msra.mxu0 0.0
          %1528 = vmatprep.subr.mxu0 0.0
          %1529 = vmatpush1.msra.mxu0 0.0
          %1530 = vmatprep.subr.mxu0 0.0
          %1531 = vmatpush1.msra.mxu0 0.0
          %1532 = vmatprep.subr.mxu0 0.0
          %1533 = vmatpush1.msra.mxu0 0.0
          %1534 = vmatprep.subr.mxu0 0.0
          %1535 = vmatpush1.msra.mxu0 0.0
          %1536 = vmatprep.subr.mxu0 0.0
          %1537 = vmatpush1.msra.mxu0 0.0
          %1538 = vmatprep.subr.mxu0 0.0
          %1539 = vmatpush1.msra.mxu0 0.0
          %1540 = vmatprep.subr.mxu0 0.0
          %1541 = vmatpush1.msra.mxu0 0.0
          %1542 = vmatprep.subr.mxu0 0.0
          %1543 = vmatpush1.msra.mxu0 0.0
          %1544 = vmatprep.subr.mxu0 0.0
          %1545 = vmatpush1.msra.mxu0 0.0
          %1546 = vmatprep.subr.mxu0 0.0
          %1547 = vmatpush1.msra.mxu0 0.0
          %1548 = vmatprep.mubr.f32.mxu0 0.0
          %1549 = vmatmul.mubr.f32.gmra.mrb[0].mxu0 %v1236
          %v1550 = vpop.f32.mrb[0].mxu0
          %v1551 = vadd.f32 0.0, %v1550
          %v1552 = vpop.f32.mrb[0].mxu0
          %1553 = vdwg.mxu0
          %v1555 = vrot.slane %v1551, 7
          %v1556 = vrot.slane %v1551, 1
          %v1557 = vrot.slane %v1551, 2
          %v1562 = vadd.f32 %v740, %v1555
          %v1563 = vadd.f32 %v741, %v1551
          %v1564 = vadd.f32 %v742, %v1556
          %v1565 = vadd.f32 %v743, %v1557
          %v1566 = vxor.u32 %v1316, 2147483648
          %v1567 = vxor.u32 %v1317, 2147483648
          %v1568 = vxor.u32 %v1318, 2147483648
          %v1569 = vxor.u32 %v1319, 2147483648
          %v1570 = vmul.f32 %v1566, 1.442695
          %v1571 = vpow.pop %v1570
          %v1572 = vmul.f32 %v1567, 1.442695
          %v1573 = vpow.pop %v1572
          %v1574 = vmul.f32 %v1568, 1.442695
          %v1575 = vpow.pop %v1574
          %v1576 = vmul.f32 %v1569, 1.442695
          %v1577 = vpow.pop %v1576
          %v1578 = vadd.f32 %v1571, 1.0
          %v1579 = vadd.f32 %v1573, 1.0
          %v1580 = vadd.f32 %v1575, 1.0
          %v1581 = vadd.f32 %v1577, 1.0
          %v1582 = vrcp.pop %v1578
          %v1583 = vmul.f32 1.0, %v1582
          %v1584 = vrcp.pop %v1579
          %v1585 = vmul.f32 1.0, %v1584
          %v1586 = vrcp.pop %v1580
          %v1587 = vmul.f32 1.0, %v1586
          %v1588 = vrcp.pop %v1581
          %v1589 = vmul.f32 1.0, %v1588
          %v1590 = vxor.u32 %v1398, 2147483648
          %v1591 = vxor.u32 %v1399, 2147483648
          %v1592 = vxor.u32 %v1400, 2147483648
          %v1593 = vxor.u32 %v1401, 2147483648
          %v1594 = vmul.f32 %v1590, 1.442695
          %v1595 = vpow.pop %v1594
          %v1596 = vmul.f32 %v1591, 1.442695
          %v1597 = vpow.pop %v1596
          %v1598 = vmul.f32 %v1592, 1.442695
          %v1599 = vpow.pop %v1598
          %v1600 = vmul.f32 %v1593, 1.442695
          %v1601 = vpow.pop %v1600
          %v1602 = vadd.f32 %v1595, 1.0
          %v1603 = vadd.f32 %v1597, 1.0
          %v1604 = vadd.f32 %v1599, 1.0
          %v1605 = vadd.f32 %v1601, 1.0
          %v1606 = vrcp.pop %v1602
          %v1607 = vmul.f32 1.0, %v1606
          %v1608 = vrcp.pop %v1603
          %v1609 = vmul.f32 1.0, %v1608
          %v1610 = vrcp.pop %v1604
          %v1611 = vmul.f32 1.0, %v1610
          %v1612 = vrcp.pop %v1605
          %v1613 = vmul.f32 1.0, %v1612
          %v1614 = vtanh.pop %v1480
          %v1615 = vtanh.pop %v1481
          %v1616 = vtanh.pop %v1482
          %v1617 = vtanh.pop %v1483
          %v1618 = vxor.u32 %v1562, 2147483648
          %v1619 = vxor.u32 %v1563, 2147483648
          %v1620 = vxor.u32 %v1564, 2147483648
          %v1621 = vxor.u32 %v1565, 2147483648
          %v1622 = vmul.f32 %v1618, 1.442695
          %v1623 = vpow.pop %v1622
          %v1624 = vmul.f32 %v1619, 1.442695
          %v1625 = vpow.pop %v1624
          %v1626 = vmul.f32 %v1620, 1.442695
          %v1627 = vpow.pop %v1626
          %v1628 = vmul.f32 %v1621, 1.442695
          %v1629 = vpow.pop %v1628
          %v1630 = vadd.f32 %v1623, 1.0
          %v1631 = vadd.f32 %v1625, 1.0
          %v1632 = vadd.f32 %v1627, 1.0
          %v1633 = vadd.f32 %v1629, 1.0
          %v1634 = vrcp.pop %v1630
          %v1635 = vmul.f32 1.0, %v1634
          %v1636 = vrcp.pop %v1631
          %v1637 = vmul.f32 1.0, %v1636
          %v1638 = vrcp.pop %v1632
          %v1639 = vmul.f32 1.0, %v1638
          %v1640 = vrcp.pop %v1633
          %v1641 = vmul.f32 1.0, %v1640
          %v1643 = vrot.slane %v1234, 7
          %v1644 = vrot.slane %v1234, 1
          %v1645 = vrot.slane %v1234, 2
          %v1650 = vmul.f32 %v1607, %v1643
          %v1651 = vmul.f32 %v1609, %v1234
          %v1652 = vmul.f32 %v1611, %v1644
          %v1653 = vmul.f32 %v1613, %v1645
          %v1654 = vmul.f32 %v1583, %v1614
          %v1655 = vmul.f32 %v1585, %v1615
          %v1656 = vmul.f32 %v1587, %v1616
          %v1657 = vmul.f32 %v1589, %v1617
          %v1658 = vadd.f32 %v1650, %v1654
          %v1659 = vadd.f32 %v1651, %v1655
          %v1660 = vadd.f32 %v1652, %v1656
          %v1661 = vadd.f32 %v1653, %v1657
          %v1662 = vtanh.pop %v1658
          %v1663 = vtanh.pop %v1659
          %v1664 = vtanh.pop %v1660
          %v1665 = vtanh.pop %v1661
          %v1666 = vmul.f32 %v1635, %v1662
          %v1667 = vmul.f32 %v1637, %v1663
          %v1668 = vmul.f32 %v1639, %v1664
          %v1669 = vmul.f32 %v1641, %v1665
          %s1670 = sadd.s32 %s322, 1
          %v1671 = vstv %s1670
          %vm1672 = vcmp.lt.s32.totalorder %v1671, %v332
          %v1673 = vsel %vm1672, 1, 0
          %1674 = vset.pattern.permute.xlu0 0
          %1675 = vperm.xlu0 %1674, %v1673
          %v1676 = vpop.permute.xlu0 %1675
          %vm1677 = vcmp.eq.s32.totalorder %v1676, 1
          %v1682 = vrot.slane %v1666, 1
          %v1683 = vsel %vm1213, %v1667, %v1682
          %v1684 = vrot.slane %v1668, 7
          %v1685 = vsel %vm1216, %v1684, %v1683
          %v1686 = vrot.slane %v1669, 6
          %v1687 = vsel %vm1219, %v1686, %v1685
          %v1689 = vsel %vm1677, %v1687, %v1222
          %v1694 = vrot.slane %v1658, 1
          %v1695 = vsel %vm1213, %v1659, %v1694
          %v1696 = vrot.slane %v1660, 7
          %v1697 = vsel %vm1216, %v1696, %v1695
          %v1698 = vrot.slane %v1661, 6
          %v1699 = vsel %vm1219, %v1698, %v1697
          %v1701 = vsel %vm1677, %v1699, %v1234
          %v1703 = vsel %vm765, %v1689, 0
          %1705 = vmatprep.subr.mxu0 0.0
          %1706 = vmatpush1.msra.mxu0 %v744
          %1707 = vmatprep.subr.mxu0 0.0
          %1708 = vmatpush1.msra.mxu0 %v745
          %1709 = vmatprep.subr.mxu0 0.0
          %1710 = vmatpush1.msra.mxu0 %v746
          %1711 = vmatprep.subr.mxu0 0.0
          %1712 = vmatpush1.msra.mxu0 %v747
          %1713 = vmatprep.subr.mxu0 0.0
          %1714 = vmatpush1.msra.mxu0 0.0
          %1715 = vmatprep.subr.mxu0 0.0
          %1716 = vmatpush1.msra.mxu0 0.0
          %1717 = vmatprep.subr.mxu0 0.0
          %1718 = vmatpush1.msra.mxu0 0.0
          %1719 = vmatprep.subr.mxu0 0.0
          %1720 = vmatpush1.msra.mxu0 0.0
          %1721 = vmatprep.subr.mxu0 0.0
          %1722 = vmatpush1.msra.mxu0 0.0
          %1723 = vmatprep.subr.mxu0 0.0
          %1724 = vmatpush1.msra.mxu0 0.0
          %1725 = vmatprep.subr.mxu0 0.0
          %1726 = vmatpush1.msra.mxu0 0.0
          %1727 = vmatprep.subr.mxu0 0.0
          %1728 = vmatpush1.msra.mxu0 0.0
          %1729 = vmatprep.subr.mxu0 0.0
          %1730 = vmatpush1.msra.mxu0 0.0
          %1731 = vmatprep.subr.mxu0 0.0
          %1732 = vmatpush1.msra.mxu0 0.0
          %1733 = vmatprep.subr.mxu0 0.0
          %1734 = vmatpush1.msra.mxu0 0.0
          %1735 = vmatprep.subr.mxu0 0.0
          %1736 = vmatpush1.msra.mxu0 0.0
          %1737 = vmatprep.subr.mxu0 0.0
          %1738 = vmatpush1.msra.mxu0 0.0
          %1739 = vmatprep.subr.mxu0 0.0
          %1740 = vmatpush1.msra.mxu0 0.0
          %1741 = vmatprep.subr.mxu0 0.0
          %1742 = vmatpush1.msra.mxu0 0.0
          %1743 = vmatprep.subr.mxu0 0.0
          %1744 = vmatpush1.msra.mxu0 0.0
          %1745 = vmatprep.subr.mxu0 0.0
          %1746 = vmatpush1.msra.mxu0 0.0
          %1747 = vmatprep.subr.mxu0 0.0
          %1748 = vmatpush1.msra.mxu0 0.0
          %1749 = vmatprep.subr.mxu0 0.0
          %1750 = vmatpush1.msra.mxu0 0.0
          %1751 = vmatprep.subr.mxu0 0.0
          %1752 = vmatpush1.msra.mxu0 0.0
          %1753 = vmatprep.subr.mxu0 0.0
          %1754 = vmatpush1.msra.mxu0 0.0
          %1755 = vmatprep.subr.mxu0 0.0
          %1756 = vmatpush1.msra.mxu0 0.0
          %1757 = vmatprep.subr.mxu0 0.0
          %1758 = vmatpush1.msra.mxu0 0.0
          %1759 = vmatprep.subr.mxu0 0.0
          %1760 = vmatpush1.msra.mxu0 0.0
          %1761 = vmatprep.subr.mxu0 0.0
          %1762 = vmatpush1.msra.mxu0 0.0
          %1763 = vmatprep.subr.mxu0 0.0
          %1764 = vmatpush1.msra.mxu0 0.0
          %1765 = vmatprep.subr.mxu0 0.0
          %1766 = vmatpush1.msra.mxu0 0.0
          %1767 = vmatprep.subr.mxu0 0.0
          %1768 = vmatpush1.msra.mxu0 0.0
          %1769 = vmatprep.mubr.f32.mxu0 0.0
          %1770 = vmatmul.mubr.f32.gmra.mrb[0].mxu0 %v1703
          %v1771 = vpop.f32.mrb[0].mxu0
          %v1772 = vadd.f32 0.0, %v1771
          %v1773 = vpop.f32.mrb[0].mxu0
          %1774 = vdwg.mxu0
          %v1776 = vrot.slane %v1772, 6
          %v1777 = vrot.slane %v1772, 7
          %v1778 = vrot.slane %v1772, 1
          %v1783 = vadd.f32 %v440, %v1776
          %v1784 = vadd.f32 %v441, %v1777
          %v1785 = vadd.f32 %v442, %v1772
          %v1786 = vadd.f32 %v443, %v1778
          %1787 = vmatprep.subr.mxu0 0.0
          %1788 = vmatpush1.msra.mxu0 %v749
          %1789 = vmatprep.subr.mxu0 0.0
          %1790 = vmatpush1.msra.mxu0 %v750
          %1791 = vmatprep.subr.mxu0 0.0
          %1792 = vmatpush1.msra.mxu0 %v751
          %1793 = vmatprep.subr.mxu0 0.0
          %1794 = vmatpush1.msra.mxu0 %v752
          %1795 = vmatprep.subr.mxu0 0.0
          %1796 = vmatpush1.msra.mxu0 0.0
          %1797 = vmatprep.subr.mxu0 0.0
          %1798 = vmatpush1.msra.mxu0 0.0
          %1799 = vmatprep.subr.mxu0 0.0
          %1800 = vmatpush1.msra.mxu0 0.0
          %1801 = vmatprep.subr.mxu0 0.0
          %1802 = vmatpush1.msra.mxu0 0.0
          %1803 = vmatprep.subr.mxu0 0.0
          %1804 = vmatpush1.msra.mxu0 0.0
          %1805 = vmatprep.subr.mxu0 0.0
          %1806 = vmatpush1.msra.mxu0 0.0
          %1807 = vmatprep.subr.mxu0 0.0
          %1808 = vmatpush1.msra.mxu0 0.0
          %1809 = vmatprep.subr.mxu0 0.0
          %1810 = vmatpush1.msra.mxu0 0.0
          %1811 = vmatprep.subr.mxu0 0.0
          %1812 = vmatpush1.msra.mxu0 0.0
          %1813 = vmatprep.subr.mxu0 0.0
          %1814 = vmatpush1.msra.mxu0 0.0
          %1815 = vmatprep.subr.mxu0 0.0
          %1816 = vmatpush1.msra.mxu0 0.0
          %1817 = vmatprep.subr.mxu0 0.0
          %1818 = vmatpush1.msra.mxu0 0.0
          %1819 = vmatprep.subr.mxu0 0.0
          %1820 = vmatpush1.msra.mxu0 0.0
          %1821 = vmatprep.subr.mxu0 0.0
          %1822 = vmatpush1.msra.mxu0 0.0
          %1823 = vmatprep.subr.mxu0 0.0
          %1824 = vmatpush1.msra.mxu0 0.0
          %1825 = vmatprep.subr.mxu0 0.0
          %1826 = vmatpush1.msra.mxu0 0.0
          %1827 = vmatprep.subr.mxu0 0.0
          %1828 = vmatpush1.msra.mxu0 0.0
          %1829 = vmatprep.subr.mxu0 0.0
          %1830 = vmatpush1.msra.mxu0 0.0
          %1831 = vmatprep.subr.mxu0 0.0
          %1832 = vmatpush1.msra.mxu0 0.0
          %1833 = vmatprep.subr.mxu0 0.0
          %1834 = vmatpush1.msra.mxu0 0.0
          %1835 = vmatprep.subr.mxu0 0.0
          %1836 = vmatpush1.msra.mxu0 0.0
          %1837 = vmatprep.subr.mxu0 0.0
          %1838 = vmatpush1.msra.mxu0 0.0
          %1839 = vmatprep.subr.mxu0 0.0
          %1840 = vmatpush1.msra.mxu0 0.0
          %1841 = vmatprep.subr.mxu0 0.0
          %1842 = vmatpush1.msra.mxu0 0.0
          %1843 = vmatprep.subr.mxu0 0.0
          %1844 = vmatpush1.msra.mxu0 0.0
          %1845 = vmatprep.subr.mxu0 0.0
          %1846 = vmatpush1.msra.mxu0 0.0
          %1847 = vmatprep.subr.mxu0 0.0
          %1848 = vmatpush1.msra.mxu0 0.0
          %1849 = vmatprep.subr.mxu0 0.0
          %1850 = vmatpush1.msra.mxu0 0.0
          %1851 = vmatprep.mubr.f32.mxu0 0.0
          %1852 = vmatmul.mubr.f32.gmra.mrb[0].mxu0 %v1703
          %v1853 = vpop.f32.mrb[0].mxu0
          %v1854 = vadd.f32 0.0, %v1853
          %v1855 = vpop.f32.mrb[0].mxu0
          %1856 = vdwg.mxu0
          %v1858 = vrot.slane %v1854, 6
          %v1859 = vrot.slane %v1854, 7
          %v1860 = vrot.slane %v1854, 1
          %v1865 = vadd.f32 %v540, %v1858
          %v1866 = vadd.f32 %v541, %v1859
          %v1867 = vadd.f32 %v542, %v1854
          %v1868 = vadd.f32 %v543, %v1860
          %1869 = vmatprep.subr.mxu0 0.0
          %1870 = vmatpush1.msra.mxu0 %v754
          %1871 = vmatprep.subr.mxu0 0.0
          %1872 = vmatpush1.msra.mxu0 %v755
          %1873 = vmatprep.subr.mxu0 0.0
          %1874 = vmatpush1.msra.mxu0 %v756
          %1875 = vmatprep.subr.mxu0 0.0
          %1876 = vmatpush1.msra.mxu0 %v757
          %1877 = vmatprep.subr.mxu0 0.0
          %1878 = vmatpush1.msra.mxu0 0.0
          %1879 = vmatprep.subr.mxu0 0.0
          %1880 = vmatpush1.msra.mxu0 0.0
          %1881 = vmatprep.subr.mxu0 0.0
          %1882 = vmatpush1.msra.mxu0 0.0
          %1883 = vmatprep.subr.mxu0 0.0
          %1884 = vmatpush1.msra.mxu0 0.0
          %1885 = vmatprep.subr.mxu0 0.0
          %1886 = vmatpush1.msra.mxu0 0.0
          %1887 = vmatprep.subr.mxu0 0.0
          %1888 = vmatpush1.msra.mxu0 0.0
          %1889 = vmatprep.subr.mxu0 0.0
          %1890 = vmatpush1.msra.mxu0 0.0
          %1891 = vmatprep.subr.mxu0 0.0
          %1892 = vmatpush1.msra.mxu0 0.0
          %1893 = vmatprep.subr.mxu0 0.0
          %1894 = vmatpush1.msra.mxu0 0.0
          %1895 = vmatprep.subr.mxu0 0.0
          %1896 = vmatpush1.msra.mxu0 0.0
          %1897 = vmatprep.subr.mxu0 0.0
          %1898 = vmatpush1.msra.mxu0 0.0
          %1899 = vmatprep.subr.mxu0 0.0
          %1900 = vmatpush1.msra.mxu0 0.0
          %1901 = vmatprep.subr.mxu0 0.0
          %1902 = vmatpush1.msra.mxu0 0.0
          %1903 = vmatprep.subr.mxu0 0.0
          %1904 = vmatpush1.msra.mxu0 0.0
          %1905 = vmatprep.subr.mxu0 0.0
          %1906 = vmatpush1.msra.mxu0 0.0
          %1907 = vmatprep.subr.mxu0 0.0
          %1908 = vmatpush1.msra.mxu0 0.0
          %1909 = vmatprep.subr.mxu0 0.0
          %1910 = vmatpush1.msra.mxu0 0.0
          %1911 = vmatprep.subr.mxu0 0.0
          %1912 = vmatpush1.msra.mxu0 0.0
          %1913 = vmatprep.subr.mxu0 0.0
          %1914 = vmatpush1.msra.mxu0 0.0
          %1915 = vmatprep.subr.mxu0 0.0
          %1916 = vmatpush1.msra.mxu0 0.0
          %1917 = vmatprep.subr.mxu0 0.0
          %1918 = vmatpush1.msra.mxu0 0.0
          %1919 = vmatprep.subr.mxu0 0.0
          %1920 = vmatpush1.msra.mxu0 0.0
          %1921 = vmatprep.subr.mxu0 0.0
          %1922 = vmatpush1.msra.mxu0 0.0
          %1923 = vmatprep.subr.mxu0 0.0
          %1924 = vmatpush1.msra.mxu0 0.0
          %1925 = vmatprep.subr.mxu0 0.0
          %1926 = vmatpush1.msra.mxu0 0.0
          %1927 = vmatprep.subr.mxu0 0.0
          %1928 = vmatpush1.msra.mxu0 0.0
          %1929 = vmatprep.subr.mxu0 0.0
          %1930 = vmatpush1.msra.mxu0 0.0
          %1931 = vmatprep.subr.mxu0 0.0
          %1932 = vmatpush1.msra.mxu0 0.0
          %1933 = vmatprep.mubr.f32.mxu0 0.0
          %1934 = vmatmul.mubr.f32.gmra.mrb[0].mxu0 %v1703
          %v1935 = vpop.f32.mrb[0].mxu0
          %v1936 = vadd.f32 0.0, %v1935
          %v1937 = vpop.f32.mrb[0].mxu0
          %1938 = vdwg.mxu0
          %v1940 = vrot.slane %v1936, 6
          %v1941 = vrot.slane %v1936, 7
          %v1942 = vrot.slane %v1936, 1
          %v1947 = vadd.f32 %v640, %v1940
          %v1948 = vadd.f32 %v641, %v1941
          %v1949 = vadd.f32 %v642, %v1936
          %v1950 = vadd.f32 %v643, %v1942
          %1951 = vmatprep.subr.mxu0 0.0
          %1952 = vmatpush1.msra.mxu0 %v759
          %1953 = vmatprep.subr.mxu0 0.0
          %1954 = vmatpush1.msra.mxu0 %v760
          %1955 = vmatprep.subr.mxu0 0.0
          %1956 = vmatpush1.msra.mxu0 %v761
          %1957 = vmatprep.subr.mxu0 0.0
          %1958 = vmatpush1.msra.mxu0 %v762
          %1959 = vmatprep.subr.mxu0 0.0
          %1960 = vmatpush1.msra.mxu0 0.0
          %1961 = vmatprep.subr.mxu0 0.0
          %1962 = vmatpush1.msra.mxu0 0.0
          %1963 = vmatprep.subr.mxu0 0.0
          %1964 = vmatpush1.msra.mxu0 0.0
          %1965 = vmatprep.subr.mxu0 0.0
          %1966 = vmatpush1.msra.mxu0 0.0
          %1967 = vmatprep.subr.mxu0 0.0
          %1968 = vmatpush1.msra.mxu0 0.0
          %1969 = vmatprep.subr.mxu0 0.0
          %1970 = vmatpush1.msra.mxu0 0.0
          %1971 = vmatprep.subr.mxu0 0.0
          %1972 = vmatpush1.msra.mxu0 0.0
          %1973 = vmatprep.subr.mxu0 0.0
          %1974 = vmatpush1.msra.mxu0 0.0
          %1975 = vmatprep.subr.mxu0 0.0
          %1976 = vmatpush1.msra.mxu0 0.0
          %1977 = vmatprep.subr.mxu0 0.0
          %1978 = vmatpush1.msra.mxu0 0.0
          %1979 = vmatprep.subr.mxu0 0.0
          %1980 = vmatpush1.msra.mxu0 0.0
          %1981 = vmatprep.subr.mxu0 0.0
          %1982 = vmatpush1.msra.mxu0 0.0
          %1983 = vmatprep.subr.mxu0 0.0
          %1984 = vmatpush1.msra.mxu0 0.0
          %1985 = vmatprep.subr.mxu0 0.0
          %1986 = vmatpush1.msra.mxu0 0.0
          %1987 = vmatprep.subr.mxu0 0.0
          %1988 = vmatpush1.msra.mxu0 0.0
          %1989 = vmatprep.subr.mxu0 0.0
          %1990 = vmatpush1.msra.mxu0 0.0
          %1991 = vmatprep.subr.mxu0 0.0
          %1992 = vmatpush1.msra.mxu0 0.0
          %1993 = vmatprep.subr.mxu0 0.0
          %1994 = vmatpush1.msra.mxu0 0.0
          %1995 = vmatprep.subr.mxu0 0.0
          %1996 = vmatpush1.msra.mxu0 0.0
          %1997 = vmatprep.subr.mxu0 0.0
          %1998 = vmatpush1.msra.mxu0 0.0
          %1999 = vmatprep.subr.mxu0 0.0
          %2000 = vmatpush1.msra.mxu0 0.0
          %2001 = vmatprep.subr.mxu0 0.0
          %2002 = vmatpush1.msra.mxu0 0.0
          %2003 = vmatprep.subr.mxu0 0.0
          %2004 = vmatpush1.msra.mxu0 0.0
          %2005 = vmatprep.subr.mxu0 0.0
          %2006 = vmatpush1.msra.mxu0 0.0
          %2007 = vmatprep.subr.mxu0 0.0
          %2008 = vmatpush1.msra.mxu0 0.0
          %2009 = vmatprep.subr.mxu0 0.0
          %2010 = vmatpush1.msra.mxu0 0.0
          %2011 = vmatprep.subr.mxu0 0.0
          %2012 = vmatpush1.msra.mxu0 0.0
          %2013 = vmatprep.subr.mxu0 0.0
          %2014 = vmatpush1.msra.mxu0 0.0
          %2015 = vmatprep.mubr.f32.mxu0 0.0
          %2016 = vmatmul.mubr.f32.gmra.mrb[0].mxu0 %v1703
          %v2017 = vpop.f32.mrb[0].mxu0
          %v2018 = vadd.f32 0.0, %v2017
          %v2019 = vpop.f32.mrb[0].mxu0
          %2020 = vdwg.mxu0
          %v2022 = vrot.slane %v2018, 6
          %v2023 = vrot.slane %v2018, 7
          %v2024 = vrot.slane %v2018, 1
          %v2029 = vadd.f32 %v740, %v2022
          %v2030 = vadd.f32 %v741, %v2023
          %v2031 = vadd.f32 %v742, %v2018
          %v2032 = vadd.f32 %v743, %v2024
          %v2033 = vxor.u32 %v1783, 2147483648
          %v2034 = vxor.u32 %v1784, 2147483648
          %v2035 = vxor.u32 %v1785, 2147483648
          %v2036 = vxor.u32 %v1786, 2147483648
          %v2037 = vmul.f32 %v2033, 1.442695
          %v2038 = vpow.pop %v2037
          %v2039 = vmul.f32 %v2034, 1.442695
          %v2040 = vpow.pop %v2039
          %v2041 = vmul.f32 %v2035, 1.442695
          %v2042 = vpow.pop %v2041
          %v2043 = vmul.f32 %v2036, 1.442695
          %v2044 = vpow.pop %v2043
          %v2045 = vadd.f32 %v2038, 1.0
          %v2046 = vadd.f32 %v2040, 1.0
          %v2047 = vadd.f32 %v2042, 1.0
          %v2048 = vadd.f32 %v2044, 1.0
          %v2049 = vrcp.pop %v2045
          %v2050 = vmul.f32 1.0, %v2049
          %v2051 = vrcp.pop %v2046
          %v2052 = vmul.f32 1.0, %v2051
          %v2053 = vrcp.pop %v2047
          %v2054 = vmul.f32 1.0, %v2053
          %v2055 = vrcp.pop %v2048
          %v2056 = vmul.f32 1.0, %v2055
          %v2057 = vxor.u32 %v1865, 2147483648
          %v2058 = vxor.u32 %v1866, 2147483648
          %v2059 = vxor.u32 %v1867, 2147483648
          %v2060 = vxor.u32 %v1868, 2147483648
          %v2061 = vmul.f32 %v2057, 1.442695
          %v2062 = vpow.pop %v2061
          %v2063 = vmul.f32 %v2058, 1.442695
          %v2064 = vpow.pop %v2063
          %v2065 = vmul.f32 %v2059, 1.442695
          %v2066 = vpow.pop %v2065
          %v2067 = vmul.f32 %v2060, 1.442695
          %v2068 = vpow.pop %v2067
          %v2069 = vadd.f32 %v2062, 1.0
          %v2070 = vadd.f32 %v2064, 1.0
          %v2071 = vadd.f32 %v2066, 1.0
          %v2072 = vadd.f32 %v2068, 1.0
          %v2073 = vrcp.pop %v2069
          %v2074 = vmul.f32 1.0, %v2073
          %v2075 = vrcp.pop %v2070
          %v2076 = vmul.f32 1.0, %v2075
          %v2077 = vrcp.pop %v2071
          %v2078 = vmul.f32 1.0, %v2077
          %v2079 = vrcp.pop %v2072
          %v2080 = vmul.f32 1.0, %v2079
          %v2081 = vtanh.pop %v1947
          %v2082 = vtanh.pop %v1948
          %v2083 = vtanh.pop %v1949
          %v2084 = vtanh.pop %v1950
          %v2085 = vxor.u32 %v2029, 2147483648
          %v2086 = vxor.u32 %v2030, 2147483648
          %v2087 = vxor.u32 %v2031, 2147483648
          %v2088 = vxor.u32 %v2032, 2147483648
          %v2089 = vmul.f32 %v2085, 1.442695
          %v2090 = vpow.pop %v2089
          %v2091 = vmul.f32 %v2086, 1.442695
          %v2092 = vpow.pop %v2091
          %v2093 = vmul.f32 %v2087, 1.442695
          %v2094 = vpow.pop %v2093
          %v2095 = vmul.f32 %v2088, 1.442695
          %v2096 = vpow.pop %v2095
          %v2097 = vadd.f32 %v2090, 1.0
          %v2098 = vadd.f32 %v2092, 1.0
          %v2099 = vadd.f32 %v2094, 1.0
          %v2100 = vadd.f32 %v2096, 1.0
          %v2101 = vrcp.pop %v2097
          %v2102 = vmul.f32 1.0, %v2101
          %v2103 = vrcp.pop %v2098
          %v2104 = vmul.f32 1.0, %v2103
          %v2105 = vrcp.pop %v2099
          %v2106 = vmul.f32 1.0, %v2105
          %v2107 = vrcp.pop %v2100
          %v2108 = vmul.f32 1.0, %v2107
          %v2110 = vrot.slane %v1701, 6
          %v2111 = vrot.slane %v1701, 7
          %v2112 = vrot.slane %v1701, 1
          %v2117 = vmul.f32 %v2074, %v2110
          %v2118 = vmul.f32 %v2076, %v2111
          %v2119 = vmul.f32 %v2078, %v1701
          %v2120 = vmul.f32 %v2080, %v2112
          %v2121 = vmul.f32 %v2050, %v2081
          %v2122 = vmul.f32 %v2052, %v2082
          %v2123 = vmul.f32 %v2054, %v2083
          %v2124 = vmul.f32 %v2056, %v2084
          %v2125 = vadd.f32 %v2117, %v2121
          %v2126 = vadd.f32 %v2118, %v2122
          %v2127 = vadd.f32 %v2119, %v2123
          %v2128 = vadd.f32 %v2120, %v2124
          %v2129 = vtanh.pop %v2125
          %v2130 = vtanh.pop %v2126
          %v2131 = vtanh.pop %v2127
          %v2132 = vtanh.pop %v2128
          %v2133 = vmul.f32 %v2102, %v2129
          %v2134 = vmul.f32 %v2104, %v2130
          %v2135 = vmul.f32 %v2106, %v2131
          %v2136 = vmul.f32 %v2108, %v2132
          %s2137 = sadd.s32 %s322, 2
          %v2138 = vstv %s2137
          %vm2139 = vcmp.lt.s32.totalorder %v2138, %v332
          %v2140 = vsel %vm2139, 1, 0
          %2141 = vset.pattern.permute.xlu0 0
          %2142 = vperm.xlu0 %2141, %v2140
          %v2143 = vpop.permute.xlu0 %2142
          %vm2144 = vcmp.eq.s32.totalorder %v2143, 1
          %v2149 = vrot.slane %v2133, 2
          %v2150 = vrot.slane %v2134, 1
          %v2151 = vsel %vm1213, %v2150, %v2149
          %v2152 = vsel %vm1216, %v2135, %v2151
          %v2153 = vrot.slane %v2136, 7
          %v2154 = vsel %vm1219, %v2153, %v2152
          %v2156 = vsel %vm2144, %v2154, %v1689
          %v2161 = vrot.slane %v2125, 2
          %v2162 = vrot.slane %v2126, 1
          %v2163 = vsel %vm1213, %v2162, %v2161
          %v2164 = vsel %vm1216, %v2127, %v2163
          %v2165 = vrot.slane %v2128, 7
          %v2166 = vsel %vm1219, %v2165, %v2164
          %v2168 = vsel %vm2144, %v2166, %v1701
          %v2170 = vsel %vm765, %v2156, 0
          %2172 = vmatprep.subr.mxu0 0.0
          %2173 = vmatpush1.msra.mxu0 %v744
          %2174 = vmatprep.subr.mxu0 0.0
          %2175 = vmatpush1.msra.mxu0 %v745
          %2176 = vmatprep.subr.mxu0 0.0
          %2177 = vmatpush1.msra.mxu0 %v746
          %2178 = vmatprep.subr.mxu0 0.0
          %2179 = vmatpush1.msra.mxu0 %v747
          %2180 = vmatprep.subr.mxu0 0.0
          %2181 = vmatpush1.msra.mxu0 0.0
          %2182 = vmatprep.subr.mxu0 0.0
          %2183 = vmatpush1.msra.mxu0 0.0
          %2184 = vmatprep.subr.mxu0 0.0
          %2185 = vmatpush1.msra.mxu0 0.0
          %2186 = vmatprep.subr.mxu0 0.0
          %2187 = vmatpush1.msra.mxu0 0.0
          %2188 = vmatprep.subr.mxu0 0.0
          %2189 = vmatpush1.msra.mxu0 0.0
          %2190 = vmatprep.subr.mxu0 0.0
          %2191 = vmatpush1.msra.mxu0 0.0
          %2192 = vmatprep.subr.mxu0 0.0
          %2193 = vmatpush1.msra.mxu0 0.0
          %2194 = vmatprep.subr.mxu0 0.0
          %2195 = vmatpush1.msra.mxu0 0.0
          %2196 = vmatprep.subr.mxu0 0.0
          %2197 = vmatpush1.msra.mxu0 0.0
          %2198 = vmatprep.subr.mxu0 0.0
          %2199 = vmatpush1.msra.mxu0 0.0
          %2200 = vmatprep.subr.mxu0 0.0
          %2201 = vmatpush1.msra.mxu0 0.0
          %2202 = vmatprep.subr.mxu0 0.0
          %2203 = vmatpush1.msra.mxu0 0.0
          %2204 = vmatprep.subr.mxu0 0.0
          %2205 = vmatpush1.msra.mxu0 0.0
          %2206 = vmatprep.subr.mxu0 0.0
          %2207 = vmatpush1.msra.mxu0 0.0
          %2208 = vmatprep.subr.mxu0 0.0
          %2209 = vmatpush1.msra.mxu0 0.0
          %2210 = vmatprep.subr.mxu0 0.0
          %2211 = vmatpush1.msra.mxu0 0.0
          %2212 = vmatprep.subr.mxu0 0.0
          %2213 = vmatpush1.msra.mxu0 0.0
          %2214 = vmatprep.subr.mxu0 0.0
          %2215 = vmatpush1.msra.mxu0 0.0
          %2216 = vmatprep.subr.mxu0 0.0
          %2217 = vmatpush1.msra.mxu0 0.0
          %2218 = vmatprep.subr.mxu0 0.0
          %2219 = vmatpush1.msra.mxu0 0.0
          %2220 = vmatprep.subr.mxu0 0.0
          %2221 = vmatpush1.msra.mxu0 0.0
          %2222 = vmatprep.subr.mxu0 0.0
          %2223 = vmatpush1.msra.mxu0 0.0
          %2224 = vmatprep.subr.mxu0 0.0
          %2225 = vmatpush1.msra.mxu0 0.0
          %2226 = vmatprep.subr.mxu0 0.0
          %2227 = vmatpush1.msra.mxu0 0.0
          %2228 = vmatprep.subr.mxu0 0.0
          %2229 = vmatpush1.msra.mxu0 0.0
          %2230 = vmatprep.subr.mxu0 0.0
          %2231 = vmatpush1.msra.mxu0 0.0
          %2232 = vmatprep.subr.mxu0 0.0
          %2233 = vmatpush1.msra.mxu0 0.0
          %2234 = vmatprep.subr.mxu0 0.0
          %2235 = vmatpush1.msra.mxu0 0.0
          %2236 = vmatprep.mubr.f32.mxu0 0.0
          %2237 = vmatmul.mubr.f32.gmra.mrb[0].mxu0 %v2170
          %v2238 = vpop.f32.mrb[0].mxu0
          %v2239 = vadd.f32 0.0, %v2238
          %v2240 = vpop.f32.mrb[0].mxu0
          %2241 = vdwg.mxu0
          %v2243 = vrot.slane %v2239, 5
          %v2244 = vrot.slane %v2239, 6
          %v2245 = vrot.slane %v2239, 7
          %v2250 = vadd.f32 %v440, %v2243
          %v2251 = vadd.f32 %v441, %v2244
          %v2252 = vadd.f32 %v442, %v2245
          %v2253 = vadd.f32 %v443, %v2239
          %2254 = vmatprep.subr.mxu0 0.0
          %2255 = vmatpush1.msra.mxu0 %v749
          %2256 = vmatprep.subr.mxu0 0.0
          %2257 = vmatpush1.msra.mxu0 %v750
          %2258 = vmatprep.subr.mxu0 0.0
          %2259 = vmatpush1.msra.mxu0 %v751
          %2260 = vmatprep.subr.mxu0 0.0
          %2261 = vmatpush1.msra.mxu0 %v752
          %2262 = vmatprep.subr.mxu0 0.0
          %2263 = vmatpush1.msra.mxu0 0.0
          %2264 = vmatprep.subr.mxu0 0.0
          %2265 = vmatpush1.msra.mxu0 0.0
          %2266 = vmatprep.subr.mxu0 0.0
          %2267 = vmatpush1.msra.mxu0 0.0
          %2268 = vmatprep.subr.mxu0 0.0
          %2269 = vmatpush1.msra.mxu0 0.0
          %2270 = vmatprep.subr.mxu0 0.0
          %2271 = vmatpush1.msra.mxu0 0.0
          %2272 = vmatprep.subr.mxu0 0.0
          %2273 = vmatpush1.msra.mxu0 0.0
          %2274 = vmatprep.subr.mxu0 0.0
          %2275 = vmatpush1.msra.mxu0 0.0
          %2276 = vmatprep.subr.mxu0 0.0
          %2277 = vmatpush1.msra.mxu0 0.0
          %2278 = vmatprep.subr.mxu0 0.0
          %2279 = vmatpush1.msra.mxu0 0.0
          %2280 = vmatprep.subr.mxu0 0.0
          %2281 = vmatpush1.msra.mxu0 0.0
          %2282 = vmatprep.subr.mxu0 0.0
          %2283 = vmatpush1.msra.mxu0 0.0
          %2284 = vmatprep.subr.mxu0 0.0
          %2285 = vmatpush1.msra.mxu0 0.0
          %2286 = vmatprep.subr.mxu0 0.0
          %2287 = vmatpush1.msra.mxu0 0.0
          %2288 = vmatprep.subr.mxu0 0.0
          %2289 = vmatpush1.msra.mxu0 0.0
          %2290 = vmatprep.subr.mxu0 0.0
          %2291 = vmatpush1.msra.mxu0 0.0
          %2292 = vmatprep.subr.mxu0 0.0
          %2293 = vmatpush1.msra.mxu0 0.0
          %2294 = vmatprep.subr.mxu0 0.0
          %2295 = vmatpush1.msra.mxu0 0.0
          %2296 = vmatprep.subr.mxu0 0.0
          %2297 = vmatpush1.msra.mxu0 0.0
          %2298 = vmatprep.subr.mxu0 0.0
          %2299 = vmatpush1.msra.mxu0 0.0
          %2300 = vmatprep.subr.mxu0 0.0
          %2301 = vmatpush1.msra.mxu0 0.0
          %2302 = vmatprep.subr.mxu0 0.0
          %2303 = vmatpush1.msra.mxu0 0.0
          %2304 = vmatprep.subr.mxu0 0.0
          %2305 = vmatpush1.msra.mxu0 0.0
          %2306 = vmatprep.subr.mxu0 0.0
          %2307 = vmatpush1.msra.mxu0 0.0
          %2308 = vmatprep.subr.mxu0 0.0
          %2309 = vmatpush1.msra.mxu0 0.0
          %2310 = vmatprep.subr.mxu0 0.0
          %2311 = vmatpush1.msra.mxu0 0.0
          %2312 = vmatprep.subr.mxu0 0.0
          %2313 = vmatpush1.msra.mxu0 0.0
          %2314 = vmatprep.subr.mxu0 0.0
          %2315 = vmatpush1.msra.mxu0 0.0
          %2316 = vmatprep.subr.mxu0 0.0
          %2317 = vmatpush1.msra.mxu0 0.0
          %2318 = vmatprep.mubr.f32.mxu0 0.0
          %2319 = vmatmul.mubr.f32.gmra.mrb[0].mxu0 %v2170
          %v2320 = vpop.f32.mrb[0].mxu0
          %v2321 = vadd.f32 0.0, %v2320
          %v2322 = vpop.f32.mrb[0].mxu0
          %2323 = vdwg.mxu0
          %v2325 = vrot.slane %v2321, 5
          %v2326 = vrot.slane %v2321, 6
          %v2327 = vrot.slane %v2321, 7
          %v2332 = vadd.f32 %v540, %v2325
          %v2333 = vadd.f32 %v541, %v2326
          %v2334 = vadd.f32 %v542, %v2327
          %v2335 = vadd.f32 %v543, %v2321
          %2336 = vmatprep.subr.mxu0 0.0
          %2337 = vmatpush1.msra.mxu0 %v754
          %2338 = vmatprep.subr.mxu0 0.0
          %2339 = vmatpush1.msra.mxu0 %v755
          %2340 = vmatprep.subr.mxu0 0.0
          %2341 = vmatpush1.msra.mxu0 %v756
          %2342 = vmatprep.subr.mxu0 0.0
          %2343 = vmatpush1.msra.mxu0 %v757
          %2344 = vmatprep.subr.mxu0 0.0
          %2345 = vmatpush1.msra.mxu0 0.0
          %2346 = vmatprep.subr.mxu0 0.0
          %2347 = vmatpush1.msra.mxu0 0.0
          %2348 = vmatprep.subr.mxu0 0.0
          %2349 = vmatpush1.msra.mxu0 0.0
          %2350 = vmatprep.subr.mxu0 0.0
          %2351 = vmatpush1.msra.mxu0 0.0
          %2352 = vmatprep.subr.mxu0 0.0
          %2353 = vmatpush1.msra.mxu0 0.0
          %2354 = vmatprep.subr.mxu0 0.0
          %2355 = vmatpush1.msra.mxu0 0.0
          %2356 = vmatprep.subr.mxu0 0.0
          %2357 = vmatpush1.msra.mxu0 0.0
          %2358 = vmatprep.subr.mxu0 0.0
          %2359 = vmatpush1.msra.mxu0 0.0
          %2360 = vmatprep.subr.mxu0 0.0
          %2361 = vmatpush1.msra.mxu0 0.0
          %2362 = vmatprep.subr.mxu0 0.0
          %2363 = vmatpush1.msra.mxu0 0.0
          %2364 = vmatprep.subr.mxu0 0.0
          %2365 = vmatpush1.msra.mxu0 0.0
          %2366 = vmatprep.subr.mxu0 0.0
          %2367 = vmatpush1.msra.mxu0 0.0
          %2368 = vmatprep.subr.mxu0 0.0
          %2369 = vmatpush1.msra.mxu0 0.0
          %2370 = vmatprep.subr.mxu0 0.0
          %2371 = vmatpush1.msra.mxu0 0.0
          %2372 = vmatprep.subr.mxu0 0.0
          %2373 = vmatpush1.msra.mxu0 0.0
          %2374 = vmatprep.subr.mxu0 0.0
          %2375 = vmatpush1.msra.mxu0 0.0
          %2376 = vmatprep.subr.mxu0 0.0
          %2377 = vmatpush1.msra.mxu0 0.0
          %2378 = vmatprep.subr.mxu0 0.0
          %2379 = vmatpush1.msra.mxu0 0.0
          %2380 = vmatprep.subr.mxu0 0.0
          %2381 = vmatpush1.msra.mxu0 0.0
          %2382 = vmatprep.subr.mxu0 0.0
          %2383 = vmatpush1.msra.mxu0 0.0
          %2384 = vmatprep.subr.mxu0 0.0
          %2385 = vmatpush1.msra.mxu0 0.0
          %2386 = vmatprep.subr.mxu0 0.0
          %2387 = vmatpush1.msra.mxu0 0.0
          %2388 = vmatprep.subr.mxu0 0.0
          %2389 = vmatpush1.msra.mxu0 0.0
          %2390 = vmatprep.subr.mxu0 0.0
          %2391 = vmatpush1.msra.mxu0 0.0
          %2392 = vmatprep.subr.mxu0 0.0
          %2393 = vmatpush1.msra.mxu0 0.0
          %2394 = vmatprep.subr.mxu0 0.0
          %2395 = vmatpush1.msra.mxu0 0.0
          %2396 = vmatprep.subr.mxu0 0.0
          %2397 = vmatpush1.msra.mxu0 0.0
          %2398 = vmatprep.subr.mxu0 0.0
          %2399 = vmatpush1.msra.mxu0 0.0
          %2400 = vmatprep.mubr.f32.mxu0 0.0
          %2401 = vmatmul.mubr.f32.gmra.mrb[0].mxu0 %v2170
          %v2402 = vpop.f32.mrb[0].mxu0
          %v2403 = vadd.f32 0.0, %v2402
          %v2404 = vpop.f32.mrb[0].mxu0
          %2405 = vdwg.mxu0
          %v2407 = vrot.slane %v2403, 5
          %v2408 = vrot.slane %v2403, 6
          %v2409 = vrot.slane %v2403, 7
          %v2414 = vadd.f32 %v640, %v2407
          %v2415 = vadd.f32 %v641, %v2408
          %v2416 = vadd.f32 %v642, %v2409
          %v2417 = vadd.f32 %v643, %v2403
          %2418 = vmatprep.subr.mxu0 0.0
          %2419 = vmatpush1.msra.mxu0 %v759
          %2420 = vmatprep.subr.mxu0 0.0
          %2421 = vmatpush1.msra.mxu0 %v760
          %2422 = vmatprep.subr.mxu0 0.0
          %2423 = vmatpush1.msra.mxu0 %v761
          %2424 = vmatprep.subr.mxu0 0.0
          %2425 = vmatpush1.msra.mxu0 %v762
          %2426 = vmatprep.subr.mxu0 0.0
          %2427 = vmatpush1.msra.mxu0 0.0
          %2428 = vmatprep.subr.mxu0 0.0
          %2429 = vmatpush1.msra.mxu0 0.0
          %2430 = vmatprep.subr.mxu0 0.0
          %2431 = vmatpush1.msra.mxu0 0.0
          %2432 = vmatprep.subr.mxu0 0.0
          %2433 = vmatpush1.msra.mxu0 0.0
          %2434 = vmatprep.subr.mxu0 0.0
          %2435 = vmatpush1.msra.mxu0 0.0
          %2436 = vmatprep.subr.mxu0 0.0
          %2437 = vmatpush1.msra.mxu0 0.0
          %2438 = vmatprep.subr.mxu0 0.0
          %2439 = vmatpush1.msra.mxu0 0.0
          %2440 = vmatprep.subr.mxu0 0.0
          %2441 = vmatpush1.msra.mxu0 0.0
          %2442 = vmatprep.subr.mxu0 0.0
          %2443 = vmatpush1.msra.mxu0 0.0
          %2444 = vmatprep.subr.mxu0 0.0
          %2445 = vmatpush1.msra.mxu0 0.0
          %2446 = vmatprep.subr.mxu0 0.0
          %2447 = vmatpush1.msra.mxu0 0.0
          %2448 = vmatprep.subr.mxu0 0.0
          %2449 = vmatpush1.msra.mxu0 0.0
          %2450 = vmatprep.subr.mxu0 0.0
          %2451 = vmatpush1.msra.mxu0 0.0
          %2452 = vmatprep.subr.mxu0 0.0
          %2453 = vmatpush1.msra.mxu0 0.0
          %2454 = vmatprep.subr.mxu0 0.0
          %2455 = vmatpush1.msra.mxu0 0.0
          %2456 = vmatprep.subr.mxu0 0.0
          %2457 = vmatpush1.msra.mxu0 0.0
          %2458 = vmatprep.subr.mxu0 0.0
          %2459 = vmatpush1.msra.mxu0 0.0
          %2460 = vmatprep.subr.mxu0 0.0
          %2461 = vmatpush1.msra.mxu0 0.0
          %2462 = vmatprep.subr.mxu0 0.0
          %2463 = vmatpush1.msra.mxu0 0.0
          %2464 = vmatprep.subr.mxu0 0.0
          %2465 = vmatpush1.msra.mxu0 0.0
          %2466 = vmatprep.subr.mxu0 0.0
          %2467 = vmatpush1.msra.mxu0 0.0
          %2468 = vmatprep.subr.mxu0 0.0
          %2469 = vmatpush1.msra.mxu0 0.0
          %2470 = vmatprep.subr.mxu0 0.0
          %2471 = vmatpush1.msra.mxu0 0.0
          %2472 = vmatprep.subr.mxu0 0.0
          %2473 = vmatpush1.msra.mxu0 0.0
          %2474 = vmatprep.subr.mxu0 0.0
          %2475 = vmatpush1.msra.mxu0 0.0
          %2476 = vmatprep.subr.mxu0 0.0
          %2477 = vmatpush1.msra.mxu0 0.0
          %2478 = vmatprep.subr.mxu0 0.0
          %2479 = vmatpush1.msra.mxu0 0.0
          %2480 = vmatprep.subr.mxu0 0.0
          %2481 = vmatpush1.msra.mxu0 0.0
          %2482 = vmatprep.mubr.f32.mxu0 0.0
          %2483 = vmatmul.mubr.f32.gmra.mrb[0].mxu0 %v2170
          %v2484 = vpop.f32.mrb[0].mxu0
          %v2485 = vadd.f32 0.0, %v2484
          %v2486 = vpop.f32.mrb[0].mxu0
          %2487 = vdwg.mxu0
          %v2489 = vrot.slane %v2485, 5
          %v2490 = vrot.slane %v2485, 6
          %v2491 = vrot.slane %v2485, 7
          %v2496 = vadd.f32 %v740, %v2489
          %v2497 = vadd.f32 %v741, %v2490
          %v2498 = vadd.f32 %v742, %v2491
          %v2499 = vadd.f32 %v743, %v2485
          %v2500 = vxor.u32 %v2250, 2147483648
          %v2501 = vxor.u32 %v2251, 2147483648
          %v2502 = vxor.u32 %v2252, 2147483648
          %v2503 = vxor.u32 %v2253, 2147483648
          %v2504 = vmul.f32 %v2500, 1.442695
          %v2505 = vpow.pop %v2504
          %v2506 = vmul.f32 %v2501, 1.442695
          %v2507 = vpow.pop %v2506
          %v2508 = vmul.f32 %v2502, 1.442695
          %v2509 = vpow.pop %v2508
          %v2510 = vmul.f32 %v2503, 1.442695
          %v2511 = vpow.pop %v2510
          %v2512 = vadd.f32 %v2505, 1.0
          %v2513 = vadd.f32 %v2507, 1.0
          %v2514 = vadd.f32 %v2509, 1.0
          %v2515 = vadd.f32 %v2511, 1.0
          %v2516 = vrcp.pop %v2512
          %v2517 = vmul.f32 1.0, %v2516
          %v2518 = vrcp.pop %v2513
          %v2519 = vmul.f32 1.0, %v2518
          %v2520 = vrcp.pop %v2514
          %v2521 = vmul.f32 1.0, %v2520
          %v2522 = vrcp.pop %v2515
          %v2523 = vmul.f32 1.0, %v2522
          %v2524 = vxor.u32 %v2332, 2147483648
          %v2525 = vxor.u32 %v2333, 2147483648
          %v2526 = vxor.u32 %v2334, 2147483648
          %v2527 = vxor.u32 %v2335, 2147483648
          %v2528 = vmul.f32 %v2524, 1.442695
          %v2529 = vpow.pop %v2528
          %v2530 = vmul.f32 %v2525, 1.442695
          %v2531 = vpow.pop %v2530
          %v2532 = vmul.f32 %v2526, 1.442695
          %v2533 = vpow.pop %v2532
          %v2534 = vmul.f32 %v2527, 1.442695
          %v2535 = vpow.pop %v2534
          %v2536 = vadd.f32 %v2529, 1.0
          %v2537 = vadd.f32 %v2531, 1.0
          %v2538 = vadd.f32 %v2533, 1.0
          %v2539 = vadd.f32 %v2535, 1.0
          %v2540 = vrcp.pop %v2536
          %v2541 = vmul.f32 1.0, %v2540
          %v2542 = vrcp.pop %v2537
          %v2543 = vmul.f32 1.0, %v2542
          %v2544 = vrcp.pop %v2538
          %v2545 = vmul.f32 1.0, %v2544
          %v2546 = vrcp.pop %v2539
          %v2547 = vmul.f32 1.0, %v2546
          %v2548 = vtanh.pop %v2414
          %v2549 = vtanh.pop %v2415
          %v2550 = vtanh.pop %v2416
          %v2551 = vtanh.pop %v2417
          %v2552 = vxor.u32 %v2496, 2147483648
          %v2553 = vxor.u32 %v2497, 2147483648
          %v2554 = vxor.u32 %v2498, 2147483648
          %v2555 = vxor.u32 %v2499, 2147483648
          %v2556 = vmul.f32 %v2552, 1.442695
          %v2557 = vpow.pop %v2556
          %v2558 = vmul.f32 %v2553, 1.442695
          %v2559 = vpow.pop %v2558
          %v2560 = vmul.f32 %v2554, 1.442695
          %v2561 = vpow.pop %v2560
          %v2562 = vmul.f32 %v2555, 1.442695
          %v2563 = vpow.pop %v2562
          %v2564 = vadd.f32 %v2557, 1.0
          %v2565 = vadd.f32 %v2559, 1.0
          %v2566 = vadd.f32 %v2561, 1.0
          %v2567 = vadd.f32 %v2563, 1.0
          %v2568 = vrcp.pop %v2564
          %v2569 = vmul.f32 1.0, %v2568
          %v2570 = vrcp.pop %v2565
          %v2571 = vmul.f32 1.0, %v2570
          %v2572 = vrcp.pop %v2566
          %v2573 = vmul.f32 1.0, %v2572
          %v2574 = vrcp.pop %v2567
          %v2575 = vmul.f32 1.0, %v2574
          %v2577 = vrot.slane %v2168, 5
          %v2578 = vrot.slane %v2168, 6
          %v2579 = vrot.slane %v2168, 7
          %v2584 = vmul.f32 %v2541, %v2577
          %v2585 = vmul.f32 %v2543, %v2578
          %v2586 = vmul.f32 %v2545, %v2579
          %v2587 = vmul.f32 %v2547, %v2168
          %v2588 = vmul.f32 %v2517, %v2548
          %v2589 = vmul.f32 %v2519, %v2549
          %v2590 = vmul.f32 %v2521, %v2550
          %v2591 = vmul.f32 %v2523, %v2551
          %v2592 = vadd.f32 %v2584, %v2588
          %v2593 = vadd.f32 %v2585, %v2589
          %v2594 = vadd.f32 %v2586, %v2590
          %v2595 = vadd.f32 %v2587, %v2591
          %v2596 = vtanh.pop %v2592
          %v2597 = vtanh.pop %v2593
          %v2598 = vtanh.pop %v2594
          %v2599 = vtanh.pop %v2595
          %v2600 = vmul.f32 %v2569, %v2596
          %v2601 = vmul.f32 %v2571, %v2597
          %v2602 = vmul.f32 %v2573, %v2598
          %v2603 = vmul.f32 %v2575, %v2599
          %s2604 = sadd.s32 %s322, 3
          %v2605 = vstv %s2604
          %vm2606 = vcmp.lt.s32.totalorder %v2605, %v332
          %v2607 = vsel %vm2606, 1, 0
          %2608 = vset.pattern.permute.xlu0 0
          %2609 = vperm.xlu0 %2608, %v2607
          %v2610 = vpop.permute.xlu0 %2609
          %vm2611 = vcmp.eq.s32.totalorder %v2610, 1
          %v2616 = vrot.slane %v2600, 3
          %v2617 = vrot.slane %v2601, 2
          %v2618 = vsel %vm1213, %v2617, %v2616
          %v2619 = vrot.slane %v2602, 1
          %v2620 = vsel %vm1216, %v2619, %v2618
          %v2621 = vsel %vm1219, %v2603, %v2620
          %v2623 = vsel %vm2611, %v2621, %v2156
          %v2628 = vrot.slane %v2592, 3
          %v2629 = vrot.slane %v2593, 2
          %v2630 = vsel %vm1213, %v2629, %v2628
          %v2631 = vrot.slane %v2594, 1
          %v2632 = vsel %vm1216, %v2631, %v2630
          %v2633 = vsel %vm1219, %v2595, %v2632
          %v2635 = vsel %vm2611, %v2633, %v2168
          %v2637 = vsel %vm765, %v2623, 0
          %2639 = vmatprep.subr.mxu0 0.0
          %2640 = vmatpush1.msra.mxu0 %v744
          %2641 = vmatprep.subr.mxu0 0.0
          %2642 = vmatpush1.msra.mxu0 %v745
          %2643 = vmatprep.subr.mxu0 0.0
          %2644 = vmatpush1.msra.mxu0 %v746
          %2645 = vmatprep.subr.mxu0 0.0
          %2646 = vmatpush1.msra.mxu0 %v747
          %2647 = vmatprep.subr.mxu0 0.0
          %2648 = vmatpush1.msra.mxu0 0.0
          %2649 = vmatprep.subr.mxu0 0.0
          %2650 = vmatpush1.msra.mxu0 0.0
          %2651 = vmatprep.subr.mxu0 0.0
          %2652 = vmatpush1.msra.mxu0 0.0
          %2653 = vmatprep.subr.mxu0 0.0
          %2654 = vmatpush1.msra.mxu0 0.0
          %2655 = vmatprep.subr.mxu0 0.0
          %2656 = vmatpush1.msra.mxu0 0.0
          %2657 = vmatprep.subr.mxu0 0.0
          %2658 = vmatpush1.msra.mxu0 0.0
          %2659 = vmatprep.subr.mxu0 0.0
          %2660 = vmatpush1.msra.mxu0 0.0
          %2661 = vmatprep.subr.mxu0 0.0
          %2662 = vmatpush1.msra.mxu0 0.0
          %2663 = vmatprep.subr.mxu0 0.0
          %2664 = vmatpush1.msra.mxu0 0.0
          %2665 = vmatprep.subr.mxu0 0.0
          %2666 = vmatpush1.msra.mxu0 0.0
          %2667 = vmatprep.subr.mxu0 0.0
          %2668 = vmatpush1.msra.mxu0 0.0
          %2669 = vmatprep.subr.mxu0 0.0
          %2670 = vmatpush1.msra.mxu0 0.0
          %2671 = vmatprep.subr.mxu0 0.0
          %2672 = vmatpush1.msra.mxu0 0.0
          %2673 = vmatprep.subr.mxu0 0.0
          %2674 = vmatpush1.msra.mxu0 0.0
          %2675 = vmatprep.subr.mxu0 0.0
          %2676 = vmatpush1.msra.mxu0 0.0
          %2677 = vmatprep.subr.mxu0 0.0
          %2678 = vmatpush1.msra.mxu0 0.0
          %2679 = vmatprep.subr.mxu0 0.0
          %2680 = vmatpush1.msra.mxu0 0.0
          %2681 = vmatprep.subr.mxu0 0.0
          %2682 = vmatpush1.msra.mxu0 0.0
          %2683 = vmatprep.subr.mxu0 0.0
          %2684 = vmatpush1.msra.mxu0 0.0
          %2685 = vmatprep.subr.mxu0 0.0
          %2686 = vmatpush1.msra.mxu0 0.0
          %2687 = vmatprep.subr.mxu0 0.0
          %2688 = vmatpush1.msra.mxu0 0.0
          %2689 = vmatprep.subr.mxu0 0.0
          %2690 = vmatpush1.msra.mxu0 0.0
          %2691 = vmatprep.subr.mxu0 0.0
          %2692 = vmatpush1.msra.mxu0 0.0
          %2693 = vmatprep.subr.mxu0 0.0
          %2694 = vmatpush1.msra.mxu0 0.0
          %2695 = vmatprep.subr.mxu0 0.0
          %2696 = vmatpush1.msra.mxu0 0.0
          %2697 = vmatprep.subr.mxu0 0.0
          %2698 = vmatpush1.msra.mxu0 0.0
          %2699 = vmatprep.subr.mxu0 0.0
          %2700 = vmatpush1.msra.mxu0 0.0
          %2701 = vmatprep.subr.mxu0 0.0
          %2702 = vmatpush1.msra.mxu0 0.0
          %2703 = vmatprep.mubr.f32.mxu0 0.0
          %2704 = vmatmul.mubr.f32.gmra.mrb[0].mxu0 %v2637
          %v2705 = vpop.f32.mrb[0].mxu0
          %v2706 = vadd.f32 0.0, %v2705
          %v2707 = vpop.f32.mrb[0].mxu0
          %2708 = vdwg.mxu0
          %v2710 = vrot.slane %v2706, 4
          %v2711 = vrot.slane %v2706, 5
          %v2712 = vrot.slane %v2706, 6
          %v2713 = vrot.slane %v2706, 7
          %v2718 = vadd.f32 %v440, %v2710
          %v2719 = vadd.f32 %v441, %v2711
          %v2720 = vadd.f32 %v442, %v2712
          %v2721 = vadd.f32 %v443, %v2713
          %2722 = vmatprep.subr.mxu0 0.0
          %2723 = vmatpush1.msra.mxu0 %v749
          %2724 = vmatprep.subr.mxu0 0.0
          %2725 = vmatpush1.msra.mxu0 %v750
          %2726 = vmatprep.subr.mxu0 0.0
          %2727 = vmatpush1.msra.mxu0 %v751
          %2728 = vmatprep.subr.mxu0 0.0
          %2729 = vmatpush1.msra.mxu0 %v752
          %2730 = vmatprep.subr.mxu0 0.0
          %2731 = vmatpush1.msra.mxu0 0.0
          %2732 = vmatprep.subr.mxu0 0.0
          %2733 = vmatpush1.msra.mxu0 0.0
          %2734 = vmatprep.subr.mxu0 0.0
          %2735 = vmatpush1.msra.mxu0 0.0
          %2736 = vmatprep.subr.mxu0 0.0
          %2737 = vmatpush1.msra.mxu0 0.0
          %2738 = vmatprep.subr.mxu0 0.0
          %2739 = vmatpush1.msra.mxu0 0.0
          %2740 = vmatprep.subr.mxu0 0.0
          %2741 = vmatpush1.msra.mxu0 0.0
          %2742 = vmatprep.subr.mxu0 0.0
          %2743 = vmatpush1.msra.mxu0 0.0
          %2744 = vmatprep.subr.mxu0 0.0
          %2745 = vmatpush1.msra.mxu0 0.0
          %2746 = vmatprep.subr.mxu0 0.0
          %2747 = vmatpush1.msra.mxu0 0.0
          %2748 = vmatprep.subr.mxu0 0.0
          %2749 = vmatpush1.msra.mxu0 0.0
          %2750 = vmatprep.subr.mxu0 0.0
          %2751 = vmatpush1.msra.mxu0 0.0
          %2752 = vmatprep.subr.mxu0 0.0
          %2753 = vmatpush1.msra.mxu0 0.0
          %2754 = vmatprep.subr.mxu0 0.0
          %2755 = vmatpush1.msra.mxu0 0.0
          %2756 = vmatprep.subr.mxu0 0.0
          %2757 = vmatpush1.msra.mxu0 0.0
          %2758 = vmatprep.subr.mxu0 0.0
          %2759 = vmatpush1.msra.mxu0 0.0
          %2760 = vmatprep.subr.mxu0 0.0
          %2761 = vmatpush1.msra.mxu0 0.0
          %2762 = vmatprep.subr.mxu0 0.0
          %2763 = vmatpush1.msra.mxu0 0.0
          %2764 = vmatprep.subr.mxu0 0.0
          %2765 = vmatpush1.msra.mxu0 0.0
          %2766 = vmatprep.subr.mxu0 0.0
          %2767 = vmatpush1.msra.mxu0 0.0
          %2768 = vmatprep.subr.mxu0 0.0
          %2769 = vmatpush1.msra.mxu0 0.0
          %2770 = vmatprep.subr.mxu0 0.0
          %2771 = vmatpush1.msra.mxu0 0.0
          %2772 = vmatprep.subr.mxu0 0.0
          %2773 = vmatpush1.msra.mxu0 0.0
          %2774 = vmatprep.subr.mxu0 0.0
          %2775 = vmatpush1.msra.mxu0 0.0
          %2776 = vmatprep.subr.mxu0 0.0
          %2777 = vmatpush1.msra.mxu0 0.0
          %2778 = vmatprep.subr.mxu0 0.0
          %2779 = vmatpush1.msra.mxu0 0.0
          %2780 = vmatprep.subr.mxu0 0.0
          %2781 = vmatpush1.msra.mxu0 0.0
          %2782 = vmatprep.subr.mxu0 0.0
          %2783 = vmatpush1.msra.mxu0 0.0
          %2784 = vmatprep.subr.mxu0 0.0
          %2785 = vmatpush1.msra.mxu0 0.0
          %2786 = vmatprep.mubr.f32.mxu0 0.0
          %2787 = vmatmul.mubr.f32.gmra.mrb[0].mxu0 %v2637
          %v2788 = vpop.f32.mrb[0].mxu0
          %v2789 = vadd.f32 0.0, %v2788
          %v2790 = vpop.f32.mrb[0].mxu0
          %2791 = vdwg.mxu0
          %v2793 = vrot.slane %v2789, 4
          %v2794 = vrot.slane %v2789, 5
          %v2795 = vrot.slane %v2789, 6
          %v2796 = vrot.slane %v2789, 7
          %v2801 = vadd.f32 %v540, %v2793
          %v2802 = vadd.f32 %v541, %v2794
          %v2803 = vadd.f32 %v542, %v2795
          %v2804 = vadd.f32 %v543, %v2796
          %2805 = vmatprep.subr.mxu0 0.0
          %2806 = vmatpush1.msra.mxu0 %v754
          %2807 = vmatprep.subr.mxu0 0.0
          %2808 = vmatpush1.msra.mxu0 %v755
          %2809 = vmatprep.subr.mxu0 0.0
          %2810 = vmatpush1.msra.mxu0 %v756
          %2811 = vmatprep.subr.mxu0 0.0
          %2812 = vmatpush1.msra.mxu0 %v757
          %2813 = vmatprep.subr.mxu0 0.0
          %2814 = vmatpush1.msra.mxu0 0.0
          %2815 = vmatprep.subr.mxu0 0.0
          %2816 = vmatpush1.msra.mxu0 0.0
          %2817 = vmatprep.subr.mxu0 0.0
          %2818 = vmatpush1.msra.mxu0 0.0
          %2819 = vmatprep.subr.mxu0 0.0
          %2820 = vmatpush1.msra.mxu0 0.0
          %2821 = vmatprep.subr.mxu0 0.0
          %2822 = vmatpush1.msra.mxu0 0.0
          %2823 = vmatprep.subr.mxu0 0.0
          %2824 = vmatpush1.msra.mxu0 0.0
          %2825 = vmatprep.subr.mxu0 0.0
          %2826 = vmatpush1.msra.mxu0 0.0
          %2827 = vmatprep.subr.mxu0 0.0
          %2828 = vmatpush1.msra.mxu0 0.0
          %2829 = vmatprep.subr.mxu0 0.0
          %2830 = vmatpush1.msra.mxu0 0.0
          %2831 = vmatprep.subr.mxu0 0.0
          %2832 = vmatpush1.msra.mxu0 0.0
          %2833 = vmatprep.subr.mxu0 0.0
          %2834 = vmatpush1.msra.mxu0 0.0
          %2835 = vmatprep.subr.mxu0 0.0
          %2836 = vmatpush1.msra.mxu0 0.0
          %2837 = vmatprep.subr.mxu0 0.0
          %2838 = vmatpush1.msra.mxu0 0.0
          %2839 = vmatprep.subr.mxu0 0.0
          %2840 = vmatpush1.msra.mxu0 0.0
          %2841 = vmatprep.subr.mxu0 0.0
          %2842 = vmatpush1.msra.mxu0 0.0
          %2843 = vmatprep.subr.mxu0 0.0
          %2844 = vmatpush1.msra.mxu0 0.0
          %2845 = vmatprep.subr.mxu0 0.0
          %2846 = vmatpush1.msra.mxu0 0.0
          %2847 = vmatprep.subr.mxu0 0.0
          %2848 = vmatpush1.msra.mxu0 0.0
          %2849 = vmatprep.subr.mxu0 0.0
          %2850 = vmatpush1.msra.mxu0 0.0
          %2851 = vmatprep.subr.mxu0 0.0
          %2852 = vmatpush1.msra.mxu0 0.0
          %2853 = vmatprep.subr.mxu0 0.0
          %2854 = vmatpush1.msra.mxu0 0.0
          %2855 = vmatprep.subr.mxu0 0.0
          %2856 = vmatpush1.msra.mxu0 0.0
          %2857 = vmatprep.subr.mxu0 0.0
          %2858 = vmatpush1.msra.mxu0 0.0
          %2859 = vmatprep.subr.mxu0 0.0
          %2860 = vmatpush1.msra.mxu0 0.0
          %2861 = vmatprep.subr.mxu0 0.0
          %2862 = vmatpush1.msra.mxu0 0.0
          %2863 = vmatprep.subr.mxu0 0.0
          %2864 = vmatpush1.msra.mxu0 0.0
          %2865 = vmatprep.subr.mxu0 0.0
          %2866 = vmatpush1.msra.mxu0 0.0
          %2867 = vmatprep.subr.mxu0 0.0
          %2868 = vmatpush1.msra.mxu0 0.0
          %2869 = vmatprep.mubr.f32.mxu0 0.0
          %2870 = vmatmul.mubr.f32.gmra.mrb[0].mxu0 %v2637
          %v2871 = vpop.f32.mrb[0].mxu0
          %v2872 = vadd.f32 0.0, %v2871
          %v2873 = vpop.f32.mrb[0].mxu0
          %2874 = vdwg.mxu0
          %v2876 = vrot.slane %v2872, 4
          %v2877 = vrot.slane %v2872, 5
          %v2878 = vrot.slane %v2872, 6
          %v2879 = vrot.slane %v2872, 7
          %v2884 = vadd.f32 %v640, %v2876
          %v2885 = vadd.f32 %v641, %v2877
          %v2886 = vadd.f32 %v642, %v2878
          %v2887 = vadd.f32 %v643, %v2879
          %2888 = vmatprep.subr.mxu0 0.0
          %2889 = vmatpush1.msra.mxu0 %v759
          %2890 = vmatprep.subr.mxu0 0.0
          %2891 = vmatpush1.msra.mxu0 %v760
          %2892 = vmatprep.subr.mxu0 0.0
          %2893 = vmatpush1.msra.mxu0 %v761
          %2894 = vmatprep.subr.mxu0 0.0
          %2895 = vmatpush1.msra.mxu0 %v762
          %2896 = vmatprep.subr.mxu0 0.0
          %2897 = vmatpush1.msra.mxu0 0.0
          %2898 = vmatprep.subr.mxu0 0.0
          %2899 = vmatpush1.msra.mxu0 0.0
          %2900 = vmatprep.subr.mxu0 0.0
          %2901 = vmatpush1.msra.mxu0 0.0
          %2902 = vmatprep.subr.mxu0 0.0
          %2903 = vmatpush1.msra.mxu0 0.0
          %2904 = vmatprep.subr.mxu0 0.0
          %2905 = vmatpush1.msra.mxu0 0.0
          %2906 = vmatprep.subr.mxu0 0.0
          %2907 = vmatpush1.msra.mxu0 0.0
          %2908 = vmatprep.subr.mxu0 0.0
          %2909 = vmatpush1.msra.mxu0 0.0
          %2910 = vmatprep.subr.mxu0 0.0
          %2911 = vmatpush1.msra.mxu0 0.0
          %2912 = vmatprep.subr.mxu0 0.0
          %2913 = vmatpush1.msra.mxu0 0.0
          %2914 = vmatprep.subr.mxu0 0.0
          %2915 = vmatpush1.msra.mxu0 0.0
          %2916 = vmatprep.subr.mxu0 0.0
          %2917 = vmatpush1.msra.mxu0 0.0
          %2918 = vmatprep.subr.mxu0 0.0
          %2919 = vmatpush1.msra.mxu0 0.0
          %2920 = vmatprep.subr.mxu0 0.0
          %2921 = vmatpush1.msra.mxu0 0.0
          %2922 = vmatprep.subr.mxu0 0.0
          %2923 = vmatpush1.msra.mxu0 0.0
          %2924 = vmatprep.subr.mxu0 0.0
          %2925 = vmatpush1.msra.mxu0 0.0
          %2926 = vmatprep.subr.mxu0 0.0
          %2927 = vmatpush1.msra.mxu0 0.0
          %2928 = vmatprep.subr.mxu0 0.0
          %2929 = vmatpush1.msra.mxu0 0.0
          %2930 = vmatprep.subr.mxu0 0.0
          %2931 = vmatpush1.msra.mxu0 0.0
          %2932 = vmatprep.subr.mxu0 0.0
          %2933 = vmatpush1.msra.mxu0 0.0
          %2934 = vmatprep.subr.mxu0 0.0
          %2935 = vmatpush1.msra.mxu0 0.0
          %2936 = vmatprep.subr.mxu0 0.0
          %2937 = vmatpush1.msra.mxu0 0.0
          %2938 = vmatprep.subr.mxu0 0.0
          %2939 = vmatpush1.msra.mxu0 0.0
          %2940 = vmatprep.subr.mxu0 0.0
          %2941 = vmatpush1.msra.mxu0 0.0
          %2942 = vmatprep.subr.mxu0 0.0
          %2943 = vmatpush1.msra.mxu0 0.0
          %2944 = vmatprep.subr.mxu0 0.0
          %2945 = vmatpush1.msra.mxu0 0.0
          %2946 = vmatprep.subr.mxu0 0.0
          %2947 = vmatpush1.msra.mxu0 0.0
          %2948 = vmatprep.subr.mxu0 0.0
          %2949 = vmatpush1.msra.mxu0 0.0
          %2950 = vmatprep.subr.mxu0 0.0
          %2951 = vmatpush1.msra.mxu0 0.0
          %2952 = vmatprep.mubr.f32.mxu0 0.0
          %2953 = vmatmul.mubr.f32.gmra.mrb[0].mxu0 %v2637
          %v2954 = vpop.f32.mrb[0].mxu0
          %v2955 = vadd.f32 0.0, %v2954
          %v2956 = vpop.f32.mrb[0].mxu0
          %2957 = vdwg.mxu0
          %v2959 = vrot.slane %v2955, 4
          %v2960 = vrot.slane %v2955, 5
          %v2961 = vrot.slane %v2955, 6
          %v2962 = vrot.slane %v2955, 7
          %v2967 = vadd.f32 %v740, %v2959
          %v2968 = vadd.f32 %v741, %v2960
          %v2969 = vadd.f32 %v742, %v2961
          %v2970 = vadd.f32 %v743, %v2962
          %v2971 = vxor.u32 %v2718, 2147483648
          %v2972 = vxor.u32 %v2719, 2147483648
          %v2973 = vxor.u32 %v2720, 2147483648
          %v2974 = vxor.u32 %v2721, 2147483648
          %v2975 = vmul.f32 %v2971, 1.442695
          %v2976 = vpow.pop %v2975
          %v2977 = vmul.f32 %v2972, 1.442695
          %v2978 = vpow.pop %v2977
          %v2979 = vmul.f32 %v2973, 1.442695
          %v2980 = vpow.pop %v2979
          %v2981 = vmul.f32 %v2974, 1.442695
          %v2982 = vpow.pop %v2981
          %v2983 = vadd.f32 %v2976, 1.0
          %v2984 = vadd.f32 %v2978, 1.0
          %v2985 = vadd.f32 %v2980, 1.0
          %v2986 = vadd.f32 %v2982, 1.0
          %v2987 = vrcp.pop %v2983
          %v2988 = vmul.f32 1.0, %v2987
          %v2989 = vrcp.pop %v2984
          %v2990 = vmul.f32 1.0, %v2989
          %v2991 = vrcp.pop %v2985
          %v2992 = vmul.f32 1.0, %v2991
          %v2993 = vrcp.pop %v2986
          %v2994 = vmul.f32 1.0, %v2993
          %v2995 = vxor.u32 %v2801, 2147483648
          %v2996 = vxor.u32 %v2802, 2147483648
          %v2997 = vxor.u32 %v2803, 2147483648
          %v2998 = vxor.u32 %v2804, 2147483648
          %v2999 = vmul.f32 %v2995, 1.442695
          %v3000 = vpow.pop %v2999
          %v3001 = vmul.f32 %v2996, 1.442695
          %v3002 = vpow.pop %v3001
          %v3003 = vmul.f32 %v2997, 1.442695
          %v3004 = vpow.pop %v3003
          %v3005 = vmul.f32 %v2998, 1.442695
          %v3006 = vpow.pop %v3005
          %v3007 = vadd.f32 %v3000, 1.0
          %v3008 = vadd.f32 %v3002, 1.0
          %v3009 = vadd.f32 %v3004, 1.0
          %v3010 = vadd.f32 %v3006, 1.0
          %v3011 = vrcp.pop %v3007
          %v3012 = vmul.f32 1.0, %v3011
          %v3013 = vrcp.pop %v3008
          %v3014 = vmul.f32 1.0, %v3013
          %v3015 = vrcp.pop %v3009
          %v3016 = vmul.f32 1.0, %v3015
          %v3017 = vrcp.pop %v3010
          %v3018 = vmul.f32 1.0, %v3017
          %v3019 = vtanh.pop %v2884
          %v3020 = vtanh.pop %v2885
          %v3021 = vtanh.pop %v2886
          %v3022 = vtanh.pop %v2887
          %v3023 = vxor.u32 %v2967, 2147483648
          %v3024 = vxor.u32 %v2968, 2147483648
          %v3025 = vxor.u32 %v2969, 2147483648
          %v3026 = vxor.u32 %v2970, 2147483648
          %v3027 = vmul.f32 %v3023, 1.442695
          %v3028 = vpow.pop %v3027
          %v3029 = vmul.f32 %v3024, 1.442695
          %v3030 = vpow.pop %v3029
          %v3031 = vmul.f32 %v3025, 1.442695
          %v3032 = vpow.pop %v3031
          %v3033 = vmul.f32 %v3026, 1.442695
          %v3034 = vpow.pop %v3033
          %v3035 = vadd.f32 %v3028, 1.0
          %v3036 = vadd.f32 %v3030, 1.0
          %v3037 = vadd.f32 %v3032, 1.0
          %v3038 = vadd.f32 %v3034, 1.0
          %v3039 = vrcp.pop %v3035
          %v3040 = vmul.f32 1.0, %v3039
          %v3041 = vrcp.pop %v3036
          %v3042 = vmul.f32 1.0, %v3041
          %v3043 = vrcp.pop %v3037
          %v3044 = vmul.f32 1.0, %v3043
          %v3045 = vrcp.pop %v3038
          %v3046 = vmul.f32 1.0, %v3045
          %v3048 = vrot.slane %v2635, 4
          %v3049 = vrot.slane %v2635, 5
          %v3050 = vrot.slane %v2635, 6
          %v3051 = vrot.slane %v2635, 7
          %v3056 = vmul.f32 %v3012, %v3048
          %v3057 = vmul.f32 %v3014, %v3049
          %v3058 = vmul.f32 %v3016, %v3050
          %v3059 = vmul.f32 %v3018, %v3051
          %v3060 = vmul.f32 %v2988, %v3019
          %v3061 = vmul.f32 %v2990, %v3020
          %v3062 = vmul.f32 %v2992, %v3021
          %v3063 = vmul.f32 %v2994, %v3022
          %v3064 = vadd.f32 %v3056, %v3060
          %v3065 = vadd.f32 %v3057, %v3061
          %v3066 = vadd.f32 %v3058, %v3062
          %v3067 = vadd.f32 %v3059, %v3063
          %v3068 = vtanh.pop %v3064
          %v3069 = vtanh.pop %v3065
          %v3070 = vtanh.pop %v3066
          %v3071 = vtanh.pop %v3067
          %v3072 = vmul.f32 %v3040, %v3068
          %v3073 = vmul.f32 %v3042, %v3069
          %v3074 = vmul.f32 %v3044, %v3070
          %v3075 = vmul.f32 %v3046, %v3071
          %s3076 = sadd.s32 %s322, 4
          %v3077 = vstv %s3076
          %vm3078 = vcmp.lt.s32.totalorder %v3077, %v332
          %v3079 = vsel %vm3078, 1, 0
          %3080 = vset.pattern.permute.xlu0 0
          %3081 = vperm.xlu0 %3080, %v3079
          %v3082 = vpop.permute.xlu0 %3081
          %vm3083 = vcmp.eq.s32.totalorder %v3082, 1
          %v3088 = vrot.slane %v3072, 4
          %v3089 = vrot.slane %v3073, 3
          %v3090 = vsel %vm1213, %v3089, %v3088
          %v3091 = vrot.slane %v3074, 2
          %v3092 = vsel %vm1216, %v3091, %v3090
          %v3093 = vrot.slane %v3075, 1
          %v3094 = vsel %vm1219, %v3093, %v3092
          %v3096 = vsel %vm3083, %v3094, %v2623
          %v3101 = vrot.slane %v3064, 4
          %v3102 = vrot.slane %v3065, 3
          %v3103 = vsel %vm1213, %v3102, %v3101
          %v3104 = vrot.slane %v3066, 2
          %v3105 = vsel %vm1216, %v3104, %v3103
          %v3106 = vrot.slane %v3067, 1
          %v3107 = vsel %vm1219, %v3106, %v3105
          %v3109 = vsel %vm3083, %v3107, %v2635
          %v3111 = vsel %vm765, %v3096, 0
          %3113 = vmatprep.subr.mxu0 0.0
          %3114 = vmatpush1.msra.mxu0 %v744
          %3115 = vmatprep.subr.mxu0 0.0
          %3116 = vmatpush1.msra.mxu0 %v745
          %3117 = vmatprep.subr.mxu0 0.0
          %3118 = vmatpush1.msra.mxu0 %v746
          %3119 = vmatprep.subr.mxu0 0.0
          %3120 = vmatpush1.msra.mxu0 %v747
          %3121 = vmatprep.subr.mxu0 0.0
          %3122 = vmatpush1.msra.mxu0 0.0
          %3123 = vmatprep.subr.mxu0 0.0
          %3124 = vmatpush1.msra.mxu0 0.0
          %3125 = vmatprep.subr.mxu0 0.0
          %3126 = vmatpush1.msra.mxu0 0.0
          %3127 = vmatprep.subr.mxu0 0.0
          %3128 = vmatpush1.msra.mxu0 0.0
          %3129 = vmatprep.subr.mxu0 0.0
          %3130 = vmatpush1.msra.mxu0 0.0
          %3131 = vmatprep.subr.mxu0 0.0
          %3132 = vmatpush1.msra.mxu0 0.0
          %3133 = vmatprep.subr.mxu0 0.0
          %3134 = vmatpush1.msra.mxu0 0.0
          %3135 = vmatprep.subr.mxu0 0.0
          %3136 = vmatpush1.msra.mxu0 0.0
          %3137 = vmatprep.subr.mxu0 0.0
          %3138 = vmatpush1.msra.mxu0 0.0
          %3139 = vmatprep.subr.mxu0 0.0
          %3140 = vmatpush1.msra.mxu0 0.0
          %3141 = vmatprep.subr.mxu0 0.0
          %3142 = vmatpush1.msra.mxu0 0.0
          %3143 = vmatprep.subr.mxu0 0.0
          %3144 = vmatpush1.msra.mxu0 0.0
          %3145 = vmatprep.subr.mxu0 0.0
          %3146 = vmatpush1.msra.mxu0 0.0
          %3147 = vmatprep.subr.mxu0 0.0
          %3148 = vmatpush1.msra.mxu0 0.0
          %3149 = vmatprep.subr.mxu0 0.0
          %3150 = vmatpush1.msra.mxu0 0.0
          %3151 = vmatprep.subr.mxu0 0.0
          %3152 = vmatpush1.msra.mxu0 0.0
          %3153 = vmatprep.subr.mxu0 0.0
          %3154 = vmatpush1.msra.mxu0 0.0
          %3155 = vmatprep.subr.mxu0 0.0
          %3156 = vmatpush1.msra.mxu0 0.0
          %3157 = vmatprep.subr.mxu0 0.0
          %3158 = vmatpush1.msra.mxu0 0.0
          %3159 = vmatprep.subr.mxu0 0.0
          %3160 = vmatpush1.msra.mxu0 0.0
          %3161 = vmatprep.subr.mxu0 0.0
          %3162 = vmatpush1.msra.mxu0 0.0
          %3163 = vmatprep.subr.mxu0 0.0
          %3164 = vmatpush1.msra.mxu0 0.0
          %3165 = vmatprep.subr.mxu0 0.0
          %3166 = vmatpush1.msra.mxu0 0.0
          %3167 = vmatprep.subr.mxu0 0.0
          %3168 = vmatpush1.msra.mxu0 0.0
          %3169 = vmatprep.subr.mxu0 0.0
          %3170 = vmatpush1.msra.mxu0 0.0
          %3171 = vmatprep.subr.mxu0 0.0
          %3172 = vmatpush1.msra.mxu0 0.0
          %3173 = vmatprep.subr.mxu0 0.0
          %3174 = vmatpush1.msra.mxu0 0.0
          %3175 = vmatprep.subr.mxu0 0.0
          %3176 = vmatpush1.msra.mxu0 0.0
          %3177 = vmatprep.mubr.f32.mxu0 0.0
          %3178 = vmatmul.mubr.f32.gmra.mrb[0].mxu0 %v3111
          %v3179 = vpop.f32.mrb[0].mxu0
          %v3180 = vadd.f32 0.0, %v3179
          %v3181 = vpop.f32.mrb[0].mxu0
          %3182 = vdwg.mxu0
          %v3184 = vrot.slane %v3180, 3
          %v3185 = vrot.slane %v3180, 4
          %v3186 = vrot.slane %v3180, 5
          %v3187 = vrot.slane %v3180, 6
          %v3192 = vadd.f32 %v440, %v3184
          %v3193 = vadd.f32 %v441, %v3185
          %v3194 = vadd.f32 %v442, %v3186
          %v3195 = vadd.f32 %v443, %v3187
          %3196 = vmatprep.subr.mxu0 0.0
          %3197 = vmatpush1.msra.mxu0 %v749
          %3198 = vmatprep.subr.mxu0 0.0
          %3199 = vmatpush1.msra.mxu0 %v750
          %3200 = vmatprep.subr.mxu0 0.0
          %3201 = vmatpush1.msra.mxu0 %v751
          %3202 = vmatprep.subr.mxu0 0.0
          %3203 = vmatpush1.msra.mxu0 %v752
          %3204 = vmatprep.subr.mxu0 0.0
          %3205 = vmatpush1.msra.mxu0 0.0
          %3206 = vmatprep.subr.mxu0 0.0
          %3207 = vmatpush1.msra.mxu0 0.0
          %3208 = vmatprep.subr.mxu0 0.0
          %3209 = vmatpush1.msra.mxu0 0.0
          %3210 = vmatprep.subr.mxu0 0.0
          %3211 = vmatpush1.msra.mxu0 0.0
          %3212 = vmatprep.subr.mxu0 0.0
          %3213 = vmatpush1.msra.mxu0 0.0
          %3214 = vmatprep.subr.mxu0 0.0
          %3215 = vmatpush1.msra.mxu0 0.0
          %3216 = vmatprep.subr.mxu0 0.0
          %3217 = vmatpush1.msra.mxu0 0.0
          %3218 = vmatprep.subr.mxu0 0.0
          %3219 = vmatpush1.msra.mxu0 0.0
          %3220 = vmatprep.subr.mxu0 0.0
          %3221 = vmatpush1.msra.mxu0 0.0
          %3222 = vmatprep.subr.mxu0 0.0
          %3223 = vmatpush1.msra.mxu0 0.0
          %3224 = vmatprep.subr.mxu0 0.0
          %3225 = vmatpush1.msra.mxu0 0.0
          %3226 = vmatprep.subr.mxu0 0.0
          %3227 = vmatpush1.msra.mxu0 0.0
          %3228 = vmatprep.subr.mxu0 0.0
          %3229 = vmatpush1.msra.mxu0 0.0
          %3230 = vmatprep.subr.mxu0 0.0
          %3231 = vmatpush1.msra.mxu0 0.0
          %3232 = vmatprep.subr.mxu0 0.0
          %3233 = vmatpush1.msra.mxu0 0.0
          %3234 = vmatprep.subr.mxu0 0.0
          %3235 = vmatpush1.msra.mxu0 0.0
          %3236 = vmatprep.subr.mxu0 0.0
          %3237 = vmatpush1.msra.mxu0 0.0
          %3238 = vmatprep.subr.mxu0 0.0
          %3239 = vmatpush1.msra.mxu0 0.0
          %3240 = vmatprep.subr.mxu0 0.0
          %3241 = vmatpush1.msra.mxu0 0.0
          %3242 = vmatprep.subr.mxu0 0.0
          %3243 = vmatpush1.msra.mxu0 0.0
          %3244 = vmatprep.subr.mxu0 0.0
          %3245 = vmatpush1.msra.mxu0 0.0
          %3246 = vmatprep.subr.mxu0 0.0
          %3247 = vmatpush1.msra.mxu0 0.0
          %3248 = vmatprep.subr.mxu0 0.0
          %3249 = vmatpush1.msra.mxu0 0.0
          %3250 = vmatprep.subr.mxu0 0.0
          %3251 = vmatpush1.msra.mxu0 0.0
          %3252 = vmatprep.subr.mxu0 0.0
          %3253 = vmatpush1.msra.mxu0 0.0
          %3254 = vmatprep.subr.mxu0 0.0
          %3255 = vmatpush1.msra.mxu0 0.0
          %3256 = vmatprep.subr.mxu0 0.0
          %3257 = vmatpush1.msra.mxu0 0.0
          %3258 = vmatprep.subr.mxu0 0.0
          %3259 = vmatpush1.msra.mxu0 0.0
          %3260 = vmatprep.mubr.f32.mxu0 0.0
          %3261 = vmatmul.mubr.f32.gmra.mrb[0].mxu0 %v3111
          %v3262 = vpop.f32.mrb[0].mxu0
          %v3263 = vadd.f32 0.0, %v3262
          %v3264 = vpop.f32.mrb[0].mxu0
          %3265 = vdwg.mxu0
          %v3267 = vrot.slane %v3263, 3
          %v3268 = vrot.slane %v3263, 4
          %v3269 = vrot.slane %v3263, 5
          %v3270 = vrot.slane %v3263, 6
          %v3275 = vadd.f32 %v540, %v3267
          %v3276 = vadd.f32 %v541, %v3268
          %v3277 = vadd.f32 %v542, %v3269
          %v3278 = vadd.f32 %v543, %v3270
          %3279 = vmatprep.subr.mxu0 0.0
          %3280 = vmatpush1.msra.mxu0 %v754
          %3281 = vmatprep.subr.mxu0 0.0
          %3282 = vmatpush1.msra.mxu0 %v755
          %3283 = vmatprep.subr.mxu0 0.0
          %3284 = vmatpush1.msra.mxu0 %v756
          %3285 = vmatprep.subr.mxu0 0.0
          %3286 = vmatpush1.msra.mxu0 %v757
          %3287 = vmatprep.subr.mxu0 0.0
          %3288 = vmatpush1.msra.mxu0 0.0
          %3289 = vmatprep.subr.mxu0 0.0
          %3290 = vmatpush1.msra.mxu0 0.0
          %3291 = vmatprep.subr.mxu0 0.0
          %3292 = vmatpush1.msra.mxu0 0.0
          %3293 = vmatprep.subr.mxu0 0.0
          %3294 = vmatpush1.msra.mxu0 0.0
          %3295 = vmatprep.subr.mxu0 0.0
          %3296 = vmatpush1.msra.mxu0 0.0
          %3297 = vmatprep.subr.mxu0 0.0
          %3298 = vmatpush1.msra.mxu0 0.0
          %3299 = vmatprep.subr.mxu0 0.0
          %3300 = vmatpush1.msra.mxu0 0.0
          %3301 = vmatprep.subr.mxu0 0.0
          %3302 = vmatpush1.msra.mxu0 0.0
          %3303 = vmatprep.subr.mxu0 0.0
          %3304 = vmatpush1.msra.mxu0 0.0
          %3305 = vmatprep.subr.mxu0 0.0
          %3306 = vmatpush1.msra.mxu0 0.0
          %3307 = vmatprep.subr.mxu0 0.0
          %3308 = vmatpush1.msra.mxu0 0.0
          %3309 = vmatprep.subr.mxu0 0.0
          %3310 = vmatpush1.msra.mxu0 0.0
          %3311 = vmatprep.subr.mxu0 0.0
          %3312 = vmatpush1.msra.mxu0 0.0
          %3313 = vmatprep.subr.mxu0 0.0
          %3314 = vmatpush1.msra.mxu0 0.0
          %3315 = vmatprep.subr.mxu0 0.0
          %3316 = vmatpush1.msra.mxu0 0.0
          %3317 = vmatprep.subr.mxu0 0.0
          %3318 = vmatpush1.msra.mxu0 0.0
          %3319 = vmatprep.subr.mxu0 0.0
          %3320 = vmatpush1.msra.mxu0 0.0
          %3321 = vmatprep.subr.mxu0 0.0
          %3322 = vmatpush1.msra.mxu0 0.0
          %3323 = vmatprep.subr.mxu0 0.0
          %3324 = vmatpush1.msra.mxu0 0.0
          %3325 = vmatprep.subr.mxu0 0.0
          %3326 = vmatpush1.msra.mxu0 0.0
          %3327 = vmatprep.subr.mxu0 0.0
          %3328 = vmatpush1.msra.mxu0 0.0
          %3329 = vmatprep.subr.mxu0 0.0
          %3330 = vmatpush1.msra.mxu0 0.0
          %3331 = vmatprep.subr.mxu0 0.0
          %3332 = vmatpush1.msra.mxu0 0.0
          %3333 = vmatprep.subr.mxu0 0.0
          %3334 = vmatpush1.msra.mxu0 0.0
          %3335 = vmatprep.subr.mxu0 0.0
          %3336 = vmatpush1.msra.mxu0 0.0
          %3337 = vmatprep.subr.mxu0 0.0
          %3338 = vmatpush1.msra.mxu0 0.0
          %3339 = vmatprep.subr.mxu0 0.0
          %3340 = vmatpush1.msra.mxu0 0.0
          %3341 = vmatprep.subr.mxu0 0.0
          %3342 = vmatpush1.msra.mxu0 0.0
          %3343 = vmatprep.mubr.f32.mxu0 0.0
          %3344 = vmatmul.mubr.f32.gmra.mrb[0].mxu0 %v3111
          %v3345 = vpop.f32.mrb[0].mxu0
          %v3346 = vadd.f32 0.0, %v3345
          %v3347 = vpop.f32.mrb[0].mxu0
          %3348 = vdwg.mxu0
          %v3350 = vrot.slane %v3346, 3
          %v3351 = vrot.slane %v3346, 4
          %v3352 = vrot.slane %v3346, 5
          %v3353 = vrot.slane %v3346, 6
          %v3358 = vadd.f32 %v640, %v3350
          %v3359 = vadd.f32 %v641, %v3351
          %v3360 = vadd.f32 %v642, %v3352
          %v3361 = vadd.f32 %v643, %v3353
          %3362 = vmatprep.subr.mxu0 0.0
          %3363 = vmatpush1.msra.mxu0 %v759
          %3364 = vmatprep.subr.mxu0 0.0
          %3365 = vmatpush1.msra.mxu0 %v760
          %3366 = vmatprep.subr.mxu0 0.0
          %3367 = vmatpush1.msra.mxu0 %v761
          %3368 = vmatprep.subr.mxu0 0.0
          %3369 = vmatpush1.msra.mxu0 %v762
          %3370 = vmatprep.subr.mxu0 0.0
          %3371 = vmatpush1.msra.mxu0 0.0
          %3372 = vmatprep.subr.mxu0 0.0
          %3373 = vmatpush1.msra.mxu0 0.0
          %3374 = vmatprep.subr.mxu0 0.0
          %3375 = vmatpush1.msra.mxu0 0.0
          %3376 = vmatprep.subr.mxu0 0.0
          %3377 = vmatpush1.msra.mxu0 0.0
          %3378 = vmatprep.subr.mxu0 0.0
          %3379 = vmatpush1.msra.mxu0 0.0
          %3380 = vmatprep.subr.mxu0 0.0
          %3381 = vmatpush1.msra.mxu0 0.0
          %3382 = vmatprep.subr.mxu0 0.0
          %3383 = vmatpush1.msra.mxu0 0.0
          %3384 = vmatprep.subr.mxu0 0.0
          %3385 = vmatpush1.msra.mxu0 0.0
          %3386 = vmatprep.subr.mxu0 0.0
          %3387 = vmatpush1.msra.mxu0 0.0
          %3388 = vmatprep.subr.mxu0 0.0
          %3389 = vmatpush1.msra.mxu0 0.0
          %3390 = vmatprep.subr.mxu0 0.0
          %3391 = vmatpush1.msra.mxu0 0.0
          %3392 = vmatprep.subr.mxu0 0.0
          %3393 = vmatpush1.msra.mxu0 0.0
          %3394 = vmatprep.subr.mxu0 0.0
          %3395 = vmatpush1.msra.mxu0 0.0
          %3396 = vmatprep.subr.mxu0 0.0
          %3397 = vmatpush1.msra.mxu0 0.0
          %3398 = vmatprep.subr.mxu0 0.0
          %3399 = vmatpush1.msra.mxu0 0.0
          %3400 = vmatprep.subr.mxu0 0.0
          %3401 = vmatpush1.msra.mxu0 0.0
          %3402 = vmatprep.subr.mxu0 0.0
          %3403 = vmatpush1.msra.mxu0 0.0
          %3404 = vmatprep.subr.mxu0 0.0
          %3405 = vmatpush1.msra.mxu0 0.0
          %3406 = vmatprep.subr.mxu0 0.0
          %3407 = vmatpush1.msra.mxu0 0.0
          %3408 = vmatprep.subr.mxu0 0.0
          %3409 = vmatpush1.msra.mxu0 0.0
          %3410 = vmatprep.subr.mxu0 0.0
          %3411 = vmatpush1.msra.mxu0 0.0
          %3412 = vmatprep.subr.mxu0 0.0
          %3413 = vmatpush1.msra.mxu0 0.0
          %3414 = vmatprep.subr.mxu0 0.0
          %3415 = vmatpush1.msra.mxu0 0.0
          %3416 = vmatprep.subr.mxu0 0.0
          %3417 = vmatpush1.msra.mxu0 0.0
          %3418 = vmatprep.subr.mxu0 0.0
          %3419 = vmatpush1.msra.mxu0 0.0
          %3420 = vmatprep.subr.mxu0 0.0
          %3421 = vmatpush1.msra.mxu0 0.0
          %3422 = vmatprep.subr.mxu0 0.0
          %3423 = vmatpush1.msra.mxu0 0.0
          %3424 = vmatprep.subr.mxu0 0.0
          %3425 = vmatpush1.msra.mxu0 0.0
          %3426 = vmatprep.mubr.f32.mxu0 0.0
          %3427 = vmatmul.mubr.f32.gmra.mrb[0].mxu0 %v3111
          %v3428 = vpop.f32.mrb[0].mxu0
          %v3429 = vadd.f32 0.0, %v3428
          %v3430 = vpop.f32.mrb[0].mxu0
          %3431 = vdwg.mxu0
          %v3433 = vrot.slane %v3429, 3
          %v3434 = vrot.slane %v3429, 4
          %v3435 = vrot.slane %v3429, 5
          %v3436 = vrot.slane %v3429, 6
          %v3441 = vadd.f32 %v740, %v3433
          %v3442 = vadd.f32 %v741, %v3434
          %v3443 = vadd.f32 %v742, %v3435
          %v3444 = vadd.f32 %v743, %v3436
          %v3445 = vxor.u32 %v3192, 2147483648
          %v3446 = vxor.u32 %v3193, 2147483648
          %v3447 = vxor.u32 %v3194, 2147483648
          %v3448 = vxor.u32 %v3195, 2147483648
          %v3449 = vmul.f32 %v3445, 1.442695
          %v3450 = vpow.pop %v3449
          %v3451 = vmul.f32 %v3446, 1.442695
          %v3452 = vpow.pop %v3451
          %v3453 = vmul.f32 %v3447, 1.442695
          %v3454 = vpow.pop %v3453
          %v3455 = vmul.f32 %v3448, 1.442695
          %v3456 = vpow.pop %v3455
          %v3457 = vadd.f32 %v3450, 1.0
          %v3458 = vadd.f32 %v3452, 1.0
          %v3459 = vadd.f32 %v3454, 1.0
          %v3460 = vadd.f32 %v3456, 1.0
          %v3461 = vrcp.pop %v3457
          %v3462 = vmul.f32 1.0, %v3461
          %v3463 = vrcp.pop %v3458
          %v3464 = vmul.f32 1.0, %v3463
          %v3465 = vrcp.pop %v3459
          %v3466 = vmul.f32 1.0, %v3465
          %v3467 = vrcp.pop %v3460
          %v3468 = vmul.f32 1.0, %v3467
          %v3469 = vxor.u32 %v3275, 2147483648
          %v3470 = vxor.u32 %v3276, 2147483648
          %v3471 = vxor.u32 %v3277, 2147483648
          %v3472 = vxor.u32 %v3278, 2147483648
          %v3473 = vmul.f32 %v3469, 1.442695
          %v3474 = vpow.pop %v3473
          %v3475 = vmul.f32 %v3470, 1.442695
          %v3476 = vpow.pop %v3475
          %v3477 = vmul.f32 %v3471, 1.442695
          %v3478 = vpow.pop %v3477
          %v3479 = vmul.f32 %v3472, 1.442695
          %v3480 = vpow.pop %v3479
          %v3481 = vadd.f32 %v3474, 1.0
          %v3482 = vadd.f32 %v3476, 1.0
          %v3483 = vadd.f32 %v3478, 1.0
          %v3484 = vadd.f32 %v3480, 1.0
          %v3485 = vrcp.pop %v3481
          %v3486 = vmul.f32 1.0, %v3485
          %v3487 = vrcp.pop %v3482
          %v3488 = vmul.f32 1.0, %v3487
          %v3489 = vrcp.pop %v3483
          %v3490 = vmul.f32 1.0, %v3489
          %v3491 = vrcp.pop %v3484
          %v3492 = vmul.f32 1.0, %v3491
          %v3493 = vtanh.pop %v3358
          %v3494 = vtanh.pop %v3359
          %v3495 = vtanh.pop %v3360
          %v3496 = vtanh.pop %v3361
          %v3497 = vxor.u32 %v3441, 2147483648
          %v3498 = vxor.u32 %v3442, 2147483648
          %v3499 = vxor.u32 %v3443, 2147483648
          %v3500 = vxor.u32 %v3444, 2147483648
          %v3501 = vmul.f32 %v3497, 1.442695
          %v3502 = vpow.pop %v3501
          %v3503 = vmul.f32 %v3498, 1.442695
          %v3504 = vpow.pop %v3503
          %v3505 = vmul.f32 %v3499, 1.442695
          %v3506 = vpow.pop %v3505
          %v3507 = vmul.f32 %v3500, 1.442695
          %v3508 = vpow.pop %v3507
          %v3509 = vadd.f32 %v3502, 1.0
          %v3510 = vadd.f32 %v3504, 1.0
          %v3511 = vadd.f32 %v3506, 1.0
          %v3512 = vadd.f32 %v3508, 1.0
          %v3513 = vrcp.pop %v3509
          %v3514 = vmul.f32 1.0, %v3513
          %v3515 = vrcp.pop %v3510
          %v3516 = vmul.f32 1.0, %v3515
          %v3517 = vrcp.pop %v3511
          %v3518 = vmul.f32 1.0, %v3517
          %v3519 = vrcp.pop %v3512
          %v3520 = vmul.f32 1.0, %v3519
          %v3522 = vrot.slane %v3109, 3
          %v3523 = vrot.slane %v3109, 4
          %v3524 = vrot.slane %v3109, 5
          %v3525 = vrot.slane %v3109, 6
          %v3530 = vmul.f32 %v3486, %v3522
          %v3531 = vmul.f32 %v3488, %v3523
          %v3532 = vmul.f32 %v3490, %v3524
          %v3533 = vmul.f32 %v3492, %v3525
          %v3534 = vmul.f32 %v3462, %v3493
          %v3535 = vmul.f32 %v3464, %v3494
          %v3536 = vmul.f32 %v3466, %v3495
          %v3537 = vmul.f32 %v3468, %v3496
          %v3538 = vadd.f32 %v3530, %v3534
          %v3539 = vadd.f32 %v3531, %v3535
          %v3540 = vadd.f32 %v3532, %v3536
          %v3541 = vadd.f32 %v3533, %v3537
          %v3542 = vtanh.pop %v3538
          %v3543 = vtanh.pop %v3539
          %v3544 = vtanh.pop %v3540
          %v3545 = vtanh.pop %v3541
          %v3546 = vmul.f32 %v3514, %v3542
          %v3547 = vmul.f32 %v3516, %v3543
          %v3548 = vmul.f32 %v3518, %v3544
          %v3549 = vmul.f32 %v3520, %v3545
          %s3550 = sadd.s32 %s322, 5
          %v3551 = vstv %s3550
          %vm3552 = vcmp.lt.s32.totalorder %v3551, %v332
          %v3553 = vsel %vm3552, 1, 0
          %3554 = vset.pattern.permute.xlu0 0
          %3555 = vperm.xlu0 %3554, %v3553
          %v3556 = vpop.permute.xlu0 %3555
          %vm3557 = vcmp.eq.s32.totalorder %v3556, 1
          %v3562 = vrot.slane %v3546, 5
          %v3563 = vrot.slane %v3547, 4
          %v3564 = vsel %vm1213, %v3563, %v3562
          %v3565 = vrot.slane %v3548, 3
          %v3566 = vsel %vm1216, %v3565, %v3564
          %v3567 = vrot.slane %v3549, 2
          %v3568 = vsel %vm1219, %v3567, %v3566
          %v3570 = vsel %vm3557, %v3568, %v3096
          %v3575 = vrot.slane %v3538, 5
          %v3576 = vrot.slane %v3539, 4
          %v3577 = vsel %vm1213, %v3576, %v3575
          %v3578 = vrot.slane %v3540, 3
          %v3579 = vsel %vm1216, %v3578, %v3577
          %v3580 = vrot.slane %v3541, 2
          %v3581 = vsel %vm1219, %v3580, %v3579
          %v3583 = vsel %vm3557, %v3581, %v3109
          %v3585 = vsel %vm765, %v3570, 0
          %3587 = vmatprep.subr.mxu0 0.0
          %3588 = vmatpush1.msra.mxu0 %v744
          %3589 = vmatprep.subr.mxu0 0.0
          %3590 = vmatpush1.msra.mxu0 %v745
          %3591 = vmatprep.subr.mxu0 0.0
          %3592 = vmatpush1.msra.mxu0 %v746
          %3593 = vmatprep.subr.mxu0 0.0
          %3594 = vmatpush1.msra.mxu0 %v747
          %3595 = vmatprep.subr.mxu0 0.0
          %3596 = vmatpush1.msra.mxu0 0.0
          %3597 = vmatprep.subr.mxu0 0.0
          %3598 = vmatpush1.msra.mxu0 0.0
          %3599 = vmatprep.subr.mxu0 0.0
          %3600 = vmatpush1.msra.mxu0 0.0
          %3601 = vmatprep.subr.mxu0 0.0
          %3602 = vmatpush1.msra.mxu0 0.0
          %3603 = vmatprep.subr.mxu0 0.0
          %3604 = vmatpush1.msra.mxu0 0.0
          %3605 = vmatprep.subr.mxu0 0.0
          %3606 = vmatpush1.msra.mxu0 0.0
          %3607 = vmatprep.subr.mxu0 0.0
          %3608 = vmatpush1.msra.mxu0 0.0
          %3609 = vmatprep.subr.mxu0 0.0
          %3610 = vmatpush1.msra.mxu0 0.0
          %3611 = vmatprep.subr.mxu0 0.0
          %3612 = vmatpush1.msra.mxu0 0.0
          %3613 = vmatprep.subr.mxu0 0.0
          %3614 = vmatpush1.msra.mxu0 0.0
          %3615 = vmatprep.subr.mxu0 0.0
          %3616 = vmatpush1.msra.mxu0 0.0
          %3617 = vmatprep.subr.mxu0 0.0
          %3618 = vmatpush1.msra.mxu0 0.0
          %3619 = vmatprep.subr.mxu0 0.0
          %3620 = vmatpush1.msra.mxu0 0.0
          %3621 = vmatprep.subr.mxu0 0.0
          %3622 = vmatpush1.msra.mxu0 0.0
          %3623 = vmatprep.subr.mxu0 0.0
          %3624 = vmatpush1.msra.mxu0 0.0
          %3625 = vmatprep.subr.mxu0 0.0
          %3626 = vmatpush1.msra.mxu0 0.0
          %3627 = vmatprep.subr.mxu0 0.0
          %3628 = vmatpush1.msra.mxu0 0.0
          %3629 = vmatprep.subr.mxu0 0.0
          %3630 = vmatpush1.msra.mxu0 0.0
          %3631 = vmatprep.subr.mxu0 0.0
          %3632 = vmatpush1.msra.mxu0 0.0
          %3633 = vmatprep.subr.mxu0 0.0
          %3634 = vmatpush1.msra.mxu0 0.0
          %3635 = vmatprep.subr.mxu0 0.0
          %3636 = vmatpush1.msra.mxu0 0.0
          %3637 = vmatprep.subr.mxu0 0.0
          %3638 = vmatpush1.msra.mxu0 0.0
          %3639 = vmatprep.subr.mxu0 0.0
          %3640 = vmatpush1.msra.mxu0 0.0
          %3641 = vmatprep.subr.mxu0 0.0
          %3642 = vmatpush1.msra.mxu0 0.0
          %3643 = vmatprep.subr.mxu0 0.0
          %3644 = vmatpush1.msra.mxu0 0.0
          %3645 = vmatprep.subr.mxu0 0.0
          %3646 = vmatpush1.msra.mxu0 0.0
          %3647 = vmatprep.subr.mxu0 0.0
          %3648 = vmatpush1.msra.mxu0 0.0
          %3649 = vmatprep.subr.mxu0 0.0
          %3650 = vmatpush1.msra.mxu0 0.0
          %3651 = vmatprep.mubr.f32.mxu0 0.0
          %3652 = vmatmul.mubr.f32.gmra.mrb[0].mxu0 %v3585
          %v3653 = vpop.f32.mrb[0].mxu0
          %v3654 = vadd.f32 0.0, %v3653
          %v3655 = vpop.f32.mrb[0].mxu0
          %3656 = vdwg.mxu0
          %v3658 = vrot.slane %v3654, 2
          %v3659 = vrot.slane %v3654, 3
          %v3660 = vrot.slane %v3654, 4
          %v3661 = vrot.slane %v3654, 5
          %v3666 = vadd.f32 %v440, %v3658
          %v3667 = vadd.f32 %v441, %v3659
          %v3668 = vadd.f32 %v442, %v3660
          %v3669 = vadd.f32 %v443, %v3661
          %3670 = vmatprep.subr.mxu0 0.0
          %3671 = vmatpush1.msra.mxu0 %v749
          %3672 = vmatprep.subr.mxu0 0.0
          %3673 = vmatpush1.msra.mxu0 %v750
          %3674 = vmatprep.subr.mxu0 0.0
          %3675 = vmatpush1.msra.mxu0 %v751
          %3676 = vmatprep.subr.mxu0 0.0
          %3677 = vmatpush1.msra.mxu0 %v752
          %3678 = vmatprep.subr.mxu0 0.0
          %3679 = vmatpush1.msra.mxu0 0.0
          %3680 = vmatprep.subr.mxu0 0.0
          %3681 = vmatpush1.msra.mxu0 0.0
          %3682 = vmatprep.subr.mxu0 0.0
          %3683 = vmatpush1.msra.mxu0 0.0
          %3684 = vmatprep.subr.mxu0 0.0
          %3685 = vmatpush1.msra.mxu0 0.0
          %3686 = vmatprep.subr.mxu0 0.0
          %3687 = vmatpush1.msra.mxu0 0.0
          %3688 = vmatprep.subr.mxu0 0.0
          %3689 = vmatpush1.msra.mxu0 0.0
          %3690 = vmatprep.subr.mxu0 0.0
          %3691 = vmatpush1.msra.mxu0 0.0
          %3692 = vmatprep.subr.mxu0 0.0
          %3693 = vmatpush1.msra.mxu0 0.0
          %3694 = vmatprep.subr.mxu0 0.0
          %3695 = vmatpush1.msra.mxu0 0.0
          %3696 = vmatprep.subr.mxu0 0.0
          %3697 = vmatpush1.msra.mxu0 0.0
          %3698 = vmatprep.subr.mxu0 0.0
          %3699 = vmatpush1.msra.mxu0 0.0
          %3700 = vmatprep.subr.mxu0 0.0
          %3701 = vmatpush1.msra.mxu0 0.0
          %3702 = vmatprep.subr.mxu0 0.0
          %3703 = vmatpush1.msra.mxu0 0.0
          %3704 = vmatprep.subr.mxu0 0.0
          %3705 = vmatpush1.msra.mxu0 0.0
          %3706 = vmatprep.subr.mxu0 0.0
          %3707 = vmatpush1.msra.mxu0 0.0
          %3708 = vmatprep.subr.mxu0 0.0
          %3709 = vmatpush1.msra.mxu0 0.0
          %3710 = vmatprep.subr.mxu0 0.0
          %3711 = vmatpush1.msra.mxu0 0.0
          %3712 = vmatprep.subr.mxu0 0.0
          %3713 = vmatpush1.msra.mxu0 0.0
          %3714 = vmatprep.subr.mxu0 0.0
          %3715 = vmatpush1.msra.mxu0 0.0
          %3716 = vmatprep.subr.mxu0 0.0
          %3717 = vmatpush1.msra.mxu0 0.0
          %3718 = vmatprep.subr.mxu0 0.0
          %3719 = vmatpush1.msra.mxu0 0.0
          %3720 = vmatprep.subr.mxu0 0.0
          %3721 = vmatpush1.msra.mxu0 0.0
          %3722 = vmatprep.subr.mxu0 0.0
          %3723 = vmatpush1.msra.mxu0 0.0
          %3724 = vmatprep.subr.mxu0 0.0
          %3725 = vmatpush1.msra.mxu0 0.0
          %3726 = vmatprep.subr.mxu0 0.0
          %3727 = vmatpush1.msra.mxu0 0.0
          %3728 = vmatprep.subr.mxu0 0.0
          %3729 = vmatpush1.msra.mxu0 0.0
          %3730 = vmatprep.subr.mxu0 0.0
          %3731 = vmatpush1.msra.mxu0 0.0
          %3732 = vmatprep.subr.mxu0 0.0
          %3733 = vmatpush1.msra.mxu0 0.0
          %3734 = vmatprep.mubr.f32.mxu0 0.0
          %3735 = vmatmul.mubr.f32.gmra.mrb[0].mxu0 %v3585
          %v3736 = vpop.f32.mrb[0].mxu0
          %v3737 = vadd.f32 0.0, %v3736
          %v3738 = vpop.f32.mrb[0].mxu0
          %3739 = vdwg.mxu0
          %v3741 = vrot.slane %v3737, 2
          %v3742 = vrot.slane %v3737, 3
          %v3743 = vrot.slane %v3737, 4
          %v3744 = vrot.slane %v3737, 5
          %v3749 = vadd.f32 %v540, %v3741
          %v3750 = vadd.f32 %v541, %v3742
          %v3751 = vadd.f32 %v542, %v3743
          %v3752 = vadd.f32 %v543, %v3744
          %3753 = vmatprep.subr.mxu0 0.0
          %3754 = vmatpush1.msra.mxu0 %v754
          %3755 = vmatprep.subr.mxu0 0.0
          %3756 = vmatpush1.msra.mxu0 %v755
          %3757 = vmatprep.subr.mxu0 0.0
          %3758 = vmatpush1.msra.mxu0 %v756
          %3759 = vmatprep.subr.mxu0 0.0
          %3760 = vmatpush1.msra.mxu0 %v757
          %3761 = vmatprep.subr.mxu0 0.0
          %3762 = vmatpush1.msra.mxu0 0.0
          %3763 = vmatprep.subr.mxu0 0.0
          %3764 = vmatpush1.msra.mxu0 0.0
          %3765 = vmatprep.subr.mxu0 0.0
          %3766 = vmatpush1.msra.mxu0 0.0
          %3767 = vmatprep.subr.mxu0 0.0
          %3768 = vmatpush1.msra.mxu0 0.0
          %3769 = vmatprep.subr.mxu0 0.0
          %3770 = vmatpush1.msra.mxu0 0.0
          %3771 = vmatprep.subr.mxu0 0.0
          %3772 = vmatpush1.msra.mxu0 0.0
          %3773 = vmatprep.subr.mxu0 0.0
          %3774 = vmatpush1.msra.mxu0 0.0
          %3775 = vmatprep.subr.mxu0 0.0
          %3776 = vmatpush1.msra.mxu0 0.0
          %3777 = vmatprep.subr.mxu0 0.0
          %3778 = vmatpush1.msra.mxu0 0.0
          %3779 = vmatprep.subr.mxu0 0.0
          %3780 = vmatpush1.msra.mxu0 0.0
          %3781 = vmatprep.subr.mxu0 0.0
          %3782 = vmatpush1.msra.mxu0 0.0
          %3783 = vmatprep.subr.mxu0 0.0
          %3784 = vmatpush1.msra.mxu0 0.0
          %3785 = vmatprep.subr.mxu0 0.0
          %3786 = vmatpush1.msra.mxu0 0.0
          %3787 = vmatprep.subr.mxu0 0.0
          %3788 = vmatpush1.msra.mxu0 0.0
          %3789 = vmatprep.subr.mxu0 0.0
          %3790 = vmatpush1.msra.mxu0 0.0
          %3791 = vmatprep.subr.mxu0 0.0
          %3792 = vmatpush1.msra.mxu0 0.0
          %3793 = vmatprep.subr.mxu0 0.0
          %3794 = vmatpush1.msra.mxu0 0.0
          %3795 = vmatprep.subr.mxu0 0.0
          %3796 = vmatpush1.msra.mxu0 0.0
          %3797 = vmatprep.subr.mxu0 0.0
          %3798 = vmatpush1.msra.mxu0 0.0
          %3799 = vmatprep.subr.mxu0 0.0
          %3800 = vmatpush1.msra.mxu0 0.0
          %3801 = vmatprep.subr.mxu0 0.0
          %3802 = vmatpush1.msra.mxu0 0.0
          %3803 = vmatprep.subr.mxu0 0.0
          %3804 = vmatpush1.msra.mxu0 0.0
          %3805 = vmatprep.subr.mxu0 0.0
          %3806 = vmatpush1.msra.mxu0 0.0
          %3807 = vmatprep.subr.mxu0 0.0
          %3808 = vmatpush1.msra.mxu0 0.0
          %3809 = vmatprep.subr.mxu0 0.0
          %3810 = vmatpush1.msra.mxu0 0.0
          %3811 = vmatprep.subr.mxu0 0.0
          %3812 = vmatpush1.msra.mxu0 0.0
          %3813 = vmatprep.subr.mxu0 0.0
          %3814 = vmatpush1.msra.mxu0 0.0
          %3815 = vmatprep.subr.mxu0 0.0
          %3816 = vmatpush1.msra.mxu0 0.0
          %3817 = vmatprep.mubr.f32.mxu0 0.0
          %3818 = vmatmul.mubr.f32.gmra.mrb[0].mxu0 %v3585
          %v3819 = vpop.f32.mrb[0].mxu0
          %v3820 = vadd.f32 0.0, %v3819
          %v3821 = vpop.f32.mrb[0].mxu0
          %3822 = vdwg.mxu0
          %v3824 = vrot.slane %v3820, 2
          %v3825 = vrot.slane %v3820, 3
          %v3826 = vrot.slane %v3820, 4
          %v3827 = vrot.slane %v3820, 5
          %v3832 = vadd.f32 %v640, %v3824
          %v3833 = vadd.f32 %v641, %v3825
          %v3834 = vadd.f32 %v642, %v3826
          %v3835 = vadd.f32 %v643, %v3827
          %3836 = vmatprep.subr.mxu0 0.0
          %3837 = vmatpush1.msra.mxu0 %v759
          %3838 = vmatprep.subr.mxu0 0.0
          %3839 = vmatpush1.msra.mxu0 %v760
          %3840 = vmatprep.subr.mxu0 0.0
          %3841 = vmatpush1.msra.mxu0 %v761
          %3842 = vmatprep.subr.mxu0 0.0
          %3843 = vmatpush1.msra.mxu0 %v762
          %3844 = vmatprep.subr.mxu0 0.0
          %3845 = vmatpush1.msra.mxu0 0.0
          %3846 = vmatprep.subr.mxu0 0.0
          %3847 = vmatpush1.msra.mxu0 0.0
          %3848 = vmatprep.subr.mxu0 0.0
          %3849 = vmatpush1.msra.mxu0 0.0
          %3850 = vmatprep.subr.mxu0 0.0
          %3851 = vmatpush1.msra.mxu0 0.0
          %3852 = vmatprep.subr.mxu0 0.0
          %3853 = vmatpush1.msra.mxu0 0.0
          %3854 = vmatprep.subr.mxu0 0.0
          %3855 = vmatpush1.msra.mxu0 0.0
          %3856 = vmatprep.subr.mxu0 0.0
          %3857 = vmatpush1.msra.mxu0 0.0
          %3858 = vmatprep.subr.mxu0 0.0
          %3859 = vmatpush1.msra.mxu0 0.0
          %3860 = vmatprep.subr.mxu0 0.0
          %3861 = vmatpush1.msra.mxu0 0.0
          %3862 = vmatprep.subr.mxu0 0.0
          %3863 = vmatpush1.msra.mxu0 0.0
          %3864 = vmatprep.subr.mxu0 0.0
          %3865 = vmatpush1.msra.mxu0 0.0
          %3866 = vmatprep.subr.mxu0 0.0
          %3867 = vmatpush1.msra.mxu0 0.0
          %3868 = vmatprep.subr.mxu0 0.0
          %3869 = vmatpush1.msra.mxu0 0.0
          %3870 = vmatprep.subr.mxu0 0.0
          %3871 = vmatpush1.msra.mxu0 0.0
          %3872 = vmatprep.subr.mxu0 0.0
          %3873 = vmatpush1.msra.mxu0 0.0
          %3874 = vmatprep.subr.mxu0 0.0
          %3875 = vmatpush1.msra.mxu0 0.0
          %3876 = vmatprep.subr.mxu0 0.0
          %3877 = vmatpush1.msra.mxu0 0.0
          %3878 = vmatprep.subr.mxu0 0.0
          %3879 = vmatpush1.msra.mxu0 0.0
          %3880 = vmatprep.subr.mxu0 0.0
          %3881 = vmatpush1.msra.mxu0 0.0
          %3882 = vmatprep.subr.mxu0 0.0
          %3883 = vmatpush1.msra.mxu0 0.0
          %3884 = vmatprep.subr.mxu0 0.0
          %3885 = vmatpush1.msra.mxu0 0.0
          %3886 = vmatprep.subr.mxu0 0.0
          %3887 = vmatpush1.msra.mxu0 0.0
          %3888 = vmatprep.subr.mxu0 0.0
          %3889 = vmatpush1.msra.mxu0 0.0
          %3890 = vmatprep.subr.mxu0 0.0
          %3891 = vmatpush1.msra.mxu0 0.0
          %3892 = vmatprep.subr.mxu0 0.0
          %3893 = vmatpush1.msra.mxu0 0.0
          %3894 = vmatprep.subr.mxu0 0.0
          %3895 = vmatpush1.msra.mxu0 0.0
          %3896 = vmatprep.subr.mxu0 0.0
          %3897 = vmatpush1.msra.mxu0 0.0
          %3898 = vmatprep.subr.mxu0 0.0
          %3899 = vmatpush1.msra.mxu0 0.0
          %3900 = vmatprep.mubr.f32.mxu0 0.0
          %3901 = vmatmul.mubr.f32.gmra.mrb[0].mxu0 %v3585
          %v3902 = vpop.f32.mrb[0].mxu0
          %v3903 = vadd.f32 0.0, %v3902
          %v3904 = vpop.f32.mrb[0].mxu0
          %3905 = vdwg.mxu0
          %v3907 = vrot.slane %v3903, 2
          %v3908 = vrot.slane %v3903, 3
          %v3909 = vrot.slane %v3903, 4
          %v3910 = vrot.slane %v3903, 5
          %v3915 = vadd.f32 %v740, %v3907
          %v3916 = vadd.f32 %v741, %v3908
          %v3917 = vadd.f32 %v742, %v3909
          %v3918 = vadd.f32 %v743, %v3910
          %v3919 = vxor.u32 %v3666, 2147483648
          %v3920 = vxor.u32 %v3667, 2147483648
          %v3921 = vxor.u32 %v3668, 2147483648
          %v3922 = vxor.u32 %v3669, 2147483648
          %v3923 = vmul.f32 %v3919, 1.442695
          %v3924 = vpow.pop %v3923
          %v3925 = vmul.f32 %v3920, 1.442695
          %v3926 = vpow.pop %v3925
          %v3927 = vmul.f32 %v3921, 1.442695
          %v3928 = vpow.pop %v3927
          %v3929 = vmul.f32 %v3922, 1.442695
          %v3930 = vpow.pop %v3929
          %v3931 = vadd.f32 %v3924, 1.0
          %v3932 = vadd.f32 %v3926, 1.0
          %v3933 = vadd.f32 %v3928, 1.0
          %v3934 = vadd.f32 %v3930, 1.0
          %v3935 = vrcp.pop %v3931
          %v3936 = vmul.f32 1.0, %v3935
          %v3937 = vrcp.pop %v3932
          %v3938 = vmul.f32 1.0, %v3937
          %v3939 = vrcp.pop %v3933
          %v3940 = vmul.f32 1.0, %v3939
          %v3941 = vrcp.pop %v3934
          %v3942 = vmul.f32 1.0, %v3941
          %v3943 = vxor.u32 %v3749, 2147483648
          %v3944 = vxor.u32 %v3750, 2147483648
          %v3945 = vxor.u32 %v3751, 2147483648
          %v3946 = vxor.u32 %v3752, 2147483648
          %v3947 = vmul.f32 %v3943, 1.442695
          %v3948 = vpow.pop %v3947
          %v3949 = vmul.f32 %v3944, 1.442695
          %v3950 = vpow.pop %v3949
          %v3951 = vmul.f32 %v3945, 1.442695
          %v3952 = vpow.pop %v3951
          %v3953 = vmul.f32 %v3946, 1.442695
          %v3954 = vpow.pop %v3953
          %v3955 = vadd.f32 %v3948, 1.0
          %v3956 = vadd.f32 %v3950, 1.0
          %v3957 = vadd.f32 %v3952, 1.0
          %v3958 = vadd.f32 %v3954, 1.0
          %v3959 = vrcp.pop %v3955
          %v3960 = vmul.f32 1.0, %v3959
          %v3961 = vrcp.pop %v3956
          %v3962 = vmul.f32 1.0, %v3961
          %v3963 = vrcp.pop %v3957
          %v3964 = vmul.f32 1.0, %v3963
          %v3965 = vrcp.pop %v3958
          %v3966 = vmul.f32 1.0, %v3965
          %v3967 = vtanh.pop %v3832
          %v3968 = vtanh.pop %v3833
          %v3969 = vtanh.pop %v3834
          %v3970 = vtanh.pop %v3835
          %v3971 = vxor.u32 %v3915, 2147483648
          %v3972 = vxor.u32 %v3916, 2147483648
          %v3973 = vxor.u32 %v3917, 2147483648
          %v3974 = vxor.u32 %v3918, 2147483648
          %v3975 = vmul.f32 %v3971, 1.442695
          %v3976 = vpow.pop %v3975
          %v3977 = vmul.f32 %v3972, 1.442695
          %v3978 = vpow.pop %v3977
          %v3979 = vmul.f32 %v3973, 1.442695
          %v3980 = vpow.pop %v3979
          %v3981 = vmul.f32 %v3974, 1.442695
          %v3982 = vpow.pop %v3981
          %v3983 = vadd.f32 %v3976, 1.0
          %v3984 = vadd.f32 %v3978, 1.0
          %v3985 = vadd.f32 %v3980, 1.0
          %v3986 = vadd.f32 %v3982, 1.0
          %v3987 = vrcp.pop %v3983
          %v3988 = vmul.f32 1.0, %v3987
          %v3989 = vrcp.pop %v3984
          %v3990 = vmul.f32 1.0, %v3989
          %v3991 = vrcp.pop %v3985
          %v3992 = vmul.f32 1.0, %v3991
          %v3993 = vrcp.pop %v3986
          %v3994 = vmul.f32 1.0, %v3993
          %v3996 = vrot.slane %v3583, 2
          %v3997 = vrot.slane %v3583, 3
          %v3998 = vrot.slane %v3583, 4
          %v3999 = vrot.slane %v3583, 5
          %v4004 = vmul.f32 %v3960, %v3996
          %v4005 = vmul.f32 %v3962, %v3997
          %v4006 = vmul.f32 %v3964, %v3998
          %v4007 = vmul.f32 %v3966, %v3999
          %v4008 = vmul.f32 %v3936, %v3967
          %v4009 = vmul.f32 %v3938, %v3968
          %v4010 = vmul.f32 %v3940, %v3969
          %v4011 = vmul.f32 %v3942, %v3970
          %v4012 = vadd.f32 %v4004, %v4008
          %v4013 = vadd.f32 %v4005, %v4009
          %v4014 = vadd.f32 %v4006, %v4010
          %v4015 = vadd.f32 %v4007, %v4011
          %v4016 = vtanh.pop %v4012
          %v4017 = vtanh.pop %v4013
          %v4018 = vtanh.pop %v4014
          %v4019 = vtanh.pop %v4015
          %v4020 = vmul.f32 %v3988, %v4016
          %v4021 = vmul.f32 %v3990, %v4017
          %v4022 = vmul.f32 %v3992, %v4018
          %v4023 = vmul.f32 %v3994, %v4019
          %s4024 = sadd.s32 %s322, 6
          %v4025 = vstv %s4024
          %vm4026 = vcmp.lt.s32.totalorder %v4025, %v332
          %v4027 = vsel %vm4026, 1, 0
          %4028 = vset.pattern.permute.xlu0 0
          %4029 = vperm.xlu0 %4028, %v4027
          %v4030 = vpop.permute.xlu0 %4029
          %vm4031 = vcmp.eq.s32.totalorder %v4030, 1
          %v4036 = vrot.slane %v4020, 6
          %v4037 = vrot.slane %v4021, 5
          %v4038 = vsel %vm1213, %v4037, %v4036
          %v4039 = vrot.slane %v4022, 4
          %v4040 = vsel %vm1216, %v4039, %v4038
          %v4041 = vrot.slane %v4023, 3
          %v4042 = vsel %vm1219, %v4041, %v4040
          %v4044 = vsel %vm4031, %v4042, %v3570
          %v4049 = vrot.slane %v4012, 6
          %v4050 = vrot.slane %v4013, 5
          %v4051 = vsel %vm1213, %v4050, %v4049
          %v4052 = vrot.slane %v4014, 4
          %v4053 = vsel %vm1216, %v4052, %v4051
          %v4054 = vrot.slane %v4015, 3
          %v4055 = vsel %vm1219, %v4054, %v4053
          %v4057 = vsel %vm4031, %v4055, %v3583
          %v4059 = vsel %vm765, %v4044, 0
          %4061 = vmatprep.subr.mxu0 0.0
          %4062 = vmatpush1.msra.mxu0 %v744
          %4063 = vmatprep.subr.mxu0 0.0
          %4064 = vmatpush1.msra.mxu0 %v745
          %4065 = vmatprep.subr.mxu0 0.0
          %4066 = vmatpush1.msra.mxu0 %v746
          %4067 = vmatprep.subr.mxu0 0.0
          %4068 = vmatpush1.msra.mxu0 %v747
          %4069 = vmatprep.subr.mxu0 0.0
          %4070 = vmatpush1.msra.mxu0 0.0
          %4071 = vmatprep.subr.mxu0 0.0
          %4072 = vmatpush1.msra.mxu0 0.0
          %4073 = vmatprep.subr.mxu0 0.0
          %4074 = vmatpush1.msra.mxu0 0.0
          %4075 = vmatprep.subr.mxu0 0.0
          %4076 = vmatpush1.msra.mxu0 0.0
          %4077 = vmatprep.subr.mxu0 0.0
          %4078 = vmatpush1.msra.mxu0 0.0
          %4079 = vmatprep.subr.mxu0 0.0
          %4080 = vmatpush1.msra.mxu0 0.0
          %4081 = vmatprep.subr.mxu0 0.0
          %4082 = vmatpush1.msra.mxu0 0.0
          %4083 = vmatprep.subr.mxu0 0.0
          %4084 = vmatpush1.msra.mxu0 0.0
          %4085 = vmatprep.subr.mxu0 0.0
          %4086 = vmatpush1.msra.mxu0 0.0
          %4087 = vmatprep.subr.mxu0 0.0
          %4088 = vmatpush1.msra.mxu0 0.0
          %4089 = vmatprep.subr.mxu0 0.0
          %4090 = vmatpush1.msra.mxu0 0.0
          %4091 = vmatprep.subr.mxu0 0.0
          %4092 = vmatpush1.msra.mxu0 0.0
          %4093 = vmatprep.subr.mxu0 0.0
          %4094 = vmatpush1.msra.mxu0 0.0
          %4095 = vmatprep.subr.mxu0 0.0
          %4096 = vmatpush1.msra.mxu0 0.0
          %4097 = vmatprep.subr.mxu0 0.0
          %4098 = vmatpush1.msra.mxu0 0.0
          %4099 = vmatprep.subr.mxu0 0.0
          %4100 = vmatpush1.msra.mxu0 0.0
          %4101 = vmatprep.subr.mxu0 0.0
          %4102 = vmatpush1.msra.mxu0 0.0
          %4103 = vmatprep.subr.mxu0 0.0
          %4104 = vmatpush1.msra.mxu0 0.0
          %4105 = vmatprep.subr.mxu0 0.0
          %4106 = vmatpush1.msra.mxu0 0.0
          %4107 = vmatprep.subr.mxu0 0.0
          %4108 = vmatpush1.msra.mxu0 0.0
          %4109 = vmatprep.subr.mxu0 0.0
          %4110 = vmatpush1.msra.mxu0 0.0
          %4111 = vmatprep.subr.mxu0 0.0
          %4112 = vmatpush1.msra.mxu0 0.0
          %4113 = vmatprep.subr.mxu0 0.0
          %4114 = vmatpush1.msra.mxu0 0.0
          %4115 = vmatprep.subr.mxu0 0.0
          %4116 = vmatpush1.msra.mxu0 0.0
          %4117 = vmatprep.subr.mxu0 0.0
          %4118 = vmatpush1.msra.mxu0 0.0
          %4119 = vmatprep.subr.mxu0 0.0
          %4120 = vmatpush1.msra.mxu0 0.0
          %4121 = vmatprep.subr.mxu0 0.0
          %4122 = vmatpush1.msra.mxu0 0.0
          %4123 = vmatprep.subr.mxu0 0.0
          %4124 = vmatpush1.msra.mxu0 0.0
          %4125 = vmatprep.mubr.f32.mxu0 0.0
          %4126 = vmatmul.mubr.f32.gmra.mrb[0].mxu0 %v4059
          %v4127 = vpop.f32.mrb[0].mxu0
          %v4128 = vadd.f32 0.0, %v4127
          %v4129 = vpop.f32.mrb[0].mxu0
          %4130 = vdwg.mxu0
          %v4132 = vrot.slane %v4128, 1
          %v4133 = vrot.slane %v4128, 2
          %v4134 = vrot.slane %v4128, 3
          %v4135 = vrot.slane %v4128, 4
          %v4140 = vadd.f32 %v440, %v4132
          %v4141 = vadd.f32 %v441, %v4133
          %v4142 = vadd.f32 %v442, %v4134
          %v4143 = vadd.f32 %v443, %v4135
          %4144 = vmatprep.subr.mxu0 0.0
          %4145 = vmatpush1.msra.mxu0 %v749
          %4146 = vmatprep.subr.mxu0 0.0
          %4147 = vmatpush1.msra.mxu0 %v750
          %4148 = vmatprep.subr.mxu0 0.0
          %4149 = vmatpush1.msra.mxu0 %v751
          %4150 = vmatprep.subr.mxu0 0.0
          %4151 = vmatpush1.msra.mxu0 %v752
          %4152 = vmatprep.subr.mxu0 0.0
          %4153 = vmatpush1.msra.mxu0 0.0
          %4154 = vmatprep.subr.mxu0 0.0
          %4155 = vmatpush1.msra.mxu0 0.0
          %4156 = vmatprep.subr.mxu0 0.0
          %4157 = vmatpush1.msra.mxu0 0.0
          %4158 = vmatprep.subr.mxu0 0.0
          %4159 = vmatpush1.msra.mxu0 0.0
          %4160 = vmatprep.subr.mxu0 0.0
          %4161 = vmatpush1.msra.mxu0 0.0
          %4162 = vmatprep.subr.mxu0 0.0
          %4163 = vmatpush1.msra.mxu0 0.0
          %4164 = vmatprep.subr.mxu0 0.0
          %4165 = vmatpush1.msra.mxu0 0.0
          %4166 = vmatprep.subr.mxu0 0.0
          %4167 = vmatpush1.msra.mxu0 0.0
          %4168 = vmatprep.subr.mxu0 0.0
          %4169 = vmatpush1.msra.mxu0 0.0
          %4170 = vmatprep.subr.mxu0 0.0
          %4171 = vmatpush1.msra.mxu0 0.0
          %4172 = vmatprep.subr.mxu0 0.0
          %4173 = vmatpush1.msra.mxu0 0.0
          %4174 = vmatprep.subr.mxu0 0.0
          %4175 = vmatpush1.msra.mxu0 0.0
          %4176 = vmatprep.subr.mxu0 0.0
          %4177 = vmatpush1.msra.mxu0 0.0
          %4178 = vmatprep.subr.mxu0 0.0
          %4179 = vmatpush1.msra.mxu0 0.0
          %4180 = vmatprep.subr.mxu0 0.0
          %4181 = vmatpush1.msra.mxu0 0.0
          %4182 = vmatprep.subr.mxu0 0.0
          %4183 = vmatpush1.msra.mxu0 0.0
          %4184 = vmatprep.subr.mxu0 0.0
          %4185 = vmatpush1.msra.mxu0 0.0
          %4186 = vmatprep.subr.mxu0 0.0
          %4187 = vmatpush1.msra.mxu0 0.0
          %4188 = vmatprep.subr.mxu0 0.0
          %4189 = vmatpush1.msra.mxu0 0.0
          %4190 = vmatprep.subr.mxu0 0.0
          %4191 = vmatpush1.msra.mxu0 0.0
          %4192 = vmatprep.subr.mxu0 0.0
          %4193 = vmatpush1.msra.mxu0 0.0
          %4194 = vmatprep.subr.mxu0 0.0
          %4195 = vmatpush1.msra.mxu0 0.0
          %4196 = vmatprep.subr.mxu0 0.0
          %4197 = vmatpush1.msra.mxu0 0.0
          %4198 = vmatprep.subr.mxu0 0.0
          %4199 = vmatpush1.msra.mxu0 0.0
          %4200 = vmatprep.subr.mxu0 0.0
          %4201 = vmatpush1.msra.mxu0 0.0
          %4202 = vmatprep.subr.mxu0 0.0
          %4203 = vmatpush1.msra.mxu0 0.0
          %4204 = vmatprep.subr.mxu0 0.0
          %4205 = vmatpush1.msra.mxu0 0.0
          %4206 = vmatprep.subr.mxu0 0.0
          %4207 = vmatpush1.msra.mxu0 0.0
          %4208 = vmatprep.mubr.f32.mxu0 0.0
          %4209 = vmatmul.mubr.f32.gmra.mrb[0].mxu0 %v4059
          %v4210 = vpop.f32.mrb[0].mxu0
          %v4211 = vadd.f32 0.0, %v4210
          %v4212 = vpop.f32.mrb[0].mxu0
          %4213 = vdwg.mxu0
          %v4215 = vrot.slane %v4211, 1
          %v4216 = vrot.slane %v4211, 2
          %v4217 = vrot.slane %v4211, 3
          %v4218 = vrot.slane %v4211, 4
          %v4223 = vadd.f32 %v540, %v4215
          %v4224 = vadd.f32 %v541, %v4216
          %v4225 = vadd.f32 %v542, %v4217
          %v4226 = vadd.f32 %v543, %v4218
          %4227 = vmatprep.subr.mxu0 0.0
          %4228 = vmatpush1.msra.mxu0 %v754
          %4229 = vmatprep.subr.mxu0 0.0
          %4230 = vmatpush1.msra.mxu0 %v755
          %4231 = vmatprep.subr.mxu0 0.0
          %4232 = vmatpush1.msra.mxu0 %v756
          %4233 = vmatprep.subr.mxu0 0.0
          %4234 = vmatpush1.msra.mxu0 %v757
          %4235 = vmatprep.subr.mxu0 0.0
          %4236 = vmatpush1.msra.mxu0 0.0
          %4237 = vmatprep.subr.mxu0 0.0
          %4238 = vmatpush1.msra.mxu0 0.0
          %4239 = vmatprep.subr.mxu0 0.0
          %4240 = vmatpush1.msra.mxu0 0.0
          %4241 = vmatprep.subr.mxu0 0.0
          %4242 = vmatpush1.msra.mxu0 0.0
          %4243 = vmatprep.subr.mxu0 0.0
          %4244 = vmatpush1.msra.mxu0 0.0
          %4245 = vmatprep.subr.mxu0 0.0
          %4246 = vmatpush1.msra.mxu0 0.0
          %4247 = vmatprep.subr.mxu0 0.0
          %4248 = vmatpush1.msra.mxu0 0.0
          %4249 = vmatprep.subr.mxu0 0.0
          %4250 = vmatpush1.msra.mxu0 0.0
          %4251 = vmatprep.subr.mxu0 0.0
          %4252 = vmatpush1.msra.mxu0 0.0
          %4253 = vmatprep.subr.mxu0 0.0
          %4254 = vmatpush1.msra.mxu0 0.0
          %4255 = vmatprep.subr.mxu0 0.0
          %4256 = vmatpush1.msra.mxu0 0.0
          %4257 = vmatprep.subr.mxu0 0.0
          %4258 = vmatpush1.msra.mxu0 0.0
          %4259 = vmatprep.subr.mxu0 0.0
          %4260 = vmatpush1.msra.mxu0 0.0
          %4261 = vmatprep.subr.mxu0 0.0
          %4262 = vmatpush1.msra.mxu0 0.0
          %4263 = vmatprep.subr.mxu0 0.0
          %4264 = vmatpush1.msra.mxu0 0.0
          %4265 = vmatprep.subr.mxu0 0.0
          %4266 = vmatpush1.msra.mxu0 0.0
          %4267 = vmatprep.subr.mxu0 0.0
          %4268 = vmatpush1.msra.mxu0 0.0
          %4269 = vmatprep.subr.mxu0 0.0
          %4270 = vmatpush1.msra.mxu0 0.0
          %4271 = vmatprep.subr.mxu0 0.0
          %4272 = vmatpush1.msra.mxu0 0.0
          %4273 = vmatprep.subr.mxu0 0.0
          %4274 = vmatpush1.msra.mxu0 0.0
          %4275 = vmatprep.subr.mxu0 0.0
          %4276 = vmatpush1.msra.mxu0 0.0
          %4277 = vmatprep.subr.mxu0 0.0
          %4278 = vmatpush1.msra.mxu0 0.0
          %4279 = vmatprep.subr.mxu0 0.0
          %4280 = vmatpush1.msra.mxu0 0.0
          %4281 = vmatprep.subr.mxu0 0.0
          %4282 = vmatpush1.msra.mxu0 0.0
          %4283 = vmatprep.subr.mxu0 0.0
          %4284 = vmatpush1.msra.mxu0 0.0
          %4285 = vmatprep.subr.mxu0 0.0
          %4286 = vmatpush1.msra.mxu0 0.0
          %4287 = vmatprep.subr.mxu0 0.0
          %4288 = vmatpush1.msra.mxu0 0.0
          %4289 = vmatprep.subr.mxu0 0.0
          %4290 = vmatpush1.msra.mxu0 0.0
          %4291 = vmatprep.mubr.f32.mxu0 0.0
          %4292 = vmatmul.mubr.f32.gmra.mrb[0].mxu0 %v4059
          %v4293 = vpop.f32.mrb[0].mxu0
          %v4294 = vadd.f32 0.0, %v4293
          %v4295 = vpop.f32.mrb[0].mxu0
          %4296 = vdwg.mxu0
          %v4298 = vrot.slane %v4294, 1
          %v4299 = vrot.slane %v4294, 2
          %v4300 = vrot.slane %v4294, 3
          %v4301 = vrot.slane %v4294, 4
          %v4306 = vadd.f32 %v640, %v4298
          %v4307 = vadd.f32 %v641, %v4299
          %v4308 = vadd.f32 %v642, %v4300
          %v4309 = vadd.f32 %v643, %v4301
          %4310 = vmatprep.subr.mxu0 0.0
          %4311 = vmatpush1.msra.mxu0 %v759
          %4312 = vmatprep.subr.mxu0 0.0
          %4313 = vmatpush1.msra.mxu0 %v760
          %4314 = vmatprep.subr.mxu0 0.0
          %4315 = vmatpush1.msra.mxu0 %v761
          %4316 = vmatprep.subr.mxu0 0.0
          %4317 = vmatpush1.msra.mxu0 %v762
          %4318 = vmatprep.subr.mxu0 0.0
          %4319 = vmatpush1.msra.mxu0 0.0
          %4320 = vmatprep.subr.mxu0 0.0
          %4321 = vmatpush1.msra.mxu0 0.0
          %4322 = vmatprep.subr.mxu0 0.0
          %4323 = vmatpush1.msra.mxu0 0.0
          %4324 = vmatprep.subr.mxu0 0.0
          %4325 = vmatpush1.msra.mxu0 0.0
          %4326 = vmatprep.subr.mxu0 0.0
          %4327 = vmatpush1.msra.mxu0 0.0
          %4328 = vmatprep.subr.mxu0 0.0
          %4329 = vmatpush1.msra.mxu0 0.0
          %4330 = vmatprep.subr.mxu0 0.0
          %4331 = vmatpush1.msra.mxu0 0.0
          %4332 = vmatprep.subr.mxu0 0.0
          %4333 = vmatpush1.msra.mxu0 0.0
          %4334 = vmatprep.subr.mxu0 0.0
          %4335 = vmatpush1.msra.mxu0 0.0
          %4336 = vmatprep.subr.mxu0 0.0
          %4337 = vmatpush1.msra.mxu0 0.0
          %4338 = vmatprep.subr.mxu0 0.0
          %4339 = vmatpush1.msra.mxu0 0.0
          %4340 = vmatprep.subr.mxu0 0.0
          %4341 = vmatpush1.msra.mxu0 0.0
          %4342 = vmatprep.subr.mxu0 0.0
          %4343 = vmatpush1.msra.mxu0 0.0
          %4344 = vmatprep.subr.mxu0 0.0
          %4345 = vmatpush1.msra.mxu0 0.0
          %4346 = vmatprep.subr.mxu0 0.0
          %4347 = vmatpush1.msra.mxu0 0.0
          %4348 = vmatprep.subr.mxu0 0.0
          %4349 = vmatpush1.msra.mxu0 0.0
          %4350 = vmatprep.subr.mxu0 0.0
          %4351 = vmatpush1.msra.mxu0 0.0
          %4352 = vmatprep.subr.mxu0 0.0
          %4353 = vmatpush1.msra.mxu0 0.0
          %4354 = vmatprep.subr.mxu0 0.0
          %4355 = vmatpush1.msra.mxu0 0.0
          %4356 = vmatprep.subr.mxu0 0.0
          %4357 = vmatpush1.msra.mxu0 0.0
          %4358 = vmatprep.subr.mxu0 0.0
          %4359 = vmatpush1.msra.mxu0 0.0
          %4360 = vmatprep.subr.mxu0 0.0
          %4361 = vmatpush1.msra.mxu0 0.0
          %4362 = vmatprep.subr.mxu0 0.0
          %4363 = vmatpush1.msra.mxu0 0.0
          %4364 = vmatprep.subr.mxu0 0.0
          %4365 = vmatpush1.msra.mxu0 0.0
          %4366 = vmatprep.subr.mxu0 0.0
          %4367 = vmatpush1.msra.mxu0 0.0
          %4368 = vmatprep.subr.mxu0 0.0
          %4369 = vmatpush1.msra.mxu0 0.0
          %4370 = vmatprep.subr.mxu0 0.0
          %4371 = vmatpush1.msra.mxu0 0.0
          %4372 = vmatprep.subr.mxu0 0.0
          %4373 = vmatpush1.msra.mxu0 0.0
          %4374 = vmatprep.mubr.f32.mxu0 0.0
          %4375 = vmatmul.mubr.f32.gmra.mrb[0].mxu0 %v4059
          %v4376 = vpop.f32.mrb[0].mxu0
          %v4377 = vadd.f32 0.0, %v4376
          %v4378 = vpop.f32.mrb[0].mxu0
          %4379 = vdwg.mxu0
          %v4381 = vrot.slane %v4377, 1
          %v4382 = vrot.slane %v4377, 2
          %v4383 = vrot.slane %v4377, 3
          %v4384 = vrot.slane %v4377, 4
          %v4389 = vadd.f32 %v740, %v4381
          %v4390 = vadd.f32 %v741, %v4382
          %v4391 = vadd.f32 %v742, %v4383
          %v4392 = vadd.f32 %v743, %v4384
          %v4393 = vxor.u32 %v4140, 2147483648
          %v4394 = vxor.u32 %v4141, 2147483648
          %v4395 = vxor.u32 %v4142, 2147483648
          %v4396 = vxor.u32 %v4143, 2147483648
          %v4397 = vmul.f32 %v4393, 1.442695
          %v4398 = vpow.pop %v4397
          %v4399 = vmul.f32 %v4394, 1.442695
          %v4400 = vpow.pop %v4399
          %v4401 = vmul.f32 %v4395, 1.442695
          %v4402 = vpow.pop %v4401
          %v4403 = vmul.f32 %v4396, 1.442695
          %v4404 = vpow.pop %v4403
          %v4405 = vadd.f32 %v4398, 1.0
          %v4406 = vadd.f32 %v4400, 1.0
          %v4407 = vadd.f32 %v4402, 1.0
          %v4408 = vadd.f32 %v4404, 1.0
          %v4409 = vrcp.pop %v4405
          %v4410 = vmul.f32 1.0, %v4409
          %v4411 = vrcp.pop %v4406
          %v4412 = vmul.f32 1.0, %v4411
          %v4413 = vrcp.pop %v4407
          %v4414 = vmul.f32 1.0, %v4413
          %v4415 = vrcp.pop %v4408
          %v4416 = vmul.f32 1.0, %v4415
          %v4417 = vxor.u32 %v4223, 2147483648
          %v4418 = vxor.u32 %v4224, 2147483648
          %v4419 = vxor.u32 %v4225, 2147483648
          %v4420 = vxor.u32 %v4226, 2147483648
          %v4421 = vmul.f32 %v4417, 1.442695
          %v4422 = vpow.pop %v4421
          %v4423 = vmul.f32 %v4418, 1.442695
          %v4424 = vpow.pop %v4423
          %v4425 = vmul.f32 %v4419, 1.442695
          %v4426 = vpow.pop %v4425
          %v4427 = vmul.f32 %v4420, 1.442695
          %v4428 = vpow.pop %v4427
          %v4429 = vadd.f32 %v4422, 1.0
          %v4430 = vadd.f32 %v4424, 1.0
          %v4431 = vadd.f32 %v4426, 1.0
          %v4432 = vadd.f32 %v4428, 1.0
          %v4433 = vrcp.pop %v4429
          %v4434 = vmul.f32 1.0, %v4433
          %v4435 = vrcp.pop %v4430
          %v4436 = vmul.f32 1.0, %v4435
          %v4437 = vrcp.pop %v4431
          %v4438 = vmul.f32 1.0, %v4437
          %v4439 = vrcp.pop %v4432
          %v4440 = vmul.f32 1.0, %v4439
          %v4441 = vtanh.pop %v4306
          %v4442 = vtanh.pop %v4307
          %v4443 = vtanh.pop %v4308
          %v4444 = vtanh.pop %v4309
          %v4445 = vxor.u32 %v4389, 2147483648
          %v4446 = vxor.u32 %v4390, 2147483648
          %v4447 = vxor.u32 %v4391, 2147483648
          %v4448 = vxor.u32 %v4392, 2147483648
          %v4449 = vmul.f32 %v4445, 1.442695
          %v4450 = vpow.pop %v4449
          %v4451 = vmul.f32 %v4446, 1.442695
          %v4452 = vpow.pop %v4451
          %v4453 = vmul.f32 %v4447, 1.442695
          %v4454 = vpow.pop %v4453
          %v4455 = vmul.f32 %v4448, 1.442695
          %v4456 = vpow.pop %v4455
          %v4457 = vadd.f32 %v4450, 1.0
          %v4458 = vadd.f32 %v4452, 1.0
          %v4459 = vadd.f32 %v4454, 1.0
          %v4460 = vadd.f32 %v4456, 1.0
          %v4461 = vrcp.pop %v4457
          %v4462 = vmul.f32 1.0, %v4461
          %v4463 = vrcp.pop %v4458
          %v4464 = vmul.f32 1.0, %v4463
          %v4465 = vrcp.pop %v4459
          %v4466 = vmul.f32 1.0, %v4465
          %v4467 = vrcp.pop %v4460
          %v4468 = vmul.f32 1.0, %v4467
          %v4470 = vrot.slane %v4057, 1
          %v4471 = vrot.slane %v4057, 2
          %v4472 = vrot.slane %v4057, 3
          %v4473 = vrot.slane %v4057, 4
          %v4478 = vmul.f32 %v4434, %v4470
          %v4479 = vmul.f32 %v4436, %v4471
          %v4480 = vmul.f32 %v4438, %v4472
          %v4481 = vmul.f32 %v4440, %v4473
          %v4482 = vmul.f32 %v4410, %v4441
          %v4483 = vmul.f32 %v4412, %v4442
          %v4484 = vmul.f32 %v4414, %v4443
          %v4485 = vmul.f32 %v4416, %v4444
          %v4486 = vadd.f32 %v4478, %v4482
          %v4487 = vadd.f32 %v4479, %v4483
          %v4488 = vadd.f32 %v4480, %v4484
          %v4489 = vadd.f32 %v4481, %v4485
          %v4490 = vtanh.pop %v4486
          %v4491 = vtanh.pop %v4487
          %v4492 = vtanh.pop %v4488
          %v4493 = vtanh.pop %v4489
          %v4494 = vmul.f32 %v4462, %v4490
          %v4495 = vmul.f32 %v4464, %v4491
          %v4496 = vmul.f32 %v4466, %v4492
          %v4497 = vmul.f32 %v4468, %v4493
          %s4498 = sadd.s32 %s322, 7
          %v4499 = vstv %s4498
          %vm4500 = vcmp.lt.s32.totalorder %v4499, %v332
          %v4501 = vsel %vm4500, 1, 0
          %4502 = vset.pattern.permute.xlu0 0
          %4503 = vperm.xlu0 %4502, %v4501
          %v4504 = vpop.permute.xlu0 %4503
          %vm4505 = vcmp.eq.s32.totalorder %v4504, 1
          %v4510 = vrot.slane %v4494, 7
          %v4511 = vrot.slane %v4495, 6
          %v4512 = vsel %vm1213, %v4511, %v4510
          %v4513 = vrot.slane %v4496, 5
          %v4514 = vsel %vm1216, %v4513, %v4512
          %v4515 = vrot.slane %v4497, 4
          %v4516 = vsel %vm1219, %v4515, %v4514
          %v4518 = vsel %vm4505, %v4516, %v4044
          %v4523 = vrot.slane %v4486, 7
          %v4524 = vrot.slane %v4487, 6
          %v4525 = vsel %vm1213, %v4524, %v4523
          %v4526 = vrot.slane %v4488, 5
          %v4527 = vsel %vm1216, %v4526, %v4525
          %v4528 = vrot.slane %v4489, 4
          %v4529 = vsel %vm1219, %v4528, %v4527
          %v4531 = vsel %vm4505, %v4529, %v4057
          %vm4532 = vcmask 257024
          %4533 = vst.msk [vmem:[#allocation2] sm:$0xf] %vm4532, %v4518
          %4534 = vst.msk [vmem:[#allocation3] sm:$0xf] %vm4532, %v4531
        $region68: #{tpu_custom_call.1} parent=47 // pred_fallthru
          _
        %p4535 = scmp.eq.s32.totalorder %s25, 1
        // Predicated region
        $region69: #{tpu_custom_call.1} parent=47 // pred_check
          %p4536 = pneg %p4535
        $region70: #{tpu_custom_call.1} parent=47 // pred_check_branch
          %4538 = sbr.rel (%p4536) target = $region72
        $region71: #{tpu_custom_call.1} parent=47 // pred_region
          %v4539 = vld [vmem:[#allocation2] sm:$0xf]
          %v4540 = vld [vmem:[%s6] sm:$0xff]
          %v4541 = vld [vmem:[%s6 + $0x8] sm:$0xff]
          %v4542 = vld [vmem:[%s6 + $0x10] sm:$0xff]
          %v4543 = vld [vmem:[%s6 + $0x18] sm:$0xff]
          %v4544 = vld [vmem:[%s7] sm:$0x1]
          %v4546 = vlaneseq
          %v4547 = vshrl.u32 %v4546, 7
          %v4548 = vsub.s32 0, %v4547
          %v4549 = vrot.slane %v4544, %v4548
          %vm4551 = vcmask 261120
          %v4553 = vsel %vm4551, %v4539, 0
          %4555 = vmatprep.subr.mxu0 0.0
          %4556 = vmatpush1.msra.mxu0 %v4540
          %4557 = vmatprep.subr.mxu0 0.0
          %4558 = vmatpush1.msra.mxu0 %v4541
          %4559 = vmatprep.subr.mxu0 0.0
          %4560 = vmatpush1.msra.mxu0 %v4542
          %4561 = vmatprep.subr.mxu0 0.0
          %4562 = vmatpush1.msra.mxu0 %v4543
          %4563 = vmatprep.subr.mxu0 0.0
          %4564 = vmatpush1.msra.mxu0 0.0
          %4565 = vmatprep.subr.mxu0 0.0
          %4566 = vmatpush1.msra.mxu0 0.0
          %4567 = vmatprep.subr.mxu0 0.0
          %4568 = vmatpush1.msra.mxu0 0.0
          %4569 = vmatprep.subr.mxu0 0.0
          %4570 = vmatpush1.msra.mxu0 0.0
          %4571 = vmatprep.subr.mxu0 0.0
          %4572 = vmatpush1.msra.mxu0 0.0
          %4573 = vmatprep.subr.mxu0 0.0
          %4574 = vmatpush1.msra.mxu0 0.0
          %4575 = vmatprep.subr.mxu0 0.0
          %4576 = vmatpush1.msra.mxu0 0.0
          %4577 = vmatprep.subr.mxu0 0.0
          %4578 = vmatpush1.msra.mxu0 0.0
          %4579 = vmatprep.subr.mxu0 0.0
          %4580 = vmatpush1.msra.mxu0 0.0
          %4581 = vmatprep.subr.mxu0 0.0
          %4582 = vmatpush1.msra.mxu0 0.0
          %4583 = vmatprep.subr.mxu0 0.0
          %4584 = vmatpush1.msra.mxu0 0.0
          %4585 = vmatprep.subr.mxu0 0.0
          %4586 = vmatpush1.msra.mxu0 0.0
          %4587 = vmatprep.subr.mxu0 0.0
          %4588 = vmatpush1.msra.mxu0 0.0
          %4589 = vmatprep.subr.mxu0 0.0
          %4590 = vmatpush1.msra.mxu0 0.0
          %4591 = vmatprep.subr.mxu0 0.0
          %4592 = vmatpush1.msra.mxu0 0.0
          %4593 = vmatprep.subr.mxu0 0.0
          %4594 = vmatpush1.msra.mxu0 0.0
          %4595 = vmatprep.subr.mxu0 0.0
          %4596 = vmatpush1.msra.mxu0 0.0
          %4597 = vmatprep.subr.mxu0 0.0
          %4598 = vmatpush1.msra.mxu0 0.0
          %4599 = vmatprep.subr.mxu0 0.0
          %4600 = vmatpush1.msra.mxu0 0.0
          %4601 = vmatprep.subr.mxu0 0.0
          %4602 = vmatpush1.msra.mxu0 0.0
          %4603 = vmatprep.subr.mxu0 0.0
          %4604 = vmatpush1.msra.mxu0 0.0
          %4605 = vmatprep.subr.mxu0 0.0
          %4606 = vmatpush1.msra.mxu0 0.0
          %4607 = vmatprep.subr.mxu0 0.0
          %4608 = vmatpush1.msra.mxu0 0.0
          %4609 = vmatprep.subr.mxu0 0.0
          %4610 = vmatpush1.msra.mxu0 0.0
          %4611 = vmatprep.subr.mxu0 0.0
          %4612 = vmatpush1.msra.mxu0 0.0
          %4613 = vmatprep.subr.mxu0 0.0
          %4614 = vmatpush1.msra.mxu0 0.0
          %4615 = vmatprep.subr.mxu0 0.0
          %4616 = vmatpush1.msra.mxu0 0.0
          %4617 = vmatprep.subr.mxu0 0.0
          %4618 = vmatpush1.msra.mxu0 0.0
          %4619 = vmatprep.mubr.f32.mxu0 0.0
          %4620 = vmatmul.mubr.f32.gmra.mrb[0].mxu0 %v4553
          %v4621 = vpop.f32.mrb[0].mxu0
          %v4622 = vadd.f32 %v4549, %v4621
          %v4623 = vpop.f32.mrb[0].mxu0
          %4624 = vdwg.mxu0
          %vm4625 = vcmask 60416
          %v4626 = vsel %vm4625, %v4622, -inf
          %4627 = vmax.xlane.f32.xlu0 %v4626
          %v4628 = vpop.xlane.xlu0 %4627
          %v4629 = vsub.f32 %v4622, %v4628
          %v4630 = vmul.f32 %v4629, 1.442695
          %v4631 = vpow.pop %v4630
          %v4632 = vsel %vm4625, %v4631, 0.0
          %4633 = vadd.xlane.f32.xlu0 %v4632
          %v4634 = vpop.xlane.xlu0 %4633
          %v4635 = vrcp.pop %v4634
          %v4636 = vmul.f32 %v4631, %v4635
          %4637 = vst.msk [vmem:[#allocation12] sm:$0xf] %vm4625, %v4636
        $region72: #{tpu_custom_call.1} parent=47 // pred_fallthru
          _
        // Predicated region
        $region73: #{tpu_custom_call.1} parent=47 // pred_check
          %p4638 = pneg %p190
        $region74: #{tpu_custom_call.1} parent=47 // pred_check_branch
          %4640 = sbr.rel (%p4638) target = $region76
        $region75: #{tpu_custom_call.1} parent=47 // pred_region
          %s4642 = ssub.s32 64, 64
          %4643 = vsyncadd [#allocation8], %s4642
          %s4645 = sshll.u32 [#allocation12], 4
          %s4646 = int_to_ptr.vmem [resolvable:$true] %s4645
          %4648 = dma.vmem_to_hbm [thread:$0]  %s4646, 64, %s8, [#allocation8]
        $region76: #{tpu_custom_call.1} parent=47 // pred_fallthru
          _
        // Predicated region
        $region77: #{tpu_custom_call.1} parent=47 // pred_check
          %p4649 = pneg %p190
        $region78: #{tpu_custom_call.1} parent=47 // pred_check_branch
          %4651 = sbr.rel (%p4649) target = $region80
        $region79: #{tpu_custom_call.1} parent=47 // pred_region
          %4652 = dma.done [#allocation8], 64
        $region80: #{tpu_custom_call.1} parent=47 // pred_fallthru
          _
      $region48: #{tpu_custom_call.1} parent=5 // pred_fallthru
        _
      %p4653 = scmp.le.s32.totalorder 2, %s20
      // Predicated region
      $region81: #{tpu_custom_call.1} parent=5 // pred_check
        %p4654 = pneg %p4653
      $region82: #{tpu_custom_call.1} parent=5 // pred_check_branch
        %4656 = sbr.rel (%p4654) target = $region84
      $region83: #{tpu_custom_call.1} parent=5 // pred_region
        %s4657 = ssub.s32 %s20, 2
      $region84: #{tpu_custom_call.1} parent=5 // pred_fallthru
        _
    $region6: #{tpu_custom_call.1} parent=1 // loop_footer
      %s24 = sadd.s32 1, %s20
    $region7: #{tpu_custom_call.1} parent=1 // loop_footer_branch
      %19 = sbr.rel target = $region3
    $region8: #{tpu_custom_call.1} parent=1 // loop_exit
      _
    %4658 = vsyncpa [#allocation7], 1
    %s4659 = scalar_lea.sflag [#allocation7], 1
    %4660 = vsyncpa %s4659, 1
    %4661 = vsyncpa [#allocation10], 1
    %4662 = vsyncpa [#allocation8], 1
    %s4663 = scalar_lea.sflag [#allocation8], 1
    %4664 = vsyncpa %s4663, 1

</llo_original>
